<compile_context>
chip_gen: v7x
topology: tpu7x:2x2x1
jax: 0.10.0
libtpu: 0.0.40
codegen_flags: <defaults>
</compile_context>

<pallas_src>
import functools

import jax
import jax.numpy as jnp
from jax.experimental import pallas as pl
from jax.experimental.pallas import tpu as pltpu

BN_EPS = 1e-5
NEG_SLOPE = 0.2
LANE = 128
W5_CHUNK = 256  # lanes per w5 DMA / layer-5 compute chunk (multiple of 128)


def _round_up(n, m):
    return ((n + m - 1) // m) * m


def _leaky(h):
    return jnp.where(h > 0, h, NEG_SLOPE * h)


def _bn_leaky(pre, gamma, beta):
    # BatchNorm1d (training mode, biased batch variance, eps=1e-5) folded into a
    # single scale/shift, followed by LeakyReLU(0.2).  All math in f32.
    mean = jnp.mean(pre, axis=0, keepdims=True)
    diff = pre - mean
    var = jnp.mean(diff * diff, axis=0, keepdims=True)
    scale = gamma * jax.lax.rsqrt(var + BN_EPS)
    shift = beta - mean * scale
    return _leaky(pre * scale + shift)


def vanilla_net_kernel(
    z_ref, lab_ref, tbl_ref, w1_ref,
    w2_ref, g2_ref, be2_ref,
    w3_ref, g3_ref, be3_ref,
    w4_hbm, g4_ref, be4_ref,
    w5_hbm, b5_ref,
    out_ref,
    w4_vmem, w5_vmem, sems,
):
    out_pad = out_ref.shape[1]

    # ---- Late-layer weight DMAs --------------------------------------------
    # w4 gates layer 4, so its copy is issued first and whole.  w5 (the largest
    # slab, ~56% of weight bytes) is issued afterwards in lane-aligned 256-lane
    # chunks so layer-5 compute can start on each chunk as soon as it arrives
    # instead of stalling behind the full transfer.
    cp4 = pltpu.make_async_copy(w4_hbm, w4_vmem, sems.at[0])
    cp4.start()

    chunk_bounds = []
    o = 0
    while o < out_pad:
        w = min(W5_CHUNK, out_pad - o)
        chunk_bounds.append((o, w))
        o += w
    cps5 = []
    for c, (off, width) in enumerate(chunk_bounds):
        cp = pltpu.make_async_copy(
            w5_hbm.at[:, off:off + width],
            w5_vmem.at[:, off:off + width],
            sems.at[1 + c],
        )
        cp.start()
        cps5.append(cp)

    # ---- Layer 1: [z | emb(label)] @ W1 + b1 -> LeakyReLU --------------------
    # Embedding + the embedding half of W1 + b1 are pre-folded into tbl
    # (num_classes, 128) in f32; the per-label gather is an exact f32 one-hot
    # matmul done here so the wrapper has zero prep ops per call.
    b = z_ref.shape[0]
    nc = tbl_ref.shape[0]
    lab = lab_ref[...]                                          # (B, 1) int32
    iota = jax.lax.broadcasted_iota(jnp.int32, (b, nc), 1)
    onehot = (iota == lab).astype(jnp.float32)                  # (B, nc)
    emb_bias = jnp.dot(onehot, tbl_ref[...],
                       preferred_element_type=jnp.float32)      # (B, 128)

    h = jnp.dot(z_ref[...].astype(jnp.bfloat16), w1_ref[...],
                preferred_element_type=jnp.float32) + emb_bias
    h = _leaky(h)

    # ---- Layer 2: Linear -> BN(batch stats) -> LeakyReLU ---------------------
    # (Linear biases b2/b3/b4 cancel exactly under training-mode BatchNorm.)
    pre = jnp.dot(h.astype(jnp.bfloat16), w2_ref[...],
                  preferred_element_type=jnp.float32)
    h = _bn_leaky(pre, g2_ref[...], be2_ref[...])

    # ---- Layer 3 --------------------------------------------------------------
    pre = jnp.dot(h.astype(jnp.bfloat16), w3_ref[...],
                  preferred_element_type=jnp.float32)
    h = _bn_leaky(pre, g3_ref[...], be3_ref[...])

    # ---- Layer 4 (weights arrive via the DMA issued at kernel entry) ----------
    cp4.wait()
    pre = jnp.dot(h.astype(jnp.bfloat16), w4_vmem[...],
                  preferred_element_type=jnp.float32)
    h = _bn_leaky(pre, g4_ref[...], be4_ref[...])
    h16 = h.astype(jnp.bfloat16)

    # ---- Layer 5: Linear + b5 -> Tanh, chunk-by-chunk as w5 lands -------------
    for c, (off, width) in enumerate(chunk_bounds):
        cps5[c].wait()
        pre = jnp.dot(h16, w5_vmem[:, off:off + width],
                      preferred_element_type=jnp.float32)
        pre = pre + b5_ref[:, off:off + width]
        out_ref[:, off:off + width] = jnp.tanh(pre)


def init_params(key, latent_dim, num_classes, channels, image_size):
    """Raw (PyTorch-layout, f32) parameters of the module."""
    dims_in = latent_dim + num_classes
    hidden = (128, 256, 512, 1024)
    out_dim = channels * image_size * image_size
    sizes = ((dims_in, hidden[0]), (hidden[0], hidden[1]), (hidden[1], hidden[2]),
             (hidden[2], hidden[3]), (hidden[3], out_dim))
    keys = jax.random.split(key, 17)
    p = {"emb": 0.02 * jax.random.normal(keys[0], (num_classes, num_classes), jnp.float32)}
    for i, (fi, fo) in enumerate(sizes, start=1):
        bound = 1.0 / (fi ** 0.5)
        p[f"w{i}"] = 0.02 * jax.random.normal(keys[2 * i - 1], (fi, fo), jnp.float32)
        p[f"b{i}"] = jax.random.uniform(keys[2 * i], (1, fo), jnp.float32, -bound, bound)
    for j, (i, d) in enumerate(((2, hidden[1]), (3, hidden[2]), (4, hidden[3]))):
        p[f"g{i}"] = 1.0 + 0.1 * jax.random.normal(keys[11 + 2 * j], (1, d), jnp.float32)
        p[f"be{i}"] = 0.1 * jax.random.normal(keys[12 + 2 * j], (1, d), jnp.float32)
    return p


def prepare_kernel_params(raw, latent_dim):
    """One-time fold / cast / pad of the raw params into kernel layout.

    Hoisted out of the per-call forward path (review item): emb @ W1[latent:]
    + b1 folds into a (num_classes, 128) f32 bias table, hot-path weights are
    cast to bf16, and w5/b5 are pre-padded to a multiple of 128 output lanes.
    """
    out_dim = raw["w5"].shape[1]
    out_pad = _round_up(out_dim, LANE)
    kp = {
        "tbl": jnp.dot(raw["emb"], raw["w1"][latent_dim:],
                       precision=jax.lax.Precision.HIGHEST) + raw["b1"],
        "w1z": raw["w1"][:latent_dim].astype(jnp.bfloat16),
    }
    for i in (2, 3, 4):
        kp[f"w{i}"] = raw[f"w{i}"].astype(jnp.bfloat16)
        kp[f"g{i}"] = raw[f"g{i}"]
        kp[f"be{i}"] = raw[f"be{i}"]
    kp["w5p"] = jnp.pad(raw["w5"].astype(jnp.bfloat16), ((0, 0), (0, out_pad - out_dim)))
    kp["b5p"] = jnp.pad(raw["b5"], ((0, 0), (0, out_pad - out_dim)))
    return kp


@functools.partial(jax.jit, static_argnames=("channels", "image_size"))
def vanilla_net_forward(z, labels, kp, *, channels, image_size):
    batch, latent = z.shape
    out_dim = channels * image_size * image_size
    out_pad = kp["w5p"].shape[1]
    n_chunks = pl.cdiv(out_pad, W5_CHUNK)
    lab2d = labels.astype(jnp.int32).reshape(batch, 1)

    kernel_args = (
        z, lab2d, kp["tbl"], kp["w1z"],
        kp["w2"], kp["g2"], kp["be2"],
        kp["w3"], kp["g3"], kp["be3"],
        kp["w4"], kp["g4"], kp["be4"],
        kp["w5p"], kp["b5p"],
    )

    vmem = pl.BlockSpec(memory_space=pltpu.MemorySpace.VMEM)
    hbm = pl.BlockSpec(memory_space=pl.ANY)   # w4, w5: manual overlapped DMA
    in_specs = [vmem] * 10 + [hbm, vmem, vmem, hbm, vmem]

    flops = 2 * batch * (latent * 128 + 128 * 256 + 256 * 512
                         + 512 * 1024 + 1024 * out_pad)
    bytes_accessed = sum(int(a.size) * a.dtype.itemsize for a in kernel_args) \
        + batch * out_pad * 4
    transcendentals = batch * out_pad + (256 + 512 + 1024)

    flat = pl.pallas_call(
        vanilla_net_kernel,
        out_shape=jax.ShapeDtypeStruct((batch, out_pad), jnp.float32),
        in_specs=in_specs,
        out_specs=vmem,
        scratch_shapes=[
            pltpu.VMEM(kp["w4"].shape, jnp.bfloat16),    # w4 landing buffer
            pltpu.VMEM(kp["w5p"].shape, jnp.bfloat16),   # w5 landing buffer
            pltpu.SemaphoreType.DMA((1 + n_chunks,)),    # [0]=w4, [1:]=w5 chunks
        ],
        cost_estimate=pl.CostEstimate(
            flops=int(flops),
            transcendentals=int(transcendentals),
            bytes_accessed=int(bytes_accessed),
        ),
    )(*kernel_args)

    return flat[:, :out_dim].reshape(batch, channels, image_size, image_size)


def reference_forward(z, labels, raw, *, channels, image_size):
    """Pure-jnp mirror of the PyTorch training-mode forward.

    Matmul inputs are cast to bf16 to mirror the kernel's MXU feeds; BN,
    activations and tanh are f32.  Linear biases b2/b3/b4 ARE applied here,
    so the comparison also validates their exact cancellation under
    batch-statistics BatchNorm.
    """
    def lin(x, w, b):
        return jnp.dot(x.astype(jnp.bfloat16), w.astype(jnp.bfloat16),
                       preferred_element_type=jnp.float32) + b

    emb = raw["emb"][labels]
    h = jnp.concatenate([z, emb], axis=-1)
    h = lin(h, raw["w1"], raw["b1"])
    h = jnp.where(h > 0, h, NEG_SLOPE * h)
    for i in (2, 3, 4):
        h = lin(h, raw[f"w{i}"], raw[f"b{i}"])
        mean = h.mean(0, keepdims=True)
        var = ((h - mean) ** 2).mean(0, keepdims=True)
        h = raw[f"g{i}"] * (h - mean) / jnp.sqrt(var + BN_EPS) + raw[f"be{i}"]
        h = jnp.where(h > 0, h, NEG_SLOPE * h)
    h = lin(h, raw["w5"], raw["b5"])
    out = jnp.tanh(h)
    return out.reshape(z.shape[0], channels, image_size, image_size)


if __name__ == "__main__":
    # Module-default (still small) shapes: MNIST-style conditional generator.
    batch = 8
    image_size = 28
    channels = 1
    num_classes = 10
    latent_dim = 100

    key = jax.random.PRNGKey(0)
    k_params, k_z, k_lab = jax.random.split(key, 3)

    raw = init_params(k_params, latent_dim, num_classes, channels, image_size)
    kp = prepare_kernel_params(raw, latent_dim)   # one-time fold/cast/pad

    z = jax.random.normal(k_z, (batch, latent_dim), jnp.float32)
    labels = jax.random.randint(k_lab, (batch,), 0, num_classes, jnp.int32)

    out = vanilla_net_forward(z, labels, kp, channels=channels, image_size=image_size)
    out = jax.block_until_ready(out)

    assert out.shape == (batch, channels, image_size, image_size), out.shape
    assert out.dtype == jnp.float32
    assert bool(jnp.all(jnp.isfinite(out)))
    assert bool(jnp.all(jnp.abs(out) <= 1.0))  # tanh output range

    ref = reference_forward(z, labels, raw, channels=channels, image_size=image_size)
    max_err = float(jnp.max(jnp.abs(out - ref)))
    assert max_err < 1e-2, f"max abs error vs jnp reference: {max_err}"

    print("KERNEL_OK")
</pallas_src>

<mosaic_0001>
module attributes {stable_mosaic.version = 11 : i64} {
  func.func @vanilla_net_kernel(%arg0: memref<8x100xf32, #tpu.memory_space<vmem>>, %arg1: memref<8x1xi32, #tpu.memory_space<vmem>>, %arg2: memref<10x128xf32, #tpu.memory_space<vmem>>, %arg3: memref<100x128xbf16, #tpu.memory_space<vmem>>, %arg4: memref<128x256xbf16, #tpu.memory_space<vmem>>, %arg5: memref<1x256xf32, #tpu.memory_space<vmem>>, %arg6: memref<1x256xf32, #tpu.memory_space<vmem>>, %arg7: memref<256x512xbf16, #tpu.memory_space<vmem>>, %arg8: memref<1x512xf32, #tpu.memory_space<vmem>>, %arg9: memref<1x512xf32, #tpu.memory_space<vmem>>, %arg10: memref<512x1024xbf16, #tpu.memory_space<any>>, %arg11: memref<1x1024xf32, #tpu.memory_space<vmem>>, %arg12: memref<1x1024xf32, #tpu.memory_space<vmem>>, %arg13: memref<1024x896xbf16, #tpu.memory_space<any>>, %arg14: memref<1x896xf32, #tpu.memory_space<vmem>>, %arg15: memref<8x896xf32, #tpu.memory_space<vmem>>, %arg16: memref<512x1024xbf16, #tpu.memory_space<vmem>>, %arg17: memref<1024x896xbf16, #tpu.memory_space<vmem>>, %arg18: memref<5x!tpu.dma_semaphore, #tpu.memory_space<semaphore_mem>>) attributes {dimension_semantics = [], scalar_prefetch = 0 : i64, scratch_operands = 3 : i64, tpu.core_type = #tpu.core_type<tc>} {
    %c0_i32 = arith.constant 0 : i32
    %0 = tpu.memref_slice %arg18[%c0_i32] : memref<5x!tpu.dma_semaphore, #tpu.memory_space<semaphore_mem>> -> memref<1x!tpu.dma_semaphore, #tpu.memory_space<semaphore_mem>>
    %1 = tpu.memref_squeeze %0 : memref<1x!tpu.dma_semaphore, #tpu.memory_space<semaphore_mem>> -> memref<!tpu.dma_semaphore, #tpu.memory_space<semaphore_mem>>
    tpu.enqueue_dma source(%arg10 : memref<512x1024xbf16, #tpu.memory_space<any>>) target(%arg16 : memref<512x1024xbf16, #tpu.memory_space<vmem>>) target_semaphore(%1 : memref<!tpu.dma_semaphore, #tpu.memory_space<semaphore_mem>>)
    %c1_i32 = arith.constant 1 : i32
    %c0_i32_0 = arith.constant 0 : i32
    %c0_i32_1 = arith.constant 0 : i32
    %2 = tpu.memref_slice %arg13[%c0_i32_0, %c0_i32_1] : memref<1024x896xbf16, #tpu.memory_space<any>> -> memref<1024x256xbf16, #tpu.memory_space<any>>
    %c0_i32_2 = arith.constant 0 : i32
    %c0_i32_3 = arith.constant 0 : i32
    %3 = tpu.memref_slice %arg17[%c0_i32_2, %c0_i32_3] : memref<1024x896xbf16, #tpu.memory_space<vmem>> -> memref<1024x256xbf16, #tpu.memory_space<vmem>>
    %4 = tpu.memref_slice %arg18[%c1_i32] : memref<5x!tpu.dma_semaphore, #tpu.memory_space<semaphore_mem>> -> memref<1x!tpu.dma_semaphore, #tpu.memory_space<semaphore_mem>>
    %5 = tpu.memref_squeeze %4 : memref<1x!tpu.dma_semaphore, #tpu.memory_space<semaphore_mem>> -> memref<!tpu.dma_semaphore, #tpu.memory_space<semaphore_mem>>
    tpu.enqueue_dma source(%2 : memref<1024x256xbf16, #tpu.memory_space<any>>) target(%3 : memref<1024x256xbf16, #tpu.memory_space<vmem>>) target_semaphore(%5 : memref<!tpu.dma_semaphore, #tpu.memory_space<semaphore_mem>>)
    %c2_i32 = arith.constant 2 : i32
    %c0_i32_4 = arith.constant 0 : i32
    %c256_i32 = arith.constant 256 : i32
    %6 = tpu.memref_slice %arg13[%c0_i32_4, %c256_i32] : memref<1024x896xbf16, #tpu.memory_space<any>> -> memref<1024x256xbf16, #tpu.memory_space<any>>
    %c0_i32_5 = arith.constant 0 : i32
    %c256_i32_6 = arith.constant 256 : i32
    %7 = tpu.memref_slice %arg17[%c0_i32_5, %c256_i32_6] : memref<1024x896xbf16, #tpu.memory_space<vmem>> -> memref<1024x256xbf16, #tpu.memory_space<vmem>>
    %8 = tpu.memref_slice %arg18[%c2_i32] : memref<5x!tpu.dma_semaphore, #tpu.memory_space<semaphore_mem>> -> memref<1x!tpu.dma_semaphore, #tpu.memory_space<semaphore_mem>>
    %9 = tpu.memref_squeeze %8 : memref<1x!tpu.dma_semaphore, #tpu.memory_space<semaphore_mem>> -> memref<!tpu.dma_semaphore, #tpu.memory_space<semaphore_mem>>
    tpu.enqueue_dma source(%6 : memref<1024x256xbf16, #tpu.memory_space<any>>) target(%7 : memref<1024x256xbf16, #tpu.memory_space<vmem>>) target_semaphore(%9 : memref<!tpu.dma_semaphore, #tpu.memory_space<semaphore_mem>>)
    %c3_i32 = arith.constant 3 : i32
    %c0_i32_7 = arith.constant 0 : i32
    %c512_i32 = arith.constant 512 : i32
    %10 = tpu.memref_slice %arg13[%c0_i32_7, %c512_i32] : memref<1024x896xbf16, #tpu.memory_space<any>> -> memref<1024x256xbf16, #tpu.memory_space<any>>
    %c0_i32_8 = arith.constant 0 : i32
    %c512_i32_9 = arith.constant 512 : i32
    %11 = tpu.memref_slice %arg17[%c0_i32_8, %c512_i32_9] : memref<1024x896xbf16, #tpu.memory_space<vmem>> -> memref<1024x256xbf16, #tpu.memory_space<vmem>>
    %12 = tpu.memref_slice %arg18[%c3_i32] : memref<5x!tpu.dma_semaphore, #tpu.memory_space<semaphore_mem>> -> memref<1x!tpu.dma_semaphore, #tpu.memory_space<semaphore_mem>>
    %13 = tpu.memref_squeeze %12 : memref<1x!tpu.dma_semaphore, #tpu.memory_space<semaphore_mem>> -> memref<!tpu.dma_semaphore, #tpu.memory_space<semaphore_mem>>
    tpu.enqueue_dma source(%10 : memref<1024x256xbf16, #tpu.memory_space<any>>) target(%11 : memref<1024x256xbf16, #tpu.memory_space<vmem>>) target_semaphore(%13 : memref<!tpu.dma_semaphore, #tpu.memory_space<semaphore_mem>>)
    %c4_i32 = arith.constant 4 : i32
    %c0_i32_10 = arith.constant 0 : i32
    %c768_i32 = arith.constant 768 : i32
    %14 = tpu.memref_slice %arg13[%c0_i32_10, %c768_i32] : memref<1024x896xbf16, #tpu.memory_space<any>> -> memref<1024x128xbf16, #tpu.memory_space<any>>
    %c0_i32_11 = arith.constant 0 : i32
    %c768_i32_12 = arith.constant 768 : i32
    %15 = tpu.memref_slice %arg17[%c0_i32_11, %c768_i32_12] : memref<1024x896xbf16, #tpu.memory_space<vmem>> -> memref<1024x128xbf16, #tpu.memory_space<vmem>>
    %16 = tpu.memref_slice %arg18[%c4_i32] : memref<5x!tpu.dma_semaphore, #tpu.memory_space<semaphore_mem>> -> memref<1x!tpu.dma_semaphore, #tpu.memory_space<semaphore_mem>>
    %17 = tpu.memref_squeeze %16 : memref<1x!tpu.dma_semaphore, #tpu.memory_space<semaphore_mem>> -> memref<!tpu.dma_semaphore, #tpu.memory_space<semaphore_mem>>
    tpu.enqueue_dma source(%14 : memref<1024x128xbf16, #tpu.memory_space<any>>) target(%15 : memref<1024x128xbf16, #tpu.memory_space<vmem>>) target_semaphore(%17 : memref<!tpu.dma_semaphore, #tpu.memory_space<semaphore_mem>>)
    %c0 = arith.constant 0 : index
    %c0_13 = arith.constant 0 : index
    %18 = vector.load %arg1[%c0, %c0_13] : memref<8x1xi32, #tpu.memory_space<vmem>>, vector<8x1xi32>
    %19 = tpu.iota {dimensions = array<i32: 1>} : vector<8x10xi32>
    %20 = vector.broadcast %18 : vector<8x1xi32> to vector<8x10xi32>
    %21 = arith.cmpi eq, %19, %20 : vector<8x10xi32>
    %22 = arith.extui %21 : vector<8x10xi1> to vector<8x10xi32>
    %23 = arith.sitofp %22 : vector<8x10xi32> to vector<8x10xf32>
    %c0_14 = arith.constant 0 : index
    %c0_15 = arith.constant 0 : index
    %24 = vector.load %arg2[%c0_14, %c0_15] : memref<10x128xf32, #tpu.memory_space<vmem>>, vector<10x128xf32>
    %cst = arith.constant dense<0.000000e+00> : vector<8x128xf32>
    %25 = tpu.matmul %23, %24, %cst {dimension_numbers = #tpu.dot_dimension_numbers<[1], [0], [0], [1], [0, 0, 1, 1], [], []>} : vector<8x10xf32>, vector<10x128xf32>, vector<8x128xf32> -> vector<8x128xf32>
    %c0_16 = arith.constant 0 : index
    %c0_17 = arith.constant 0 : index
    %26 = vector.load %arg0[%c0_16, %c0_17] : memref<8x100xf32, #tpu.memory_space<vmem>>, vector<8x100xf32>
    %27 = arith.truncf %26 : vector<8x100xf32> to vector<8x100xbf16>
    %c0_18 = arith.constant 0 : index
    %c0_19 = arith.constant 0 : index
    %28 = vector.load %arg3[%c0_18, %c0_19] : memref<100x128xbf16, #tpu.memory_space<vmem>>, vector<100x128xbf16>
    %cst_20 = arith.constant dense<0.000000e+00> : vector<8x128xf32>
    %29 = tpu.matmul %27, %28, %cst_20 {dimension_numbers = #tpu.dot_dimension_numbers<[1], [0], [0], [1], [0, 0, 1, 1], [], []>} : vector<8x100xbf16>, vector<100x128xbf16>, vector<8x128xf32> -> vector<8x128xf32>
    %30 = arith.addf %29, %25 : vector<8x128xf32>
    %cst_21 = arith.constant 0.000000e+00 : f32
    %31 = vector.broadcast %cst_21 : f32 to vector<8x128xf32>
    %32 = arith.cmpf ogt, %30, %31 : vector<8x128xf32>
    %cst_22 = arith.constant 2.000000e-01 : f32
    %33 = vector.broadcast %cst_22 : f32 to vector<8x128xf32>
    %34 = arith.mulf %33, %30 : vector<8x128xf32>
    %35 = arith.select %32, %30, %34 : vector<8x128xi1>, vector<8x128xf32>
    %36 = arith.truncf %35 : vector<8x128xf32> to vector<8x128xbf16>
    %c0_23 = arith.constant 0 : index
    %c0_24 = arith.constant 0 : index
    %37 = vector.load %arg4[%c0_23, %c0_24] : memref<128x256xbf16, #tpu.memory_space<vmem>>, vector<128x256xbf16>
    %cst_25 = arith.constant dense<0.000000e+00> : vector<8x256xf32>
    %38 = tpu.matmul %36, %37, %cst_25 {dimension_numbers = #tpu.dot_dimension_numbers<[1], [0], [0], [1], [0, 0, 1, 1], [], []>} : vector<8x128xbf16>, vector<128x256xbf16>, vector<8x256xf32> -> vector<8x256xf32>
    %c0_26 = arith.constant 0 : index
    %c0_27 = arith.constant 0 : index
    %39 = vector.load %arg5[%c0_26, %c0_27] : memref<1x256xf32, #tpu.memory_space<vmem>>, vector<1x256xf32>
    %c0_28 = arith.constant 0 : index
    %c0_29 = arith.constant 0 : index
    %40 = vector.load %arg6[%c0_28, %c0_29] : memref<1x256xf32, #tpu.memory_space<vmem>>, vector<1x256xf32>
    %cst_30 = arith.constant dense<0.000000e+00> : vector<256xf32>
    %41 = vector.multi_reduction <add>, %38, %cst_30 [0] : vector<8x256xf32> to vector<256xf32>
    %42 = vector.shape_cast %41 : vector<256xf32> to vector<1x256xf32>
    %cst_31 = arith.constant 8.000000e+00 : f32
    %43 = vector.broadcast %cst_31 : f32 to vector<1x256xf32>
    %44 = arith.divf %42, %43 : vector<1x256xf32>
    %45 = vector.broadcast %44 : vector<1x256xf32> to vector<8x256xf32>
    %46 = arith.subf %38, %45 : vector<8x256xf32>
    %47 = arith.mulf %46, %46 : vector<8x256xf32>
    %cst_32 = arith.constant dense<0.000000e+00> : vector<256xf32>
    %48 = vector.multi_reduction <add>, %47, %cst_32 [0] : vector<8x256xf32> to vector<256xf32>
    %49 = vector.shape_cast %48 : vector<256xf32> to vector<1x256xf32>
    %cst_33 = arith.constant 8.000000e+00 : f32
    %50 = vector.broadcast %cst_33 : f32 to vector<1x256xf32>
    %51 = arith.divf %49, %50 : vector<1x256xf32>
    %cst_34 = arith.constant 9.99999974E-6 : f32
    %52 = vector.broadcast %cst_34 : f32 to vector<1x256xf32>
    %53 = arith.addf %51, %52 : vector<1x256xf32>
    %54 = math.rsqrt %53 : vector<1x256xf32>
    %55 = arith.mulf %39, %54 : vector<1x256xf32>
    %56 = arith.mulf %44, %55 : vector<1x256xf32>
    %57 = arith.subf %40, %56 : vector<1x256xf32>
    %58 = vector.broadcast %55 : vector<1x256xf32> to vector<8x256xf32>
    %59 = arith.mulf %38, %58 : vector<8x256xf32>
    %60 = vector.broadcast %57 : vector<1x256xf32> to vector<8x256xf32>
    %61 = arith.addf %59, %60 : vector<8x256xf32>
    %cst_35 = arith.constant 0.000000e+00 : f32
    %62 = vector.broadcast %cst_35 : f32 to vector<8x256xf32>
    %63 = arith.cmpf ogt, %61, %62 : vector<8x256xf32>
    %cst_36 = arith.constant 2.000000e-01 : f32
    %64 = vector.broadcast %cst_36 : f32 to vector<8x256xf32>
    %65 = arith.mulf %64, %61 : vector<8x256xf32>
    %66 = arith.select %63, %61, %65 : vector<8x256xi1>, vector<8x256xf32>
    %67 = arith.truncf %66 : vector<8x256xf32> to vector<8x256xbf16>
    %c0_37 = arith.constant 0 : index
    %c0_38 = arith.constant 0 : index
    %68 = vector.load %arg7[%c0_37, %c0_38] : memref<256x512xbf16, #tpu.memory_space<vmem>>, vector<256x512xbf16>
    %cst_39 = arith.constant dense<0.000000e+00> : vector<8x512xf32>
    %69 = tpu.matmul %67, %68, %cst_39 {dimension_numbers = #tpu.dot_dimension_numbers<[1], [0], [0], [1], [0, 0, 1, 1], [], []>} : vector<8x256xbf16>, vector<256x512xbf16>, vector<8x512xf32> -> vector<8x512xf32>
    %c0_40 = arith.constant 0 : index
    %c0_41 = arith.constant 0 : index
    %70 = vector.load %arg8[%c0_40, %c0_41] : memref<1x512xf32, #tpu.memory_space<vmem>>, vector<1x512xf32>
    %c0_42 = arith.constant 0 : index
    %c0_43 = arith.constant 0 : index
    %71 = vector.load %arg9[%c0_42, %c0_43] : memref<1x512xf32, #tpu.memory_space<vmem>>, vector<1x512xf32>
    %cst_44 = arith.constant dense<0.000000e+00> : vector<512xf32>
    %72 = vector.multi_reduction <add>, %69, %cst_44 [0] : vector<8x512xf32> to vector<512xf32>
    %73 = vector.shape_cast %72 : vector<512xf32> to vector<1x512xf32>
    %cst_45 = arith.constant 8.000000e+00 : f32
    %74 = vector.broadcast %cst_45 : f32 to vector<1x512xf32>
    %75 = arith.divf %73, %74 : vector<1x512xf32>
    %76 = vector.broadcast %75 : vector<1x512xf32> to vector<8x512xf32>
    %77 = arith.subf %69, %76 : vector<8x512xf32>
    %78 = arith.mulf %77, %77 : vector<8x512xf32>
    %cst_46 = arith.constant dense<0.000000e+00> : vector<512xf32>
    %79 = vector.multi_reduction <add>, %78, %cst_46 [0] : vector<8x512xf32> to vector<512xf32>
    %80 = vector.shape_cast %79 : vector<512xf32> to vector<1x512xf32>
    %cst_47 = arith.constant 8.000000e+00 : f32
    %81 = vector.broadcast %cst_47 : f32 to vector<1x512xf32>
    %82 = arith.divf %80, %81 : vector<1x512xf32>
    %cst_48 = arith.constant 9.99999974E-6 : f32
    %83 = vector.broadcast %cst_48 : f32 to vector<1x512xf32>
    %84 = arith.addf %82, %83 : vector<1x512xf32>
    %85 = math.rsqrt %84 : vector<1x512xf32>
    %86 = arith.mulf %70, %85 : vector<1x512xf32>
    %87 = arith.mulf %75, %86 : vector<1x512xf32>
    %88 = arith.subf %71, %87 : vector<1x512xf32>
    %89 = vector.broadcast %86 : vector<1x512xf32> to vector<8x512xf32>
    %90 = arith.mulf %69, %89 : vector<8x512xf32>
    %91 = vector.broadcast %88 : vector<1x512xf32> to vector<8x512xf32>
    %92 = arith.addf %90, %91 : vector<8x512xf32>
    %cst_49 = arith.constant 0.000000e+00 : f32
    %93 = vector.broadcast %cst_49 : f32 to vector<8x512xf32>
    %94 = arith.cmpf ogt, %92, %93 : vector<8x512xf32>
    %cst_50 = arith.constant 2.000000e-01 : f32
    %95 = vector.broadcast %cst_50 : f32 to vector<8x512xf32>
    %96 = arith.mulf %95, %92 : vector<8x512xf32>
    %97 = arith.select %94, %92, %96 : vector<8x512xi1>, vector<8x512xf32>
    %c0_i32_51 = arith.constant 0 : i32
    %98 = tpu.memref_slice %arg18[%c0_i32_51] : memref<5x!tpu.dma_semaphore, #tpu.memory_space<semaphore_mem>> -> memref<1x!tpu.dma_semaphore, #tpu.memory_space<semaphore_mem>>
    %99 = tpu.memref_squeeze %98 : memref<1x!tpu.dma_semaphore, #tpu.memory_space<semaphore_mem>> -> memref<!tpu.dma_semaphore, #tpu.memory_space<semaphore_mem>>
    tpu.wait_dma2 semaphore(%99 : memref<!tpu.dma_semaphore, #tpu.memory_space<semaphore_mem>>) src(%arg10 : memref<512x1024xbf16, #tpu.memory_space<any>>) dst(%arg16 : memref<512x1024xbf16, #tpu.memory_space<vmem>>)
    %100 = arith.truncf %97 : vector<8x512xf32> to vector<8x512xbf16>
    %c0_52 = arith.constant 0 : index
    %c0_53 = arith.constant 0 : index
    %101 = vector.load %arg16[%c0_52, %c0_53] : memref<512x1024xbf16, #tpu.memory_space<vmem>>, vector<512x1024xbf16>
    %cst_54 = arith.constant dense<0.000000e+00> : vector<8x1024xf32>
    %102 = tpu.matmul %100, %101, %cst_54 {dimension_numbers = #tpu.dot_dimension_numbers<[1], [0], [0], [1], [0, 0, 1, 1], [], []>} : vector<8x512xbf16>, vector<512x1024xbf16>, vector<8x1024xf32> -> vector<8x1024xf32>
    %c0_55 = arith.constant 0 : index
    %c0_56 = arith.constant 0 : index
    %103 = vector.load %arg11[%c0_55, %c0_56] : memref<1x1024xf32, #tpu.memory_space<vmem>>, vector<1x1024xf32>
    %c0_57 = arith.constant 0 : index
    %c0_58 = arith.constant 0 : index
    %104 = vector.load %arg12[%c0_57, %c0_58] : memref<1x1024xf32, #tpu.memory_space<vmem>>, vector<1x1024xf32>
    %cst_59 = arith.constant dense<0.000000e+00> : vector<1024xf32>
    %105 = vector.multi_reduction <add>, %102, %cst_59 [0] : vector<8x1024xf32> to vector<1024xf32>
    %106 = vector.shape_cast %105 : vector<1024xf32> to vector<1x1024xf32>
    %cst_60 = arith.constant 8.000000e+00 : f32
    %107 = vector.broadcast %cst_60 : f32 to vector<1x1024xf32>
    %108 = arith.divf %106, %107 : vector<1x1024xf32>
    %109 = vector.broadcast %108 : vector<1x1024xf32> to vector<8x1024xf32>
    %110 = arith.subf %102, %109 : vector<8x1024xf32>
    %111 = arith.mulf %110, %110 : vector<8x1024xf32>
    %cst_61 = arith.constant dense<0.000000e+00> : vector<1024xf32>
    %112 = vector.multi_reduction <add>, %111, %cst_61 [0] : vector<8x1024xf32> to vector<1024xf32>
    %113 = vector.shape_cast %112 : vector<1024xf32> to vector<1x1024xf32>
    %cst_62 = arith.constant 8.000000e+00 : f32
    %114 = vector.broadcast %cst_62 : f32 to vector<1x1024xf32>
    %115 = arith.divf %113, %114 : vector<1x1024xf32>
    %cst_63 = arith.constant 9.99999974E-6 : f32
    %116 = vector.broadcast %cst_63 : f32 to vector<1x1024xf32>
    %117 = arith.addf %115, %116 : vector<1x1024xf32>
    %118 = math.rsqrt %117 : vector<1x1024xf32>
    %119 = arith.mulf %103, %118 : vector<1x1024xf32>
    %120 = arith.mulf %108, %119 : vector<1x1024xf32>
    %121 = arith.subf %104, %120 : vector<1x1024xf32>
    %122 = vector.broadcast %119 : vector<1x1024xf32> to vector<8x1024xf32>
    %123 = arith.mulf %102, %122 : vector<8x1024xf32>
    %124 = vector.broadcast %121 : vector<1x1024xf32> to vector<8x1024xf32>
    %125 = arith.addf %123, %124 : vector<8x1024xf32>
    %cst_64 = arith.constant 0.000000e+00 : f32
    %126 = vector.broadcast %cst_64 : f32 to vector<8x1024xf32>
    %127 = arith.cmpf ogt, %125, %126 : vector<8x1024xf32>
    %cst_65 = arith.constant 2.000000e-01 : f32
    %128 = vector.broadcast %cst_65 : f32 to vector<8x1024xf32>
    %129 = arith.mulf %128, %125 : vector<8x1024xf32>
    %130 = arith.select %127, %125, %129 : vector<8x1024xi1>, vector<8x1024xf32>
    %131 = arith.truncf %130 : vector<8x1024xf32> to vector<8x1024xbf16>
    %c1_i32_66 = arith.constant 1 : i32
    %c0_i32_67 = arith.constant 0 : i32
    %c0_i32_68 = arith.constant 0 : i32
    %132 = tpu.memref_slice %arg13[%c0_i32_67, %c0_i32_68] : memref<1024x896xbf16, #tpu.memory_space<any>> -> memref<1024x256xbf16, #tpu.memory_space<any>>
    %c0_i32_69 = arith.constant 0 : i32
    %c0_i32_70 = arith.constant 0 : i32
    %133 = tpu.memref_slice %arg17[%c0_i32_69, %c0_i32_70] : memref<1024x896xbf16, #tpu.memory_space<vmem>> -> memref<1024x256xbf16, #tpu.memory_space<vmem>>
    %134 = tpu.memref_slice %arg18[%c1_i32_66] : memref<5x!tpu.dma_semaphore, #tpu.memory_space<semaphore_mem>> -> memref<1x!tpu.dma_semaphore, #tpu.memory_space<semaphore_mem>>
    %135 = tpu.memref_squeeze %134 : memref<1x!tpu.dma_semaphore, #tpu.memory_space<semaphore_mem>> -> memref<!tpu.dma_semaphore, #tpu.memory_space<semaphore_mem>>
    tpu.wait_dma2 semaphore(%135 : memref<!tpu.dma_semaphore, #tpu.memory_space<semaphore_mem>>) src(%132 : memref<1024x256xbf16, #tpu.memory_space<any>>) dst(%133 : memref<1024x256xbf16, #tpu.memory_space<vmem>>)
    %c0_71 = arith.constant 0 : index
    %c0_72 = arith.constant 0 : index
    %136 = vector.load %arg17[%c0_71, %c0_72] : memref<1024x896xbf16, #tpu.memory_space<vmem>>, vector<1024x256xbf16>
    %cst_73 = arith.constant dense<0.000000e+00> : vector<8x256xf32>
    %137 = tpu.matmul %131, %136, %cst_73 {dimension_numbers = #tpu.dot_dimension_numbers<[1], [0], [0], [1], [0, 0, 1, 1], [], []>} : vector<8x1024xbf16>, vector<1024x256xbf16>, vector<8x256xf32> -> vector<8x256xf32>
    %c0_74 = arith.constant 0 : index
    %c0_75 = arith.constant 0 : index
    %138 = vector.load %arg14[%c0_74, %c0_75] : memref<1x896xf32, #tpu.memory_space<vmem>>, vector<1x256xf32>
    %139 = vector.broadcast %138 : vector<1x256xf32> to vector<8x256xf32>
    %140 = arith.addf %137, %139 : vector<8x256xf32>
    %141 = math.tanh %140 : vector<8x256xf32>
    %c0_76 = arith.constant 0 : index
    %c0_77 = arith.constant 0 : index
    %142 = vector.load %arg15[%c0_76, %c0_77] : memref<8x896xf32, #tpu.memory_space<vmem>>, vector<8x256xf32>
    tpu.vector_store %arg15[%c0_76, %c0_77], %141 {strides = array<i32>} : memref<8x896xf32, #tpu.memory_space<vmem>>, vector<8x256xf32>,
    %c2_i32_78 = arith.constant 2 : i32
    %c0_i32_79 = arith.constant 0 : i32
    %c256_i32_80 = arith.constant 256 : i32
    %143 = tpu.memref_slice %arg13[%c0_i32_79, %c256_i32_80] : memref<1024x896xbf16, #tpu.memory_space<any>> -> memref<1024x256xbf16, #tpu.memory_space<any>>
    %c0_i32_81 = arith.constant 0 : i32
    %c256_i32_82 = arith.constant 256 : i32
    %144 = tpu.memref_slice %arg17[%c0_i32_81, %c256_i32_82] : memref<1024x896xbf16, #tpu.memory_space<vmem>> -> memref<1024x256xbf16, #tpu.memory_space<vmem>>
    %145 = tpu.memref_slice %arg18[%c2_i32_78] : memref<5x!tpu.dma_semaphore, #tpu.memory_space<semaphore_mem>> -> memref<1x!tpu.dma_semaphore, #tpu.memory_space<semaphore_mem>>
    %146 = tpu.memref_squeeze %145 : memref<1x!tpu.dma_semaphore, #tpu.memory_space<semaphore_mem>> -> memref<!tpu.dma_semaphore, #tpu.memory_space<semaphore_mem>>
    tpu.wait_dma2 semaphore(%146 : memref<!tpu.dma_semaphore, #tpu.memory_space<semaphore_mem>>) src(%143 : memref<1024x256xbf16, #tpu.memory_space<any>>) dst(%144 : memref<1024x256xbf16, #tpu.memory_space<vmem>>)
    %c0_83 = arith.constant 0 : index
    %c256 = arith.constant 256 : index
    %147 = vector.load %arg17[%c0_83, %c256] : memref<1024x896xbf16, #tpu.memory_space<vmem>>, vector<1024x256xbf16>
    %cst_84 = arith.constant dense<0.000000e+00> : vector<8x256xf32>
    %148 = tpu.matmul %131, %147, %cst_84 {dimension_numbers = #tpu.dot_dimension_numbers<[1], [0], [0], [1], [0, 0, 1, 1], [], []>} : vector<8x1024xbf16>, vector<1024x256xbf16>, vector<8x256xf32> -> vector<8x256xf32>
    %c0_85 = arith.constant 0 : index
    %c256_86 = arith.constant 256 : index
    %149 = vector.load %arg14[%c0_85, %c256_86] : memref<1x896xf32, #tpu.memory_space<vmem>>, vector<1x256xf32>
    %150 = vector.broadcast %149 : vector<1x256xf32> to vector<8x256xf32>
    %151 = arith.addf %148, %150 : vector<8x256xf32>
    %152 = math.tanh %151 : vector<8x256xf32>
    %c0_87 = arith.constant 0 : index
    %c256_88 = arith.constant 256 : index
    %153 = vector.load %arg15[%c0_87, %c256_88] : memref<8x896xf32, #tpu.memory_space<vmem>>, vector<8x256xf32>
    tpu.vector_store %arg15[%c0_87, %c256_88], %152 {strides = array<i32>} : memref<8x896xf32, #tpu.memory_space<vmem>>, vector<8x256xf32>,
    %c3_i32_89 = arith.constant 3 : i32
    %c0_i32_90 = arith.constant 0 : i32
    %c512_i32_91 = arith.constant 512 : i32
    %154 = tpu.memref_slice %arg13[%c0_i32_90, %c512_i32_91] : memref<1024x896xbf16, #tpu.memory_space<any>> -> memref<1024x256xbf16, #tpu.memory_space<any>>
    %c0_i32_92 = arith.constant 0 : i32
    %c512_i32_93 = arith.constant 512 : i32
    %155 = tpu.memref_slice %arg17[%c0_i32_92, %c512_i32_93] : memref<1024x896xbf16, #tpu.memory_space<vmem>> -> memref<1024x256xbf16, #tpu.memory_space<vmem>>
    %156 = tpu.memref_slice %arg18[%c3_i32_89] : memref<5x!tpu.dma_semaphore, #tpu.memory_space<semaphore_mem>> -> memref<1x!tpu.dma_semaphore, #tpu.memory_space<semaphore_mem>>
    %157 = tpu.memref_squeeze %156 : memref<1x!tpu.dma_semaphore, #tpu.memory_space<semaphore_mem>> -> memref<!tpu.dma_semaphore, #tpu.memory_space<semaphore_mem>>
    tpu.wait_dma2 semaphore(%157 : memref<!tpu.dma_semaphore, #tpu.memory_space<semaphore_mem>>) src(%154 : memref<1024x256xbf16, #tpu.memory_space<any>>) dst(%155 : memref<1024x256xbf16, #tpu.memory_space<vmem>>)
    %c0_94 = arith.constant 0 : index
    %c512 = arith.constant 512 : index
    %158 = vector.load %arg17[%c0_94, %c512] : memref<1024x896xbf16, #tpu.memory_space<vmem>>, vector<1024x256xbf16>
    %cst_95 = arith.constant dense<0.000000e+00> : vector<8x256xf32>
    %159 = tpu.matmul %131, %158, %cst_95 {dimension_numbers = #tpu.dot_dimension_numbers<[1], [0], [0], [1], [0, 0, 1, 1], [], []>} : vector<8x1024xbf16>, vector<1024x256xbf16>, vector<8x256xf32> -> vector<8x256xf32>
    %c0_96 = arith.constant 0 : index
    %c512_97 = arith.constant 512 : index
    %160 = vector.load %arg14[%c0_96, %c512_97] : memref<1x896xf32, #tpu.memory_space<vmem>>, vector<1x256xf32>
    %161 = vector.broadcast %160 : vector<1x256xf32> to vector<8x256xf32>
    %162 = arith.addf %159, %161 : vector<8x256xf32>
    %163 = math.tanh %162 : vector<8x256xf32>
    %c0_98 = arith.constant 0 : index
    %c512_99 = arith.constant 512 : index
    %164 = vector.load %arg15[%c0_98, %c512_99] : memref<8x896xf32, #tpu.memory_space<vmem>>, vector<8x256xf32>
    tpu.vector_store %arg15[%c0_98, %c512_99], %163 {strides = array<i32>} : memref<8x896xf32, #tpu.memory_space<vmem>>, vector<8x256xf32>,
    %c4_i32_100 = arith.constant 4 : i32
    %c0_i32_101 = arith.constant 0 : i32
    %c768_i32_102 = arith.constant 768 : i32
    %165 = tpu.memref_slice %arg13[%c0_i32_101, %c768_i32_102] : memref<1024x896xbf16, #tpu.memory_space<any>> -> memref<1024x128xbf16, #tpu.memory_space<any>>
    %c0_i32_103 = arith.constant 0 : i32
    %c768_i32_104 = arith.constant 768 : i32
    %166 = tpu.memref_slice %arg17[%c0_i32_103, %c768_i32_104] : memref<1024x896xbf16, #tpu.memory_space<vmem>> -> memref<1024x128xbf16, #tpu.memory_space<vmem>>
    %167 = tpu.memref_slice %arg18[%c4_i32_100] : memref<5x!tpu.dma_semaphore, #tpu.memory_space<semaphore_mem>> -> memref<1x!tpu.dma_semaphore, #tpu.memory_space<semaphore_mem>>
    %168 = tpu.memref_squeeze %167 : memref<1x!tpu.dma_semaphore, #tpu.memory_space<semaphore_mem>> -> memref<!tpu.dma_semaphore, #tpu.memory_space<semaphore_mem>>
    tpu.wait_dma2 semaphore(%168 : memref<!tpu.dma_semaphore, #tpu.memory_space<semaphore_mem>>) src(%165 : memref<1024x128xbf16, #tpu.memory_space<any>>) dst(%166 : memref<1024x128xbf16, #tpu.memory_space<vmem>>)
    %c0_105 = arith.constant 0 : index
    %c768 = arith.constant 768 : index
    %169 = vector.load %arg17[%c0_105, %c768] : memref<1024x896xbf16, #tpu.memory_space<vmem>>, vector<1024x128xbf16>
    %cst_106 = arith.constant dense<0.000000e+00> : vector<8x128xf32>
    %170 = tpu.matmul %131, %169, %cst_106 {dimension_numbers = #tpu.dot_dimension_numbers<[1], [0], [0], [1], [0, 0, 1, 1], [], []>} : vector<8x1024xbf16>, vector<1024x128xbf16>, vector<8x128xf32> -> vector<8x128xf32>
    %c0_107 = arith.constant 0 : index
    %c768_108 = arith.constant 768 : index
    %171 = vector.load %arg14[%c0_107, %c768_108] : memref<1x896xf32, #tpu.memory_space<vmem>>, vector<1x128xf32>
    %172 = vector.broadcast %171 : vector<1x128xf32> to vector<8x128xf32>
    %173 = arith.addf %170, %172 : vector<8x128xf32>
    %174 = math.tanh %173 : vector<8x128xf32>
    %c0_109 = arith.constant 0 : index
    %c768_110 = arith.constant 768 : index
    %175 = vector.load %arg15[%c0_109, %c768_110] : memref<8x896xf32, #tpu.memory_space<vmem>>, vector<8x128xf32>
    tpu.vector_store %arg15[%c0_109, %c768_110], %174 {strides = array<i32>} : memref<8x896xf32, #tpu.memory_space<vmem>>, vector<8x128xf32>,
    return
  }
}

</mosaic_0001>

<llo_original>
// kernel: vanilla_net_forward.1
$region0: #{vanilla_net_forward.1}
  #allocation0 [shape = 'u32[]', space=smem, size = 0x4, offset = 0x4, fixed_abs, tag = 'smem constant byte address 0x4 - core index']
  #allocation1 [shape = 'u32[144,128]{1,0:T(1,128)}', space=vmem, size = 0x12000, scoped, tag = 'internal scratch']
  #allocation2 [shape = 'bf16[512,1024]{1,0:T(16,128)(2,1)}', space=vmem, size = 0x100000, scoped, tag = 'scratch operand']
  #allocation3 [shape = 'bf16[1024,896]{1,0:T(16,128)(2,1)}', space=vmem, size = 0x1c0000, scoped, tag = 'scratch operand']
  #allocation4 [shape = 's32[5]{0}', space=sflag, size = 0x14, scoped, tag = 'scratch operand']
  #allocation24 [shape = 's32[]', space=sflag, size = 0x4, offset = 0, fixed_abs, tag = 'sflag constant byte address 0x0 - dummy sync flag']
  #allocation26 [shape = 's32[]', space=sflag, size = 0x4, offset = 0, fixed_abs, tag = 'sflag constant byte address 0x0 - dummy sync flag']
  #allocation28 [shape = 's32[]', space=sflag, size = 0x4, offset = 0, fixed_abs, tag = 'sflag constant byte address 0x0 - dummy sync flag']
  #allocation30 [shape = 's32[]', space=sflag, size = 0x4, offset = 0, fixed_abs, tag = 'sflag constant byte address 0x0 - dummy sync flag']
  #allocation32 [shape = 's32[]', space=sflag, size = 0x4, offset = 0, fixed_abs, tag = 'sflag constant byte address 0x0 - dummy sync flag']
  %s0 = inlined_call_operand.hbm [shape: f32[8,100], index: 0, kind: input, shape index: {}]
  %s1 = inlined_call_operand.vmem [shape: s32[8,1], index: 1, kind: input, shape index: {}]
  %s2 = inlined_call_operand.hbm [shape: f32[10,128], index: 2, kind: input, shape index: {}]
  %s3 = inlined_call_operand.hbm [shape: bf16[100,128], index: 3, kind: input, shape index: {}]
  %s4 = inlined_call_operand.hbm [shape: bf16[128,256], index: 4, kind: input, shape index: {}]
  %s5 = inlined_call_operand.hbm [shape: f32[1,256], index: 5, kind: input, shape index: {}]
  %s6 = inlined_call_operand.hbm [shape: f32[1,256], index: 6, kind: input, shape index: {}]
  %s7 = inlined_call_operand.hbm [shape: bf16[256,512], index: 7, kind: input, shape index: {}]
  %s8 = inlined_call_operand.hbm [shape: f32[1,512], index: 8, kind: input, shape index: {}]
  %s9 = inlined_call_operand.hbm [shape: f32[1,512], index: 9, kind: input, shape index: {}]
  %s10 = inlined_call_operand.hbm [shape: bf16[512,1024], index: 10, kind: input, shape index: {}]
  %s11 = inlined_call_operand.hbm [shape: f32[1,1024], index: 11, kind: input, shape index: {}]
  %s12 = inlined_call_operand.hbm [shape: f32[1,1024], index: 12, kind: input, shape index: {}]
  %s13 = inlined_call_operand.hbm [shape: bf16[1024,896], index: 13, kind: input, shape index: {}]
  %s14 = inlined_call_operand.hbm [shape: f32[1,896], index: 14, kind: input, shape index: {}]
  %s15 = inlined_call_operand.vmem [shape: f32[8,896], index: 15, kind: output, shape index: {}]
  %s16 = sld [smem:[#allocation0]]
  $region110: #{vanilla_net_forward.1} parent=0
    _
  %s18 = ssub.s32 1, %s16
  %s19 = scalar_select 0, %s18, %s16
  $region1: #{vanilla_net_forward.1} parent=0
    #allocation5 [shape = 'u8[4096]{0}', space=vmem, size = 0x1000, scoped, tag = 'input window, operand 0, single buffered']
    #allocation6 [shape = 's32[1]{0}', space=sflag, size = 0x4, scoped, tag = 'scoped memory for vanilla_net_forward.1']
    #allocation7 [shape = 'u8[8192]{0}', space=vmem, size = 0x2000, scoped, tag = 'input window, operand 2, single buffered']
    #allocation8 [shape = 's32[1]{0}', space=sflag, size = 0x4, scoped, tag = 'scoped memory for vanilla_net_forward.1']
    #allocation9 [shape = 'u8[26624]{0}', space=vmem, size = 0x6800, scoped, tag = 'input window, operand 3, single buffered']
    #allocation10 [shape = 'u8[65536]{0}', space=vmem, size = 0x10000, scoped, tag = 'input window, operand 4, single buffered']
    #allocation11 [shape = 's32[1]{0}', space=sflag, size = 0x4, scoped, tag = 'scoped memory for vanilla_net_forward.1']
    #allocation12 [shape = 'u8[1024]{0}', space=vmem, size = 0x400, scoped, tag = 'input window, operand 5, single buffered']
    #allocation13 [shape = 'u8[1024]{0}', space=vmem, size = 0x400, scoped, tag = 'input window, operand 6, single buffered']
    #allocation14 [shape = 's32[1]{0}', space=sflag, size = 0x4, scoped, tag = 'scoped memory for vanilla_net_forward.1']
    #allocation15 [shape = 'u8[262144]{0}', space=vmem, size = 0x40000, scoped, tag = 'input window, operand 7, single buffered']
    #allocation16 [shape = 'u8[2048]{0}', space=vmem, size = 0x800, scoped, tag = 'input window, operand 8, single buffered']
    #allocation17 [shape = 's32[1]{0}', space=sflag, size = 0x4, scoped, tag = 'scoped memory for vanilla_net_forward.1']
    #allocation18 [shape = 'u8[2048]{0}', space=vmem, size = 0x800, scoped, tag = 'input window, operand 9, single buffered']
    #allocation19 [shape = 'u8[4096]{0}', space=vmem, size = 0x1000, scoped, tag = 'input window, operand 11, single buffered']
    #allocation20 [shape = 's32[1]{0}', space=sflag, size = 0x4, scoped, tag = 'scoped memory for vanilla_net_forward.1']
    #allocation21 [shape = 'u8[4096]{0}', space=vmem, size = 0x1000, scoped, tag = 'input window, operand 12, single buffered']
    #allocation22 [shape = 'u8[3584]{0}', space=vmem, size = 0x1000, scoped, tag = 'input window, operand 14, single buffered']
    #allocation23 [shape = 's32[1]{0}', space=sflag, size = 0x4, scoped, tag = 'scoped memory for vanilla_net_forward.1']
    #allocation25 [shape = 'u32[9]{0}', space=smem, size = 0x24, scoped, tag = 'DMA stride descriptor']
    #allocation27 [shape = 'u32[9]{0}', space=smem, size = 0x24, scoped, tag = 'DMA stride descriptor']
    #allocation29 [shape = 'u32[9]{0}', space=smem, size = 0x24, scoped, tag = 'DMA stride descriptor']
    #allocation31 [shape = 'u32[9]{0}', space=smem, size = 0x24, scoped, tag = 'DMA stride descriptor']
    #allocation33 [shape = 'u32[6]{0}', space=smem, size = 0x18, scoped, tag = 'DMA stride descriptor']
    %20 = vsyncpa [#allocation6], 0
    %21 = vsyncpa [#allocation8], 0
    %22 = vsyncpa [#allocation11], 0
    %23 = vsyncpa [#allocation14], 0
    %24 = vsyncpa [#allocation17], 0
    %25 = vsyncpa [#allocation20], 0
    %26 = vsyncpa [#allocation23], 0
    // Predicated region
    $region2: #{vanilla_net_forward.1} parent=1 // pred_check
      _
    $region3: #{vanilla_net_forward.1} parent=1 // pred_check_branch
      %28 = sbr.rel (0) target = $region5
    $region4: #{vanilla_net_forward.1} parent=1 // pred_region
      %s30 = ssub.s32 128, 128
      %31 = vsyncadd [#allocation6], %s30
      %s33 = sshll.u32 [#allocation5], 4
      %s34 = int_to_ptr.vmem [resolvable:$true] %s33
      %36 = dma.hbm_to_vmem [thread:$0]  %s0, 128, %s34, [#allocation6]
    $region5: #{vanilla_net_forward.1} parent=1 // pred_fallthru
      _
    // Predicated region
    $region6: #{vanilla_net_forward.1} parent=1 // pred_check
      _
    $region7: #{vanilla_net_forward.1} parent=1 // pred_check_branch
      %38 = sbr.rel (0) target = $region9
    $region8: #{vanilla_net_forward.1} parent=1 // pred_region
      _
    $region9: #{vanilla_net_forward.1} parent=1 // pred_fallthru
      _
    // Predicated region
    $region10: #{vanilla_net_forward.1} parent=1 // pred_check
      _
    $region11: #{vanilla_net_forward.1} parent=1 // pred_check_branch
      %40 = sbr.rel (0) target = $region13
    $region12: #{vanilla_net_forward.1} parent=1 // pred_region
      %s42 = ssub.s32 256, 256
      %43 = vsyncadd [#allocation8], %s42
      %s44 = sshll.u32 [#allocation7], 4
      %s45 = int_to_ptr.vmem [resolvable:$true] %s44
      %50 = dma.hbm_to_vmem [thread:$0]  %s2, 256, %s45, [#allocation8], 128, 128, 8
    $region13: #{vanilla_net_forward.1} parent=1 // pred_fallthru
      _
    // Predicated region
    $region14: #{vanilla_net_forward.1} parent=1 // pred_check
      _
    $region15: #{vanilla_net_forward.1} parent=1 // pred_check_branch
      %52 = sbr.rel (0) target = $region17
    $region16: #{vanilla_net_forward.1} parent=1 // pred_region
      %s54 = ssub.s32 832, 832
      %55 = vsyncadd [#allocation8], %s54
      %s56 = sshll.u32 [#allocation9], 4
      %s57 = int_to_ptr.vmem [resolvable:$true] %s56
      %62 = dma.hbm_to_vmem [thread:$0]  %s3, 832, %s57, [#allocation8], 64, 64, 4
    $region17: #{vanilla_net_forward.1} parent=1 // pred_fallthru
      _
    // Predicated region
    $region18: #{vanilla_net_forward.1} parent=1 // pred_check
      _
    $region19: #{vanilla_net_forward.1} parent=1 // pred_check_branch
      %64 = sbr.rel (0) target = $region21
    $region20: #{vanilla_net_forward.1} parent=1 // pred_region
      %s66 = ssub.s32 2048, 2048
      %67 = vsyncadd [#allocation11], %s66
      %s68 = sshll.u32 [#allocation10], 4
      %s69 = int_to_ptr.vmem [resolvable:$true] %s68
      %74 = dma.hbm_to_vmem [thread:$0]  %s4, 2048, %s69, [#allocation11], 128, 128, 8
    $region21: #{vanilla_net_forward.1} parent=1 // pred_fallthru
      _
    // Predicated region
    $region22: #{vanilla_net_forward.1} parent=1 // pred_check
      _
    $region23: #{vanilla_net_forward.1} parent=1 // pred_check_branch
      %76 = sbr.rel (0) target = $region25
    $region24: #{vanilla_net_forward.1} parent=1 // pred_region
      %s78 = ssub.s32 32, 32
      %79 = vsyncadd [#allocation11], %s78
      %s81 = sshll.u32 [#allocation12], 4
      %s82 = int_to_ptr.vmem [resolvable:$true] %s81
      %84 = dma.hbm_to_vmem [thread:$0]  %s5, 32, %s82, [#allocation11]
    $region25: #{vanilla_net_forward.1} parent=1 // pred_fallthru
      _
    // Predicated region
    $region26: #{vanilla_net_forward.1} parent=1 // pred_check
      _
    $region27: #{vanilla_net_forward.1} parent=1 // pred_check_branch
      %86 = sbr.rel (0) target = $region29
    $region28: #{vanilla_net_forward.1} parent=1 // pred_region
      %s88 = ssub.s32 32, 32
      %89 = vsyncadd [#allocation14], %s88
      %s91 = sshll.u32 [#allocation13], 4
      %s92 = int_to_ptr.vmem [resolvable:$true] %s91
      %94 = dma.hbm_to_vmem [thread:$0]  %s6, 32, %s92, [#allocation14]
    $region29: #{vanilla_net_forward.1} parent=1 // pred_fallthru
      _
    // Predicated region
    $region30: #{vanilla_net_forward.1} parent=1 // pred_check
      _
    $region31: #{vanilla_net_forward.1} parent=1 // pred_check_branch
      %96 = sbr.rel (0) target = $region33
    $region32: #{vanilla_net_forward.1} parent=1 // pred_region
      %s98 = ssub.s32 8192, 8192
      %99 = vsyncadd [#allocation14], %s98
      %s100 = sshll.u32 [#allocation15], 4
      %s101 = int_to_ptr.vmem [resolvable:$true] %s100
      %106 = dma.hbm_to_vmem [thread:$0]  %s7, 8192, %s101, [#allocation14], 256, 256, 16
    $region33: #{vanilla_net_forward.1} parent=1 // pred_fallthru
      _
    // Predicated region
    $region34: #{vanilla_net_forward.1} parent=1 // pred_check
      _
    $region35: #{vanilla_net_forward.1} parent=1 // pred_check_branch
      %108 = sbr.rel (0) target = $region37
    $region36: #{vanilla_net_forward.1} parent=1 // pred_region
      %s110 = ssub.s32 64, 64
      %111 = vsyncadd [#allocation17], %s110
      %s113 = sshll.u32 [#allocation16], 4
      %s114 = int_to_ptr.vmem [resolvable:$true] %s113
      %116 = dma.hbm_to_vmem [thread:$0]  %s8, 64, %s114, [#allocation17]
    $region37: #{vanilla_net_forward.1} parent=1 // pred_fallthru
      _
    // Predicated region
    $region38: #{vanilla_net_forward.1} parent=1 // pred_check
      _
    $region39: #{vanilla_net_forward.1} parent=1 // pred_check_branch
      %118 = sbr.rel (0) target = $region41
    $region40: #{vanilla_net_forward.1} parent=1 // pred_region
      %s120 = ssub.s32 64, 64
      %121 = vsyncadd [#allocation17], %s120
      %s123 = sshll.u32 [#allocation18], 4
      %s124 = int_to_ptr.vmem [resolvable:$true] %s123
      %126 = dma.hbm_to_vmem [thread:$0]  %s9, 64, %s124, [#allocation17]
    $region41: #{vanilla_net_forward.1} parent=1 // pred_fallthru
      _
    // Predicated region
    $region42: #{vanilla_net_forward.1} parent=1 // pred_check
      _
    $region43: #{vanilla_net_forward.1} parent=1 // pred_check_branch
      %128 = sbr.rel (0) target = $region45
    $region44: #{vanilla_net_forward.1} parent=1 // pred_region
      %s130 = ssub.s32 128, 128
      %131 = vsyncadd [#allocation20], %s130
      %s133 = sshll.u32 [#allocation19], 4
      %s134 = int_to_ptr.vmem [resolvable:$true] %s133
      %136 = dma.hbm_to_vmem [thread:$0]  %s11, 128, %s134, [#allocation20]
    $region45: #{vanilla_net_forward.1} parent=1 // pred_fallthru
      _
    // Predicated region
    $region46: #{vanilla_net_forward.1} parent=1 // pred_check
      _
    $region47: #{vanilla_net_forward.1} parent=1 // pred_check_branch
      %138 = sbr.rel (0) target = $region49
    $region48: #{vanilla_net_forward.1} parent=1 // pred_region
      %s140 = ssub.s32 128, 128
      %141 = vsyncadd [#allocation20], %s140
      %s143 = sshll.u32 [#allocation21], 4
      %s144 = int_to_ptr.vmem [resolvable:$true] %s143
      %146 = dma.hbm_to_vmem [thread:$0]  %s12, 128, %s144, [#allocation20]
    $region49: #{vanilla_net_forward.1} parent=1 // pred_fallthru
      _
    // Predicated region
    $region50: #{vanilla_net_forward.1} parent=1 // pred_check
      _
    $region51: #{vanilla_net_forward.1} parent=1 // pred_check_branch
      %148 = sbr.rel (0) target = $region53
    $region52: #{vanilla_net_forward.1} parent=1 // pred_region
      %s150 = ssub.s32 112, 112
      %151 = vsyncadd [#allocation23], %s150
      %s153 = sshll.u32 [#allocation22], 4
      %s154 = int_to_ptr.vmem [resolvable:$true] %s153
      %156 = dma.hbm_to_vmem [thread:$0]  %s14, 112, %s154, [#allocation23]
    $region53: #{vanilla_net_forward.1} parent=1 // pred_fallthru
      _
    // Predicated region
    $region54: #{vanilla_net_forward.1} parent=1 // pred_check
      _
    $region55: #{vanilla_net_forward.1} parent=1 // pred_check_branch
      %158 = sbr.rel (0) target = $region57
    $region56: #{vanilla_net_forward.1} parent=1 // pred_region
      %159 = dma.done [#allocation6], 128
    $region57: #{vanilla_net_forward.1} parent=1 // pred_fallthru
      _
    // Predicated region
    $region58: #{vanilla_net_forward.1} parent=1 // pred_check
      _
    $region59: #{vanilla_net_forward.1} parent=1 // pred_check_branch
      %161 = sbr.rel (0) target = $region61
    $region60: #{vanilla_net_forward.1} parent=1 // pred_region
      %162 = dma.done [#allocation8], 256
    $region61: #{vanilla_net_forward.1} parent=1 // pred_fallthru
      _
    // Predicated region
    $region62: #{vanilla_net_forward.1} parent=1 // pred_check
      _
    $region63: #{vanilla_net_forward.1} parent=1 // pred_check_branch
      %164 = sbr.rel (0) target = $region65
    $region64: #{vanilla_net_forward.1} parent=1 // pred_region
      %165 = dma.done [#allocation8], 832
    $region65: #{vanilla_net_forward.1} parent=1 // pred_fallthru
      _
    // Predicated region
    $region66: #{vanilla_net_forward.1} parent=1 // pred_check
      _
    $region67: #{vanilla_net_forward.1} parent=1 // pred_check_branch
      %167 = sbr.rel (0) target = $region69
    $region68: #{vanilla_net_forward.1} parent=1 // pred_region
      %168 = dma.done [#allocation11], 2048
    $region69: #{vanilla_net_forward.1} parent=1 // pred_fallthru
      _
    // Predicated region
    $region70: #{vanilla_net_forward.1} parent=1 // pred_check
      _
    $region71: #{vanilla_net_forward.1} parent=1 // pred_check_branch
      %170 = sbr.rel (0) target = $region73
    $region72: #{vanilla_net_forward.1} parent=1 // pred_region
      %171 = dma.done [#allocation11], 32
    $region73: #{vanilla_net_forward.1} parent=1 // pred_fallthru
      _
    // Predicated region
    $region74: #{vanilla_net_forward.1} parent=1 // pred_check
      _
    $region75: #{vanilla_net_forward.1} parent=1 // pred_check_branch
      %173 = sbr.rel (0) target = $region77
    $region76: #{vanilla_net_forward.1} parent=1 // pred_region
      %174 = dma.done [#allocation14], 32
    $region77: #{vanilla_net_forward.1} parent=1 // pred_fallthru
      _
    // Predicated region
    $region78: #{vanilla_net_forward.1} parent=1 // pred_check
      _
    $region79: #{vanilla_net_forward.1} parent=1 // pred_check_branch
      %176 = sbr.rel (0) target = $region81
    $region80: #{vanilla_net_forward.1} parent=1 // pred_region
      %177 = dma.done [#allocation14], 8192
    $region81: #{vanilla_net_forward.1} parent=1 // pred_fallthru
      _
    // Predicated region
    $region82: #{vanilla_net_forward.1} parent=1 // pred_check
      _
    $region83: #{vanilla_net_forward.1} parent=1 // pred_check_branch
      %179 = sbr.rel (0) target = $region85
    $region84: #{vanilla_net_forward.1} parent=1 // pred_region
      %180 = dma.done [#allocation17], 64
    $region85: #{vanilla_net_forward.1} parent=1 // pred_fallthru
      _
    // Predicated region
    $region86: #{vanilla_net_forward.1} parent=1 // pred_check
      _
    $region87: #{vanilla_net_forward.1} parent=1 // pred_check_branch
      %182 = sbr.rel (0) target = $region89
    $region88: #{vanilla_net_forward.1} parent=1 // pred_region
      %183 = dma.done [#allocation17], 64
    $region89: #{vanilla_net_forward.1} parent=1 // pred_fallthru
      _
    // Predicated region
    $region90: #{vanilla_net_forward.1} parent=1 // pred_check
      _
    $region91: #{vanilla_net_forward.1} parent=1 // pred_check_branch
      %185 = sbr.rel (0) target = $region93
    $region92: #{vanilla_net_forward.1} parent=1 // pred_region
      %186 = dma.done [#allocation20], 128
    $region93: #{vanilla_net_forward.1} parent=1 // pred_fallthru
      _
    // Predicated region
    $region94: #{vanilla_net_forward.1} parent=1 // pred_check
      _
    $region95: #{vanilla_net_forward.1} parent=1 // pred_check_branch
      %188 = sbr.rel (0) target = $region97
    $region96: #{vanilla_net_forward.1} parent=1 // pred_region
      %189 = dma.done [#allocation20], 128
    $region97: #{vanilla_net_forward.1} parent=1 // pred_fallthru
      _
    // Predicated region
    $region98: #{vanilla_net_forward.1} parent=1 // pred_check
      _
    $region99: #{vanilla_net_forward.1} parent=1 // pred_check_branch
      %191 = sbr.rel (0) target = $region101
    $region100: #{vanilla_net_forward.1} parent=1 // pred_region
      %192 = dma.done [#allocation23], 112
    $region101: #{vanilla_net_forward.1} parent=1 // pred_fallthru
      _
    %s195 = sshll.u32 1, 14
    %s196 = sxor.u32 4294967295, %s195
    %s198 = sld [smem:[#allocation0]]
    %s199 = sadd.s32 2, %s198
    %s201 = sshll.u32 7, 26
    %s202 = sxor.u32 4294967295, %s201
    %s203 = sand.u32 0, %s202
    %s204 = sshll.u32 %s199, 26
    %s205 = sor.u32 %s203, %s204
    %s206 = sshll.u32 [#allocation2], 4
    %s207 = int_to_ptr.vmem [resolvable:$true] %s206
    %210 = sst [smem:[#allocation25]] 1024
    %s211 = scalar_lea.smem [#allocation25], 1
    %212 = sst [smem:[%s211]] 1024
    %s213 = scalar_lea.smem [#allocation25], 2
    %214 = sst [smem:[%s213]] 8
    %s215 = scalar_lea.smem [#allocation25], 3
    %216 = sst [smem:[%s215]] 64
    %s217 = scalar_lea.smem [#allocation25], 4
    %218 = sst [smem:[%s217]] 128
    %s219 = scalar_lea.smem [#allocation25], 5
    %220 = sst [smem:[%s219]] 2
    %s221 = scalar_lea.smem [#allocation25], 6
    %222 = sst [smem:[%s221]] 512
    %s223 = scalar_lea.smem [#allocation25], 7
    %224 = sst [smem:[%s223]] 64
    %s225 = scalar_lea.smem [#allocation25], 8
    %226 = sst [smem:[%s225]] 4
    %228 = dma.general %s10, 32768, %s207, [#allocation4], [#allocation24], [#allocation25], %s205, 0
    %s229 = scalar_lea.sflag [#allocation4], 1
    %s231 = sshll.u32 1, 14
    %s232 = sxor.u32 4294967295, %s231
    %s234 = sadd.s32 2, %s198
    %s236 = sshll.u32 7, 26
    %s237 = sxor.u32 4294967295, %s236
    %s238 = sand.u32 0, %s237
    %s239 = sshll.u32 %s234, 26
    %s240 = sor.u32 %s238, %s239
    %s241 = sshll.u32 [#allocation3], 4
    %s242 = int_to_ptr.vmem [resolvable:$true] %s241
    %245 = sst [smem:[#allocation27]] 896
    %s246 = scalar_lea.smem [#allocation27], 1
    %247 = sst [smem:[%s246]] 896
    %s248 = scalar_lea.smem [#allocation27], 2
    %249 = sst [smem:[%s248]] 2
    %s250 = scalar_lea.smem [#allocation27], 3
    %251 = sst [smem:[%s250]] 64
    %s252 = scalar_lea.smem [#allocation27], 4
    %253 = sst [smem:[%s252]] 128
    %s254 = scalar_lea.smem [#allocation27], 5
    %255 = sst [smem:[%s254]] 2
    %s256 = scalar_lea.smem [#allocation27], 6
    %257 = sst [smem:[%s256]] 448
    %s258 = scalar_lea.smem [#allocation27], 7
    %259 = sst [smem:[%s258]] 64
    %s260 = scalar_lea.smem [#allocation27], 8
    %261 = sst [smem:[%s260]] 4
    %263 = dma.general %s13, 16384, %s242, %s229, [#allocation26], [#allocation27], %s240, 0
    %s264 = scalar_lea.hbm %s13, 128
    %s265 = scalar_lea.vmem [#allocation3], 16
    %s266 = scalar_lea.sflag [#allocation4], 2
    %s268 = sshll.u32 1, 14
    %s269 = sxor.u32 4294967295, %s268
    %s271 = sadd.s32 2, %s198
    %s273 = sshll.u32 7, 26
    %s274 = sxor.u32 4294967295, %s273
    %s275 = sand.u32 0, %s274
    %s276 = sshll.u32 %s271, 26
    %s277 = sor.u32 %s275, %s276
    %s278 = sshll.u32 %s265, 4
    %s279 = int_to_ptr.vmem [resolvable:$true] %s278
    %282 = sst [smem:[#allocation29]] 896
    %s283 = scalar_lea.smem [#allocation29], 1
    %284 = sst [smem:[%s283]] 896
    %s285 = scalar_lea.smem [#allocation29], 2
    %286 = sst [smem:[%s285]] 2
    %s287 = scalar_lea.smem [#allocation29], 3
    %288 = sst [smem:[%s287]] 64
    %s289 = scalar_lea.smem [#allocation29], 4
    %290 = sst [smem:[%s289]] 128
    %s291 = scalar_lea.smem [#allocation29], 5
    %292 = sst [smem:[%s291]] 2
    %s293 = scalar_lea.smem [#allocation29], 6
    %294 = sst [smem:[%s293]] 448
    %s295 = scalar_lea.smem [#allocation29], 7
    %296 = sst [smem:[%s295]] 64
    %s297 = scalar_lea.smem [#allocation29], 8
    %298 = sst [smem:[%s297]] 4
    %300 = dma.general %s264, 16384, %s279, %s266, [#allocation28], [#allocation29], %s277, 0
    %s301 = scalar_lea.hbm %s13, 256
    %s302 = scalar_lea.vmem [#allocation3], 32
    %s303 = scalar_lea.sflag [#allocation4], 3
    %s305 = sshll.u32 1, 14
    %s306 = sxor.u32 4294967295, %s305
    %s308 = sadd.s32 2, %s198
    %s310 = sshll.u32 7, 26
    %s311 = sxor.u32 4294967295, %s310
    %s312 = sand.u32 0, %s311
    %s313 = sshll.u32 %s308, 26
    %s314 = sor.u32 %s312, %s313
    %s315 = sshll.u32 %s302, 4
    %s316 = int_to_ptr.vmem [resolvable:$true] %s315
    %319 = sst [smem:[#allocation31]] 896
    %s320 = scalar_lea.smem [#allocation31], 1
    %321 = sst [smem:[%s320]] 896
    %s322 = scalar_lea.smem [#allocation31], 2
    %323 = sst [smem:[%s322]] 2
    %s324 = scalar_lea.smem [#allocation31], 3
    %325 = sst [smem:[%s324]] 64
    %s326 = scalar_lea.smem [#allocation31], 4
    %327 = sst [smem:[%s326]] 128
    %s328 = scalar_lea.smem [#allocation31], 5
    %329 = sst [smem:[%s328]] 2
    %s330 = scalar_lea.smem [#allocation31], 6
    %331 = sst [smem:[%s330]] 448
    %s332 = scalar_lea.smem [#allocation31], 7
    %333 = sst [smem:[%s332]] 64
    %s334 = scalar_lea.smem [#allocation31], 8
    %335 = sst [smem:[%s334]] 4
    %337 = dma.general %s301, 16384, %s316, %s303, [#allocation30], [#allocation31], %s314, 0
    %s338 = scalar_lea.hbm %s13, 384
    %s339 = scalar_lea.vmem [#allocation3], 48
    %s340 = scalar_lea.sflag [#allocation4], 4
    %s342 = sshll.u32 1, 14
    %s343 = sxor.u32 4294967295, %s342
    %s345 = sadd.s32 2, %s198
    %s347 = sshll.u32 7, 26
    %s348 = sxor.u32 4294967295, %s347
    %s349 = sand.u32 0, %s348
    %s350 = sshll.u32 %s345, 26
    %s351 = sor.u32 %s349, %s350
    %s352 = sshll.u32 %s339, 4
    %s353 = int_to_ptr.vmem [resolvable:$true] %s352
    %356 = sst [smem:[#allocation33]] 896
    %s357 = scalar_lea.smem [#allocation33], 1
    %358 = sst [smem:[%s357]] 896
    %s359 = scalar_lea.smem [#allocation33], 2
    %360 = sst [smem:[%s359]] 2
    %s361 = scalar_lea.smem [#allocation33], 3
    %362 = sst [smem:[%s361]] 448
    %s363 = scalar_lea.smem [#allocation33], 4
    %364 = sst [smem:[%s363]] 64
    %s365 = scalar_lea.smem [#allocation33], 5
    %366 = sst [smem:[%s365]] 4
    %368 = dma.general %s338, 8192, %s353, %s340, [#allocation32], [#allocation33], %s351, 0
    %v369 = vld [vmem:[%s1] sm:$0xff]
    %v370 = vlaneseq
    %v371 = vand.u32 %v370, 127
    %372 = vset.pattern.permute.xlu0 0
    %373 = vperm.xlu0 %372, %v369
    %v374 = vpop.permute.xlu0 %373
    %vm375 = vcmp.eq.s32.totalorder %v371, %v374
    %v376 = vsel %vm375, 1, 0
    %v377 = vcvt.s32.f32 %v376
    %v378 = vld [vmem:[#allocation7] sm:$0xff]
    %v379 = vld [vmem:[#allocation7 + $0x8] sm:$0x3]
    %vm380 = vcmask 80896
    %v382 = vsel %vm380, %v377, 0
    %vm384 = vcmask 1041408
    %v386 = vsel %vm384, %v379, 0
    %388 = vmatprep.subr.mxu0 0.0
    %389 = vmatpush1.msra.mxu0 %v378
    %390 = vmatprep.subr.mxu0 0.0
    %391 = vmatpush1.msra.mxu0 %v386
    %392 = vmatprep.subr.mxu0 0.0
    %393 = vmatpush1.msra.mxu0 0.0
    %394 = vmatprep.subr.mxu0 0.0
    %395 = vmatpush1.msra.mxu0 0.0
    %396 = vmatprep.subr.mxu0 0.0
    %397 = vmatpush1.msra.mxu0 0.0
    %398 = vmatprep.subr.mxu0 0.0
    %399 = vmatpush1.msra.mxu0 0.0
    %400 = vmatprep.subr.mxu0 0.0
    %401 = vmatpush1.msra.mxu0 0.0
    %402 = vmatprep.subr.mxu0 0.0
    %403 = vmatpush1.msra.mxu0 0.0
    %404 = vmatprep.subr.mxu0 0.0
    %405 = vmatpush1.msra.mxu0 0.0
    %406 = vmatprep.subr.mxu0 0.0
    %407 = vmatpush1.msra.mxu0 0.0
    %408 = vmatprep.subr.mxu0 0.0
    %409 = vmatpush1.msra.mxu0 0.0
    %410 = vmatprep.subr.mxu0 0.0
    %411 = vmatpush1.msra.mxu0 0.0
    %412 = vmatprep.subr.mxu0 0.0
    %413 = vmatpush1.msra.mxu0 0.0
    %414 = vmatprep.subr.mxu0 0.0
    %415 = vmatpush1.msra.mxu0 0.0
    %416 = vmatprep.subr.mxu0 0.0
    %417 = vmatpush1.msra.mxu0 0.0
    %418 = vmatprep.subr.mxu0 0.0
    %419 = vmatpush1.msra.mxu0 0.0
    %420 = vmatprep.subr.mxu0 0.0
    %421 = vmatpush1.msra.mxu0 0.0
    %422 = vmatprep.subr.mxu0 0.0
    %423 = vmatpush1.msra.mxu0 0.0
    %424 = vmatprep.subr.mxu0 0.0
    %425 = vmatpush1.msra.mxu0 0.0
    %426 = vmatprep.subr.mxu0 0.0
    %427 = vmatpush1.msra.mxu0 0.0
    %428 = vmatprep.subr.mxu0 0.0
    %429 = vmatpush1.msra.mxu0 0.0
    %430 = vmatprep.subr.mxu0 0.0
    %431 = vmatpush1.msra.mxu0 0.0
    %432 = vmatprep.subr.mxu0 0.0
    %433 = vmatpush1.msra.mxu0 0.0
    %434 = vmatprep.subr.mxu0 0.0
    %435 = vmatpush1.msra.mxu0 0.0
    %436 = vmatprep.subr.mxu0 0.0
    %437 = vmatpush1.msra.mxu0 0.0
    %438 = vmatprep.subr.mxu0 0.0
    %439 = vmatpush1.msra.mxu0 0.0
    %440 = vmatprep.subr.mxu0 0.0
    %441 = vmatpush1.msra.mxu0 0.0
    %442 = vmatprep.subr.mxu0 0.0
    %443 = vmatpush1.msra.mxu0 0.0
    %444 = vmatprep.subr.mxu0 0.0
    %445 = vmatpush1.msra.mxu0 0.0
    %446 = vmatprep.subr.mxu0 0.0
    %447 = vmatpush1.msra.mxu0 0.0
    %448 = vmatprep.subr.mxu0 0.0
    %449 = vmatpush1.msra.mxu0 0.0
    %450 = vmatprep.subr.mxu0 0.0
    %451 = vmatpush1.msra.mxu0 0.0
    %452 = vmatprep.mubr.f32.mxu0 0.0
    %453 = vmatmul.mubr.f32.gmra.mrb[0].mxu0 %v382
    %v454 = vpop.f32.mrb[0].mxu0
    %v455 = vadd.f32 0.0, %v454
    %v456 = vpop.f32.mrb[0].mxu0
    %457 = vdwg.mxu0
    %v458 = vld [vmem:[#allocation5] sm:$0xff]
    %v459 = vpack.c.bf16 %v458, %v458
    %v460 = vld [vmem:[#allocation9] sm:$0xf]
    %v461 = vld [vmem:[#allocation9 + $0x4] sm:$0xf]
    %v462 = vld [vmem:[#allocation9 + $0x8] sm:$0xf]
    %v463 = vld [vmem:[#allocation9 + $0xc] sm:$0xf]
    %v464 = vld [vmem:[#allocation9 + $0x10] sm:$0xf]
    %v465 = vld [vmem:[#allocation9 + $0x14] sm:$0xf]
    %v466 = vld [vmem:[#allocation9 + $0x18] sm:$0xf]
    %v467 = vld [vmem:[#allocation9 + $0x1c] sm:$0xf]
    %v468 = vld [vmem:[#allocation9 + $0x20] sm:$0xf]
    %v469 = vld [vmem:[#allocation9 + $0x24] sm:$0xf]
    %v470 = vld [vmem:[#allocation9 + $0x28] sm:$0xf]
    %v471 = vld [vmem:[#allocation9 + $0x2c] sm:$0xf]
    %v472 = vld [vmem:[#allocation9 + $0x30] sm:$0x3]
    %v486 = vunpack.c.l.b16 %v460
    %v487 = vunpack.c.l.b16 %v461
    %v488 = vunpack.c.l.b16 %v462
    %v489 = vunpack.c.l.b16 %v463
    %v490 = vunpack.c.l.b16 %v464
    %v491 = vunpack.c.l.b16 %v465
    %v492 = vunpack.c.l.b16 %v466
    %v493 = vunpack.c.l.b16 %v467
    %v494 = vunpack.c.l.b16 %v468
    %v495 = vunpack.c.l.b16 %v469
    %v496 = vunpack.c.l.b16 %v470
    %v497 = vunpack.c.l.b16 %v471
    %v498 = vunpack.c.l.b16 %v472
    %v499 = vpack.c.b16 %v487, %v486
    %v500 = vpack.c.b16 %v489, %v488
    %v501 = vpack.c.b16 %v491, %v490
    %v502 = vpack.c.b16 %v493, %v492
    %v503 = vpack.c.b16 %v495, %v494
    %v504 = vpack.c.b16 %v497, %v496
    %v505 = vpack.c.b16 %v498, %v498
    %vm512 = vcmask 818176
    %v514 = vsel %vm512, %v459, 0
    %v517 = vsel %vm384, %v505, 0
    %519 = vmatprep.subr.bf16.mxu0 0
    %520 = vmatpush1.bf16.msra.mxu0 %v499
    %521 = vmatprep.subr.bf16.mxu0 0
    %522 = vmatpush1.bf16.msra.mxu0 %v500
    %523 = vmatprep.subr.bf16.mxu0 0
    %524 = vmatpush1.bf16.msra.mxu0 %v501
    %525 = vmatprep.subr.bf16.mxu0 0
    %526 = vmatpush1.bf16.msra.mxu0 %v502
    %527 = vmatprep.subr.bf16.mxu0 0
    %528 = vmatpush1.bf16.msra.mxu0 %v503
    %529 = vmatprep.subr.bf16.mxu0 0
    %530 = vmatpush1.bf16.msra.mxu0 %v504
    %531 = vmatprep.subr.bf16.mxu0 0
    %532 = vmatpush1.bf16.msra.mxu0 %v517
    %533 = vmatprep.subr.bf16.mxu0 0
    %534 = vmatpush1.bf16.msra.mxu0 0
    %535 = vmatprep.subr.bf16.mxu0 0
    %536 = vmatpush1.bf16.msra.mxu0 0
    %537 = vmatprep.subr.bf16.mxu0 0
    %538 = vmatpush1.bf16.msra.mxu0 0
    %539 = vmatprep.subr.bf16.mxu0 0
    %540 = vmatpush1.bf16.msra.mxu0 0
    %541 = vmatprep.subr.bf16.mxu0 0
    %542 = vmatpush1.bf16.msra.mxu0 0
    %543 = vmatprep.subr.bf16.mxu0 0
    %544 = vmatpush1.bf16.msra.mxu0 0
    %545 = vmatprep.subr.bf16.mxu0 0
    %546 = vmatpush1.bf16.msra.mxu0 0
    %547 = vmatprep.subr.bf16.mxu0 0
    %548 = vmatpush1.bf16.msra.mxu0 0
    %549 = vmatprep.subr.bf16.mxu0 0
    %550 = vmatpush1.bf16.msra.mxu0 0
    %551 = vmatprep.mubr.bf16.mxu0 0
    %552 = vmatmul.mubr.bf16.gmra.mrb[0].mxu0 %v514
    %v553 = vpop.f32.mrb[0].mxu0
    %v554 = vadd.f32 %v455, %v553
    %v555 = vpop.f32.mrb[0].mxu0
    %v556 = vpop.f32.mrb[0].mxu0
    %v557 = vpop.f32.mrb[0].mxu0
    %558 = vdwg.mxu0
    %vm559 = vcmp.gt.f32.partialorder %v554, 0.0
    %v560 = vmul.f32 %v554, 0.2
    %v561 = vsel %vm559, %v554, %v560
    %v562 = vpack.c.bf16 %v561, %v561
    %v563 = vld [vmem:[#allocation10] sm:$0xff]
    %v564 = vld [vmem:[#allocation10 + $0x8] sm:$0xff]
    %v565 = vld [vmem:[#allocation10 + $0x10] sm:$0xff]
    %v566 = vld [vmem:[#allocation10 + $0x18] sm:$0xff]
    %v567 = vld [vmem:[#allocation10 + $0x20] sm:$0xff]
    %v568 = vld [vmem:[#allocation10 + $0x28] sm:$0xff]
    %v569 = vld [vmem:[#allocation10 + $0x30] sm:$0xff]
    %v570 = vld [vmem:[#allocation10 + $0x38] sm:$0xff]
    %v571 = vld [vmem:[#allocation10 + $0x40] sm:$0xff]
    %v572 = vld [vmem:[#allocation10 + $0x48] sm:$0xff]
    %v573 = vld [vmem:[#allocation10 + $0x50] sm:$0xff]
    %v574 = vld [vmem:[#allocation10 + $0x58] sm:$0xff]
    %v575 = vld [vmem:[#allocation10 + $0x60] sm:$0xff]
    %v576 = vld [vmem:[#allocation10 + $0x68] sm:$0xff]
    %v577 = vld [vmem:[#allocation10 + $0x70] sm:$0xff]
    %v578 = vld [vmem:[#allocation10 + $0x78] sm:$0xff]
    %v595 = vunpack.c.l.b16 %v563
    %v596 = vunpack.c.h.b16 %v563
    %v597 = vunpack.c.l.b16 %v564
    %v598 = vunpack.c.h.b16 %v564
    %v599 = vunpack.c.l.b16 %v565
    %v600 = vunpack.c.h.b16 %v565
    %v601 = vunpack.c.l.b16 %v566
    %v602 = vunpack.c.h.b16 %v566
    %v603 = vunpack.c.l.b16 %v567
    %v604 = vunpack.c.h.b16 %v567
    %v605 = vunpack.c.l.b16 %v568
    %v606 = vunpack.c.h.b16 %v568
    %v607 = vunpack.c.l.b16 %v569
    %v608 = vunpack.c.h.b16 %v569
    %v609 = vunpack.c.l.b16 %v570
    %v610 = vunpack.c.h.b16 %v570
    %v611 = vunpack.c.l.b16 %v571
    %v612 = vunpack.c.h.b16 %v571
    %v613 = vunpack.c.l.b16 %v572
    %v614 = vunpack.c.h.b16 %v572
    %v615 = vunpack.c.l.b16 %v573
    %v616 = vunpack.c.h.b16 %v573
    %v617 = vunpack.c.l.b16 %v574
    %v618 = vunpack.c.h.b16 %v574
    %v619 = vunpack.c.l.b16 %v575
    %v620 = vunpack.c.h.b16 %v575
    %v621 = vunpack.c.l.b16 %v576
    %v622 = vunpack.c.h.b16 %v576
    %v623 = vunpack.c.l.b16 %v577
    %v624 = vunpack.c.h.b16 %v577
    %v625 = vunpack.c.l.b16 %v578
    %v626 = vunpack.c.h.b16 %v578
    %v627 = vpack.c.b16 %v597, %v595
    %v628 = vpack.c.b16 %v598, %v596
    %v629 = vpack.c.b16 %v601, %v599
    %v630 = vpack.c.b16 %v602, %v600
    %v631 = vpack.c.b16 %v605, %v603
    %v632 = vpack.c.b16 %v606, %v604
    %v633 = vpack.c.b16 %v609, %v607
    %v634 = vpack.c.b16 %v610, %v608
    %v635 = vpack.c.b16 %v613, %v611
    %v636 = vpack.c.b16 %v614, %v612
    %v637 = vpack.c.b16 %v617, %v615
    %v638 = vpack.c.b16 %v618, %v616
    %v639 = vpack.c.b16 %v621, %v619
    %v640 = vpack.c.b16 %v622, %v620
    %v641 = vpack.c.b16 %v625, %v623
    %v642 = vpack.c.b16 %v626, %v624
    %659 = vmatprep.subr.bf16.mxu0 %v628
    %660 = vmatpush1.bf16.msra.mxu0 %v627
    %661 = vmatprep.subr.bf16.mxu0 %v630
    %662 = vmatpush1.bf16.msra.mxu0 %v629
    %663 = vmatprep.subr.bf16.mxu0 %v632
    %664 = vmatpush1.bf16.msra.mxu0 %v631
    %665 = vmatprep.subr.bf16.mxu0 %v634
    %666 = vmatpush1.bf16.msra.mxu0 %v633
    %667 = vmatprep.subr.bf16.mxu0 %v636
    %668 = vmatpush1.bf16.msra.mxu0 %v635
    %669 = vmatprep.subr.bf16.mxu0 %v638
    %670 = vmatpush1.bf16.msra.mxu0 %v637
    %671 = vmatprep.subr.bf16.mxu0 %v640
    %672 = vmatpush1.bf16.msra.mxu0 %v639
    %673 = vmatprep.subr.bf16.mxu0 %v642
    %674 = vmatpush1.bf16.msra.mxu0 %v641
    %675 = vmatprep.subr.bf16.mxu0 0
    %676 = vmatpush1.bf16.msra.mxu0 0
    %677 = vmatprep.subr.bf16.mxu0 0
    %678 = vmatpush1.bf16.msra.mxu0 0
    %679 = vmatprep.subr.bf16.mxu0 0
    %680 = vmatpush1.bf16.msra.mxu0 0
    %681 = vmatprep.subr.bf16.mxu0 0
    %682 = vmatpush1.bf16.msra.mxu0 0
    %683 = vmatprep.subr.bf16.mxu0 0
    %684 = vmatpush1.bf16.msra.mxu0 0
    %685 = vmatprep.subr.bf16.mxu0 0
    %686 = vmatpush1.bf16.msra.mxu0 0
    %687 = vmatprep.subr.bf16.mxu0 0
    %688 = vmatpush1.bf16.msra.mxu0 0
    %689 = vmatprep.subr.bf16.mxu0 0
    %690 = vmatpush1.bf16.msra.mxu0 0
    %691 = vmatprep.mubr.bf16.mxu0 0
    %692 = vmatmul.mubr.bf16.gmra.mrb[0].mxu0 %v562
    %v693 = vpop.f32.mrb[0].mxu0
    %v694 = vadd.f32 0.0, %v693
    %v695 = vpop.f32.mrb[0].mxu0
    %v696 = vadd.f32 0.0, %v695
    %v697 = vpop.f32.mrb[0].mxu0
    %v698 = vpop.f32.mrb[0].mxu0
    %699 = vdwg.mxu0
    %v700 = vld [vmem:[#allocation12] sm:$0x3]
    %v701 = vld [vmem:[#allocation13] sm:$0x3]
    %v702 = vrot.slane %v694, 4
    %v703 = vadd.f32 %v694, %v702
    %v704 = vrot.slane %v703, 2
    %v705 = vadd.f32 %v703, %v704
    %v706 = vrot.slane %v705, 1
    %v707 = vadd.f32 %v705, %v706
    %v708 = vrot.slane %v696, 4
    %v709 = vadd.f32 %v696, %v708
    %v710 = vrot.slane %v709, 2
    %v711 = vadd.f32 %v709, %v710
    %v712 = vrot.slane %v711, 1
    %v713 = vadd.f32 %v711, %v712
    %v714 = vrcp.pop 8.0
    %v715 = vmul.f32 %v707, %v714
    %v716 = vmul.f32 %v713, %v714
    %v717 = vsub.f32 %v694, %v715
    %v718 = vsub.f32 %v696, %v716
    %v719 = vmul.f32 %v717, %v717
    %v720 = vmul.f32 %v718, %v718
    %v721 = vrot.slane %v719, 4
    %v722 = vadd.f32 %v719, %v721
    %v723 = vrot.slane %v722, 2
    %v724 = vadd.f32 %v722, %v723
    %v725 = vrot.slane %v724, 1
    %v726 = vadd.f32 %v724, %v725
    %v727 = vrot.slane %v720, 4
    %v728 = vadd.f32 %v720, %v727
    %v729 = vrot.slane %v728, 2
    %v730 = vadd.f32 %v728, %v729
    %v731 = vrot.slane %v730, 1
    %v732 = vadd.f32 %v730, %v731
    %v733 = vmul.f32 %v726, %v714
    %v734 = vmul.f32 %v732, %v714
    %v735 = vadd.f32 %v733, 1e-05
    %v736 = vadd.f32 %v734, 1e-05
    %v737 = vrsqrt.pop %v735
    %v738 = vrsqrt.pop %v736
    %v741 = vcombine.low %v737, %v738
    %v743 = vunpack.c.l.s4 1966171168
    %v744 = vunpack.c.0.s8 %v743
    %v745 = vlaneseq
    %v746 = vshrl.u32 %v745, 7
    %v747 = vsub.s32 %v744, %v746
    %v748 = vrot.slane %v741, %v747
    %v750 = vunpack.c.l.s4 1966171168
    %v751 = vunpack.c.0.s8 %v750
    %v752 = vlaneseq
    %v753 = vshrl.u32 %v752, 7
    %v754 = vsub.s32 %v751, %v753
    %v755 = vrot.slane %v748, %v754
    %v757 = vmul.f32 %v700, %v755
    %v759 = vlaneseq
    %v760 = vshrl.u32 %v759, 7
    %v761 = vsub.s32 0, %v760
    %v762 = vrot.slane %v757, %v761
    %v763 = vlaneseq
    %v764 = vshrl.u32 %v763, 7
    %v765 = vsub.s32 1, %v764
    %v766 = vrot.slane %v757, %v765
    %v769 = vmul.f32 %v715, %v762
    %v770 = vmul.f32 %v716, %v766
    %v773 = vcombine.low %v769, %v770
    %v775 = vunpack.c.l.s4 1966171168
    %v776 = vunpack.c.0.s8 %v775
    %v777 = vlaneseq
    %v778 = vshrl.u32 %v777, 7
    %v779 = vsub.s32 %v776, %v778
    %v780 = vrot.slane %v773, %v779
    %v782 = vunpack.c.l.s4 1966171168
    %v783 = vunpack.c.0.s8 %v782
    %v784 = vlaneseq
    %v785 = vshrl.u32 %v784, 7
    %v786 = vsub.s32 %v783, %v785
    %v787 = vrot.slane %v780, %v786
    %v789 = vsub.f32 %v701, %v787
    %v790 = vmul.f32 %v694, %v762
    %v791 = vmul.f32 %v696, %v766
    %v793 = vlaneseq
    %v794 = vshrl.u32 %v793, 7
    %v795 = vsub.s32 0, %v794
    %v796 = vrot.slane %v789, %v795
    %v797 = vlaneseq
    %v798 = vshrl.u32 %v797, 7
    %v799 = vsub.s32 1, %v798
    %v800 = vrot.slane %v789, %v799
    %v803 = vadd.f32 %v790, %v796
    %v804 = vadd.f32 %v791, %v800
    %vm805 = vcmp.gt.f32.partialorder %v803, 0.0
    %vm806 = vcmp.gt.f32.partialorder %v804, 0.0
    %v807 = vmul.f32 %v803, 0.2
    %v808 = vmul.f32 %v804, 0.2
    %v809 = vsel %vm805, %v803, %v807
    %v810 = vsel %vm806, %v804, %v808
    %v811 = vpack.c.bf16 %v809, %v809
    %v812 = vpack.c.bf16 %v810, %v810
    %v813 = vld [vmem:[#allocation15] sm:$0xff]
    %v814 = vld [vmem:[#allocation15 + $0x8] sm:$0xff]
    %v815 = vld [vmem:[#allocation15 + $0x10] sm:$0xff]
    %v816 = vld [vmem:[#allocation15 + $0x18] sm:$0xff]
    %v817 = vld [vmem:[#allocation15 + $0x20] sm:$0xff]
    %v818 = vld [vmem:[#allocation15 + $0x28] sm:$0xff]
    %v819 = vld [vmem:[#allocation15 + $0x30] sm:$0xff]
    %v820 = vld [vmem:[#allocation15 + $0x38] sm:$0xff]
    %v821 = vld [vmem:[#allocation15 + $0x40] sm:$0xff]
    %v822 = vld [vmem:[#allocation15 + $0x48] sm:$0xff]
    %v823 = vld [vmem:[#allocation15 + $0x50] sm:$0xff]
    %v824 = vld [vmem:[#allocation15 + $0x58] sm:$0xff]
    %v825 = vld [vmem:[#allocation15 + $0x60] sm:$0xff]
    %v826 = vld [vmem:[#allocation15 + $0x68] sm:$0xff]
    %v827 = vld [vmem:[#allocation15 + $0x70] sm:$0xff]
    %v828 = vld [vmem:[#allocation15 + $0x78] sm:$0xff]
    %v829 = vld [vmem:[#allocation15 + $0x80] sm:$0xff]
    %v830 = vld [vmem:[#allocation15 + $0x88] sm:$0xff]
    %v831 = vld [vmem:[#allocation15 + $0x90] sm:$0xff]
    %v832 = vld [vmem:[#allocation15 + $0x98] sm:$0xff]
    %v833 = vld [vmem:[#allocation15 + $0xa0] sm:$0xff]
    %v834 = vld [vmem:[#allocation15 + $0xa8] sm:$0xff]
    %v835 = vld [vmem:[#allocation15 + $0xb0] sm:$0xff]
    %v836 = vld [vmem:[#allocation15 + $0xb8] sm:$0xff]
    %v837 = vld [vmem:[#allocation15 + $0xc0] sm:$0xff]
    %v838 = vld [vmem:[#allocation15 + $0xc8] sm:$0xff]
    %v839 = vld [vmem:[#allocation15 + $0xd0] sm:$0xff]
    %v840 = vld [vmem:[#allocation15 + $0xd8] sm:$0xff]
    %v841 = vld [vmem:[#allocation15 + $0xe0] sm:$0xff]
    %v842 = vld [vmem:[#allocation15 + $0xe8] sm:$0xff]
    %v843 = vld [vmem:[#allocation15 + $0xf0] sm:$0xff]
    %v844 = vld [vmem:[#allocation15 + $0xf8] sm:$0xff]
    %v845 = vld [vmem:[#allocation15 + $0x100] sm:$0xff]
    %v846 = vld [vmem:[#allocation15 + $0x108] sm:$0xff]
    %v847 = vld [vmem:[#allocation15 + $0x110] sm:$0xff]
    %v848 = vld [vmem:[#allocation15 + $0x118] sm:$0xff]
    %v849 = vld [vmem:[#allocation15 + $0x120] sm:$0xff]
    %v850 = vld [vmem:[#allocation15 + $0x128] sm:$0xff]
    %v851 = vld [vmem:[#allocation15 + $0x130] sm:$0xff]
    %v852 = vld [vmem:[#allocation15 + $0x138] sm:$0xff]
    %v853 = vld [vmem:[#allocation15 + $0x140] sm:$0xff]
    %v854 = vld [vmem:[#allocation15 + $0x148] sm:$0xff]
    %v855 = vld [vmem:[#allocation15 + $0x150] sm:$0xff]
    %v856 = vld [vmem:[#allocation15 + $0x158] sm:$0xff]
    %v857 = vld [vmem:[#allocation15 + $0x160] sm:$0xff]
    %v858 = vld [vmem:[#allocation15 + $0x168] sm:$0xff]
    %v859 = vld [vmem:[#allocation15 + $0x170] sm:$0xff]
    %v860 = vld [vmem:[#allocation15 + $0x178] sm:$0xff]
    %v861 = vld [vmem:[#allocation15 + $0x180] sm:$0xff]
    %v862 = vld [vmem:[#allocation15 + $0x188] sm:$0xff]
    %v863 = vld [vmem:[#allocation15 + $0x190] sm:$0xff]
    %v864 = vld [vmem:[#allocation15 + $0x198] sm:$0xff]
    %v865 = vld [vmem:[#allocation15 + $0x1a0] sm:$0xff]
    %v866 = vld [vmem:[#allocation15 + $0x1a8] sm:$0xff]
    %v867 = vld [vmem:[#allocation15 + $0x1b0] sm:$0xff]
    %v868 = vld [vmem:[#allocation15 + $0x1b8] sm:$0xff]
    %v869 = vld [vmem:[#allocation15 + $0x1c0] sm:$0xff]
    %v870 = vld [vmem:[#allocation15 + $0x1c8] sm:$0xff]
    %v871 = vld [vmem:[#allocation15 + $0x1d0] sm:$0xff]
    %v872 = vld [vmem:[#allocation15 + $0x1d8] sm:$0xff]
    %v873 = vld [vmem:[#allocation15 + $0x1e0] sm:$0xff]
    %v874 = vld [vmem:[#allocation15 + $0x1e8] sm:$0xff]
    %v875 = vld [vmem:[#allocation15 + $0x1f0] sm:$0xff]
    %v876 = vld [vmem:[#allocation15 + $0x1f8] sm:$0xff]
    %v941 = vunpack.c.l.b16 %v813
    %v942 = vunpack.c.h.b16 %v813
    %v943 = vunpack.c.l.b16 %v814
    %v944 = vunpack.c.h.b16 %v814
    %v945 = vunpack.c.l.b16 %v815
    %v946 = vunpack.c.h.b16 %v815
    %v947 = vunpack.c.l.b16 %v816
    %v948 = vunpack.c.h.b16 %v816
    %v949 = vunpack.c.l.b16 %v817
    %v950 = vunpack.c.h.b16 %v817
    %v951 = vunpack.c.l.b16 %v818
    %v952 = vunpack.c.h.b16 %v818
    %v953 = vunpack.c.l.b16 %v819
    %v954 = vunpack.c.h.b16 %v819
    %v955 = vunpack.c.l.b16 %v820
    %v956 = vunpack.c.h.b16 %v820
    %v957 = vunpack.c.l.b16 %v821
    %v958 = vunpack.c.h.b16 %v821
    %v959 = vunpack.c.l.b16 %v822
    %v960 = vunpack.c.h.b16 %v822
    %v961 = vunpack.c.l.b16 %v823
    %v962 = vunpack.c.h.b16 %v823
    %v963 = vunpack.c.l.b16 %v824
    %v964 = vunpack.c.h.b16 %v824
    %v965 = vunpack.c.l.b16 %v825
    %v966 = vunpack.c.h.b16 %v825
    %v967 = vunpack.c.l.b16 %v826
    %v968 = vunpack.c.h.b16 %v826
    %v969 = vunpack.c.l.b16 %v827
    %v970 = vunpack.c.h.b16 %v827
    %v971 = vunpack.c.l.b16 %v828
    %v972 = vunpack.c.h.b16 %v828
    %v973 = vunpack.c.l.b16 %v829
    %v974 = vunpack.c.h.b16 %v829
    %v975 = vunpack.c.l.b16 %v830
    %v976 = vunpack.c.h.b16 %v830
    %v977 = vunpack.c.l.b16 %v831
    %v978 = vunpack.c.h.b16 %v831
    %v979 = vunpack.c.l.b16 %v832
    %v980 = vunpack.c.h.b16 %v832
    %v981 = vunpack.c.l.b16 %v833
    %v982 = vunpack.c.h.b16 %v833
    %v983 = vunpack.c.l.b16 %v834
    %v984 = vunpack.c.h.b16 %v834
    %v985 = vunpack.c.l.b16 %v835
    %v986 = vunpack.c.h.b16 %v835
    %v987 = vunpack.c.l.b16 %v836
    %v988 = vunpack.c.h.b16 %v836
    %v989 = vunpack.c.l.b16 %v837
    %v990 = vunpack.c.h.b16 %v837
    %v991 = vunpack.c.l.b16 %v838
    %v992 = vunpack.c.h.b16 %v838
    %v993 = vunpack.c.l.b16 %v839
    %v994 = vunpack.c.h.b16 %v839
    %v995 = vunpack.c.l.b16 %v840
    %v996 = vunpack.c.h.b16 %v840
    %v997 = vunpack.c.l.b16 %v841
    %v998 = vunpack.c.h.b16 %v841
    %v999 = vunpack.c.l.b16 %v842
    %v1000 = vunpack.c.h.b16 %v842
    %v1001 = vunpack.c.l.b16 %v843
    %v1002 = vunpack.c.h.b16 %v843
    %v1003 = vunpack.c.l.b16 %v844
    %v1004 = vunpack.c.h.b16 %v844
    %v1005 = vunpack.c.l.b16 %v845
    %v1006 = vunpack.c.h.b16 %v845
    %v1007 = vunpack.c.l.b16 %v846
    %v1008 = vunpack.c.h.b16 %v846
    %v1009 = vunpack.c.l.b16 %v847
    %v1010 = vunpack.c.h.b16 %v847
    %v1011 = vunpack.c.l.b16 %v848
    %v1012 = vunpack.c.h.b16 %v848
    %v1013 = vunpack.c.l.b16 %v849
    %v1014 = vunpack.c.h.b16 %v849
    %v1015 = vunpack.c.l.b16 %v850
    %v1016 = vunpack.c.h.b16 %v850
    %v1017 = vunpack.c.l.b16 %v851
    %v1018 = vunpack.c.h.b16 %v851
    %v1019 = vunpack.c.l.b16 %v852
    %v1020 = vunpack.c.h.b16 %v852
    %v1021 = vunpack.c.l.b16 %v853
    %v1022 = vunpack.c.h.b16 %v853
    %v1023 = vunpack.c.l.b16 %v854
    %v1024 = vunpack.c.h.b16 %v854
    %v1025 = vunpack.c.l.b16 %v855
    %v1026 = vunpack.c.h.b16 %v855
    %v1027 = vunpack.c.l.b16 %v856
    %v1028 = vunpack.c.h.b16 %v856
    %v1029 = vunpack.c.l.b16 %v857
    %v1030 = vunpack.c.h.b16 %v857
    %v1031 = vunpack.c.l.b16 %v858
    %v1032 = vunpack.c.h.b16 %v858
    %v1033 = vunpack.c.l.b16 %v859
    %v1034 = vunpack.c.h.b16 %v859
    %v1035 = vunpack.c.l.b16 %v860
    %v1036 = vunpack.c.h.b16 %v860
    %v1037 = vunpack.c.l.b16 %v861
    %v1038 = vunpack.c.h.b16 %v861
    %v1039 = vunpack.c.l.b16 %v862
    %v1040 = vunpack.c.h.b16 %v862
    %v1041 = vunpack.c.l.b16 %v863
    %v1042 = vunpack.c.h.b16 %v863
    %v1043 = vunpack.c.l.b16 %v864
    %v1044 = vunpack.c.h.b16 %v864
    %v1045 = vunpack.c.l.b16 %v865
    %v1046 = vunpack.c.h.b16 %v865
    %v1047 = vunpack.c.l.b16 %v866
    %v1048 = vunpack.c.h.b16 %v866
    %v1049 = vunpack.c.l.b16 %v867
    %v1050 = vunpack.c.h.b16 %v867
    %v1051 = vunpack.c.l.b16 %v868
    %v1052 = vunpack.c.h.b16 %v868
    %v1053 = vunpack.c.l.b16 %v869
    %v1054 = vunpack.c.h.b16 %v869
    %v1055 = vunpack.c.l.b16 %v870
    %v1056 = vunpack.c.h.b16 %v870
    %v1057 = vunpack.c.l.b16 %v871
    %v1058 = vunpack.c.h.b16 %v871
    %v1059 = vunpack.c.l.b16 %v872
    %v1060 = vunpack.c.h.b16 %v872
    %v1061 = vunpack.c.l.b16 %v873
    %v1062 = vunpack.c.h.b16 %v873
    %v1063 = vunpack.c.l.b16 %v874
    %v1064 = vunpack.c.h.b16 %v874
    %v1065 = vunpack.c.l.b16 %v875
    %v1066 = vunpack.c.h.b16 %v875
    %v1067 = vunpack.c.l.b16 %v876
    %v1068 = vunpack.c.h.b16 %v876
    %v1069 = vpack.c.b16 %v945, %v941
    %v1070 = vpack.c.b16 %v946, %v942
    %v1071 = vpack.c.b16 %v947, %v943
    %v1072 = vpack.c.b16 %v948, %v944
    %v1073 = vpack.c.b16 %v953, %v949
    %v1074 = vpack.c.b16 %v954, %v950
    %v1075 = vpack.c.b16 %v955, %v951
    %v1076 = vpack.c.b16 %v956, %v952
    %v1077 = vpack.c.b16 %v961, %v957
    %v1078 = vpack.c.b16 %v962, %v958
    %v1079 = vpack.c.b16 %v963, %v959
    %v1080 = vpack.c.b16 %v964, %v960
    %v1081 = vpack.c.b16 %v969, %v965
    %v1082 = vpack.c.b16 %v970, %v966
    %v1083 = vpack.c.b16 %v971, %v967
    %v1084 = vpack.c.b16 %v972, %v968
    %v1085 = vpack.c.b16 %v977, %v973
    %v1086 = vpack.c.b16 %v978, %v974
    %v1087 = vpack.c.b16 %v979, %v975
    %v1088 = vpack.c.b16 %v980, %v976
    %v1089 = vpack.c.b16 %v985, %v981
    %v1090 = vpack.c.b16 %v986, %v982
    %v1091 = vpack.c.b16 %v987, %v983
    %v1092 = vpack.c.b16 %v988, %v984
    %v1093 = vpack.c.b16 %v993, %v989
    %v1094 = vpack.c.b16 %v994, %v990
    %v1095 = vpack.c.b16 %v995, %v991
    %v1096 = vpack.c.b16 %v996, %v992
    %v1097 = vpack.c.b16 %v1001, %v997
    %v1098 = vpack.c.b16 %v1002, %v998
    %v1099 = vpack.c.b16 %v1003, %v999
    %v1100 = vpack.c.b16 %v1004, %v1000
    %v1101 = vpack.c.b16 %v1009, %v1005
    %v1102 = vpack.c.b16 %v1010, %v1006
    %v1103 = vpack.c.b16 %v1011, %v1007
    %v1104 = vpack.c.b16 %v1012, %v1008
    %v1105 = vpack.c.b16 %v1017, %v1013
    %v1106 = vpack.c.b16 %v1018, %v1014
    %v1107 = vpack.c.b16 %v1019, %v1015
    %v1108 = vpack.c.b16 %v1020, %v1016
    %v1109 = vpack.c.b16 %v1025, %v1021
    %v1110 = vpack.c.b16 %v1026, %v1022
    %v1111 = vpack.c.b16 %v1027, %v1023
    %v1112 = vpack.c.b16 %v1028, %v1024
    %v1113 = vpack.c.b16 %v1033, %v1029
    %v1114 = vpack.c.b16 %v1034, %v1030
    %v1115 = vpack.c.b16 %v1035, %v1031
    %v1116 = vpack.c.b16 %v1036, %v1032
    %v1117 = vpack.c.b16 %v1041, %v1037
    %v1118 = vpack.c.b16 %v1042, %v1038
    %v1119 = vpack.c.b16 %v1043, %v1039
    %v1120 = vpack.c.b16 %v1044, %v1040
    %v1121 = vpack.c.b16 %v1049, %v1045
    %v1122 = vpack.c.b16 %v1050, %v1046
    %v1123 = vpack.c.b16 %v1051, %v1047
    %v1124 = vpack.c.b16 %v1052, %v1048
    %v1125 = vpack.c.b16 %v1057, %v1053
    %v1126 = vpack.c.b16 %v1058, %v1054
    %v1127 = vpack.c.b16 %v1059, %v1055
    %v1128 = vpack.c.b16 %v1060, %v1056
    %v1129 = vpack.c.b16 %v1065, %v1061
    %v1130 = vpack.c.b16 %v1066, %v1062
    %v1131 = vpack.c.b16 %v1067, %v1063
    %v1132 = vpack.c.b16 %v1068, %v1064
    %1197 = vmatprep.subr.bf16.mxu0 %v1070
    %1198 = vmatpush1.bf16.msra.mxu0 %v1069
    %1199 = vmatprep.subr.bf16.mxu0 %v1074
    %1200 = vmatpush1.bf16.msra.mxu0 %v1073
    %1201 = vmatprep.subr.bf16.mxu0 %v1078
    %1202 = vmatpush1.bf16.msra.mxu0 %v1077
    %1203 = vmatprep.subr.bf16.mxu0 %v1082
    %1204 = vmatpush1.bf16.msra.mxu0 %v1081
    %1205 = vmatprep.subr.bf16.mxu0 %v1086
    %1206 = vmatpush1.bf16.msra.mxu0 %v1085
    %1207 = vmatprep.subr.bf16.mxu0 %v1090
    %1208 = vmatpush1.bf16.msra.mxu0 %v1089
    %1209 = vmatprep.subr.bf16.mxu0 %v1094
    %1210 = vmatpush1.bf16.msra.mxu0 %v1093
    %1211 = vmatprep.subr.bf16.mxu0 %v1098
    %1212 = vmatpush1.bf16.msra.mxu0 %v1097
    %1213 = vmatprep.subr.bf16.mxu0 %v1102
    %1214 = vmatpush1.bf16.msra.mxu0 %v1101
    %1215 = vmatprep.subr.bf16.mxu0 %v1106
    %1216 = vmatpush1.bf16.msra.mxu0 %v1105
    %1217 = vmatprep.subr.bf16.mxu0 %v1110
    %1218 = vmatpush1.bf16.msra.mxu0 %v1109
    %1219 = vmatprep.subr.bf16.mxu0 %v1114
    %1220 = vmatpush1.bf16.msra.mxu0 %v1113
    %1221 = vmatprep.subr.bf16.mxu0 %v1118
    %1222 = vmatpush1.bf16.msra.mxu0 %v1117
    %1223 = vmatprep.subr.bf16.mxu0 %v1122
    %1224 = vmatpush1.bf16.msra.mxu0 %v1121
    %1225 = vmatprep.subr.bf16.mxu0 %v1126
    %1226 = vmatpush1.bf16.msra.mxu0 %v1125
    %1227 = vmatprep.subr.bf16.mxu0 %v1130
    %1228 = vmatpush1.bf16.msra.mxu0 %v1129
    %1229 = vmatprep.mubr.bf16.mxu0 %v812
    %1230 = vmatmul.mubr.bf16.gmra.mrb[0].mxu0 %v811
    %v1231 = vpop.f32.mrb[0].mxu0
    %v1232 = vadd.f32 0.0, %v1231
    %v1233 = vpop.f32.mrb[0].mxu0
    %v1234 = vadd.f32 0.0, %v1233
    %v1235 = vpop.f32.mrb[0].mxu0
    %v1236 = vpop.f32.mrb[0].mxu0
    %1237 = vdwg.mxu0
    %1238 = vmatprep.subr.bf16.mxu0 %v1072
    %1239 = vmatpush1.bf16.msra.mxu0 %v1071
    %1240 = vmatprep.subr.bf16.mxu0 %v1076
    %1241 = vmatpush1.bf16.msra.mxu0 %v1075
    %1242 = vmatprep.subr.bf16.mxu0 %v1080
    %1243 = vmatpush1.bf16.msra.mxu0 %v1079
    %1244 = vmatprep.subr.bf16.mxu0 %v1084
    %1245 = vmatpush1.bf16.msra.mxu0 %v1083
    %1246 = vmatprep.subr.bf16.mxu0 %v1088
    %1247 = vmatpush1.bf16.msra.mxu0 %v1087
    %1248 = vmatprep.subr.bf16.mxu0 %v1092
    %1249 = vmatpush1.bf16.msra.mxu0 %v1091
    %1250 = vmatprep.subr.bf16.mxu0 %v1096
    %1251 = vmatpush1.bf16.msra.mxu0 %v1095
    %1252 = vmatprep.subr.bf16.mxu0 %v1100
    %1253 = vmatpush1.bf16.msra.mxu0 %v1099
    %1254 = vmatprep.subr.bf16.mxu0 %v1104
    %1255 = vmatpush1.bf16.msra.mxu0 %v1103
    %1256 = vmatprep.subr.bf16.mxu0 %v1108
    %1257 = vmatpush1.bf16.msra.mxu0 %v1107
    %1258 = vmatprep.subr.bf16.mxu0 %v1112
    %1259 = vmatpush1.bf16.msra.mxu0 %v1111
    %1260 = vmatprep.subr.bf16.mxu0 %v1116
    %1261 = vmatpush1.bf16.msra.mxu0 %v1115
    %1262 = vmatprep.subr.bf16.mxu0 %v1120
    %1263 = vmatpush1.bf16.msra.mxu0 %v1119
    %1264 = vmatprep.subr.bf16.mxu0 %v1124
    %1265 = vmatpush1.bf16.msra.mxu0 %v1123
    %1266 = vmatprep.subr.bf16.mxu0 %v1128
    %1267 = vmatpush1.bf16.msra.mxu0 %v1127
    %1268 = vmatprep.subr.bf16.mxu0 %v1132
    %1269 = vmatpush1.bf16.msra.mxu0 %v1131
    %1270 = vmatprep.mubr.bf16.mxu0 %v812
    %1271 = vmatmul.mubr.bf16.gmra.mrb[0].mxu0 %v811
    %v1272 = vpop.f32.mrb[0].mxu0
    %v1273 = vadd.f32 0.0, %v1272
    %v1274 = vpop.f32.mrb[0].mxu0
    %v1275 = vadd.f32 0.0, %v1274
    %v1276 = vpop.f32.mrb[0].mxu0
    %v1277 = vpop.f32.mrb[0].mxu0
    %1278 = vdwg.mxu0
    %v1279 = vld [vmem:[#allocation16] sm:$0xf]
    %v1280 = vld [vmem:[#allocation18] sm:$0xf]
    %v1281 = vrot.slane %v1232, 4
    %v1282 = vadd.f32 %v1232, %v1281
    %v1283 = vrot.slane %v1282, 2
    %v1284 = vadd.f32 %v1282, %v1283
    %v1285 = vrot.slane %v1284, 1
    %v1286 = vadd.f32 %v1284, %v1285
    %v1287 = vrot.slane %v1234, 4
    %v1288 = vadd.f32 %v1234, %v1287
    %v1289 = vrot.slane %v1288, 2
    %v1290 = vadd.f32 %v1288, %v1289
    %v1291 = vrot.slane %v1290, 1
    %v1292 = vadd.f32 %v1290, %v1291
    %v1293 = vrot.slane %v1273, 4
    %v1294 = vadd.f32 %v1273, %v1293
    %v1295 = vrot.slane %v1294, 2
    %v1296 = vadd.f32 %v1294, %v1295
    %v1297 = vrot.slane %v1296, 1
    %v1298 = vadd.f32 %v1296, %v1297
    %v1299 = vrot.slane %v1275, 4
    %v1300 = vadd.f32 %v1275, %v1299
    %v1301 = vrot.slane %v1300, 2
    %v1302 = vadd.f32 %v1300, %v1301
    %v1303 = vrot.slane %v1302, 1
    %v1304 = vadd.f32 %v1302, %v1303
    %v1305 = vmul.f32 %v1286, %v714
    %v1306 = vmul.f32 %v1292, %v714
    %v1307 = vmul.f32 %v1298, %v714
    %v1308 = vmul.f32 %v1304, %v714
    %v1309 = vsub.f32 %v1232, %v1305
    %v1310 = vsub.f32 %v1234, %v1306
    %v1311 = vsub.f32 %v1273, %v1307
    %v1312 = vsub.f32 %v1275, %v1308
    %v1313 = vmul.f32 %v1309, %v1309
    %v1314 = vmul.f32 %v1310, %v1310
    %v1315 = vmul.f32 %v1311, %v1311
    %v1316 = vmul.f32 %v1312, %v1312
    %v1317 = vrot.slane %v1313, 4
    %v1318 = vadd.f32 %v1313, %v1317
    %v1319 = vrot.slane %v1318, 2
    %v1320 = vadd.f32 %v1318, %v1319
    %v1321 = vrot.slane %v1320, 1
    %v1322 = vadd.f32 %v1320, %v1321
    %v1323 = vrot.slane %v1314, 4
    %v1324 = vadd.f32 %v1314, %v1323
    %v1325 = vrot.slane %v1324, 2
    %v1326 = vadd.f32 %v1324, %v1325
    %v1327 = vrot.slane %v1326, 1
    %v1328 = vadd.f32 %v1326, %v1327
    %v1329 = vrot.slane %v1315, 4
    %v1330 = vadd.f32 %v1315, %v1329
    %v1331 = vrot.slane %v1330, 2
    %v1332 = vadd.f32 %v1330, %v1331
    %v1333 = vrot.slane %v1332, 1
    %v1334 = vadd.f32 %v1332, %v1333
    %v1335 = vrot.slane %v1316, 4
    %v1336 = vadd.f32 %v1316, %v1335
    %v1337 = vrot.slane %v1336, 2
    %v1338 = vadd.f32 %v1336, %v1337
    %v1339 = vrot.slane %v1338, 1
    %v1340 = vadd.f32 %v1338, %v1339
    %v1341 = vmul.f32 %v1322, %v714
    %v1342 = vmul.f32 %v1328, %v714
    %v1343 = vmul.f32 %v1334, %v714
    %v1344 = vmul.f32 %v1340, %v714
    %v1345 = vadd.f32 %v1341, 1e-05
    %v1346 = vadd.f32 %v1342, 1e-05
    %v1347 = vadd.f32 %v1343, 1e-05
    %v1348 = vadd.f32 %v1344, 1e-05
    %v1349 = vrsqrt.pop %v1345
    %v1350 = vrsqrt.pop %v1346
    %v1351 = vrsqrt.pop %v1347
    %v1352 = vrsqrt.pop %v1348
    %v1357 = vcombine.low %v1349, %v1350
    %v1358 = vcombine.low %v1351, %v1352
    %v1360 = vunpack.c.l.s4 1966171168
    %v1361 = vunpack.c.0.s8 %v1360
    %v1362 = vlaneseq
    %v1363 = vshrl.u32 %v1362, 7
    %v1364 = vsub.s32 %v1361, %v1363
    %v1365 = vrot.slane %v1357, %v1364
    %v1367 = vunpack.c.l.s4 1966171168
    %v1368 = vunpack.c.0.s8 %v1367
    %v1369 = vlaneseq
    %v1370 = vshrl.u32 %v1369, 7
    %v1371 = vsub.s32 %v1368, %v1370
    %v1372 = vrot.slane %v1358, %v1371
    %v1373 = vcombine.low %v1365, %v1372
    %v1375 = vunpack.c.l.s4 1966171168
    %v1376 = vunpack.c.0.s8 %v1375
    %v1377 = vlaneseq
    %v1378 = vshrl.u32 %v1377, 7
    %v1379 = vsub.s32 %v1376, %v1378
    %v1380 = vrot.slane %v1373, %v1379
    %v1382 = vmul.f32 %v1279, %v1380
    %v1384 = vlaneseq
    %v1385 = vshrl.u32 %v1384, 7
    %v1386 = vsub.s32 0, %v1385
    %v1387 = vrot.slane %v1382, %v1386
    %v1388 = vlaneseq
    %v1389 = vshrl.u32 %v1388, 7
    %v1390 = vsub.s32 1, %v1389
    %v1391 = vrot.slane %v1382, %v1390
    %v1392 = vlaneseq
    %v1393 = vshrl.u32 %v1392, 7
    %v1394 = vsub.s32 2, %v1393
    %v1395 = vrot.slane %v1382, %v1394
    %v1396 = vlaneseq
    %v1397 = vshrl.u32 %v1396, 7
    %v1398 = vsub.s32 3, %v1397
    %v1399 = vrot.slane %v1382, %v1398
    %v1404 = vmul.f32 %v1305, %v1387
    %v1405 = vmul.f32 %v1306, %v1391
    %v1406 = vmul.f32 %v1307, %v1395
    %v1407 = vmul.f32 %v1308, %v1399
    %v1412 = vcombine.low %v1404, %v1405
    %v1413 = vcombine.low %v1406, %v1407
    %v1415 = vunpack.c.l.s4 1966171168
    %v1416 = vunpack.c.0.s8 %v1415
    %v1417 = vlaneseq
    %v1418 = vshrl.u32 %v1417, 7
    %v1419 = vsub.s32 %v1416, %v1418
    %v1420 = vrot.slane %v1412, %v1419
    %v1422 = vunpack.c.l.s4 1966171168
    %v1423 = vunpack.c.0.s8 %v1422
    %v1424 = vlaneseq
    %v1425 = vshrl.u32 %v1424, 7
    %v1426 = vsub.s32 %v1423, %v1425
    %v1427 = vrot.slane %v1413, %v1426
    %v1428 = vcombine.low %v1420, %v1427
    %v1430 = vunpack.c.l.s4 1966171168
    %v1431 = vunpack.c.0.s8 %v1430
    %v1432 = vlaneseq
    %v1433 = vshrl.u32 %v1432, 7
    %v1434 = vsub.s32 %v1431, %v1433
    %v1435 = vrot.slane %v1428, %v1434
    %v1437 = vsub.f32 %v1280, %v1435
    %v1438 = vmul.f32 %v1232, %v1387
    %v1439 = vmul.f32 %v1234, %v1391
    %v1440 = vmul.f32 %v1273, %v1395
    %v1441 = vmul.f32 %v1275, %v1399
    %v1443 = vlaneseq
    %v1444 = vshrl.u32 %v1443, 7
    %v1445 = vsub.s32 0, %v1444
    %v1446 = vrot.slane %v1437, %v1445
    %v1447 = vlaneseq
    %v1448 = vshrl.u32 %v1447, 7
    %v1449 = vsub.s32 1, %v1448
    %v1450 = vrot.slane %v1437, %v1449
    %v1451 = vlaneseq
    %v1452 = vshrl.u32 %v1451, 7
    %v1453 = vsub.s32 2, %v1452
    %v1454 = vrot.slane %v1437, %v1453
    %v1455 = vlaneseq
    %v1456 = vshrl.u32 %v1455, 7
    %v1457 = vsub.s32 3, %v1456
    %v1458 = vrot.slane %v1437, %v1457
    %v1463 = vadd.f32 %v1438, %v1446
    %v1464 = vadd.f32 %v1439, %v1450
    %v1465 = vadd.f32 %v1440, %v1454
    %v1466 = vadd.f32 %v1441, %v1458
    %vm1467 = vcmp.gt.f32.partialorder %v1463, 0.0
    %vm1468 = vcmp.gt.f32.partialorder %v1464, 0.0
    %vm1469 = vcmp.gt.f32.partialorder %v1465, 0.0
    %vm1470 = vcmp.gt.f32.partialorder %v1466, 0.0
    %v1471 = vmul.f32 %v1463, 0.2
    %v1472 = vmul.f32 %v1464, 0.2
    %v1473 = vmul.f32 %v1465, 0.2
    %v1474 = vmul.f32 %v1466, 0.2
    %v1475 = vsel %vm1467, %v1463, %v1471
    %v1476 = vsel %vm1468, %v1464, %v1472
    %v1477 = vsel %vm1469, %v1465, %v1473
    %v1478 = vsel %vm1470, %v1466, %v1474
    %s1479 = smul.u32 4, 64
    %s1480 = smul.u32 %s1479, 8
    %s1481 = sshll.u32 %s1480, 4
    %1482 = dma.done [#allocation4], %s1481
    %v1483 = vpack.c.bf16 %v1475, %v1475
    %v1484 = vpack.c.bf16 %v1476, %v1476
    %v1485 = vpack.c.bf16 %v1477, %v1477
    %v1486 = vpack.c.bf16 %v1478, %v1478
    %v1487 = vld [vmem:[#allocation2] sm:$0xff]
    %v1488 = vld [vmem:[#allocation2 + $0x8] sm:$0xff]
    %v1489 = vld [vmem:[#allocation2 + $0x10] sm:$0xff]
    %v1490 = vld [vmem:[#allocation2 + $0x18] sm:$0xff]
    %v1491 = vld [vmem:[#allocation2 + $0x20] sm:$0xff]
    %v1492 = vld [vmem:[#allocation2 + $0x28] sm:$0xff]
    %v1493 = vld [vmem:[#allocation2 + $0x30] sm:$0xff]
    %v1494 = vld [vmem:[#allocation2 + $0x38] sm:$0xff]
    %v1495 = vld [vmem:[#allocation2 + $0x40] sm:$0xff]
    %v1496 = vld [vmem:[#allocation2 + $0x48] sm:$0xff]
    %v1497 = vld [vmem:[#allocation2 + $0x50] sm:$0xff]
    %v1498 = vld [vmem:[#allocation2 + $0x58] sm:$0xff]
    %v1499 = vld [vmem:[#allocation2 + $0x60] sm:$0xff]
    %v1500 = vld [vmem:[#allocation2 + $0x68] sm:$0xff]
    %v1501 = vld [vmem:[#allocation2 + $0x70] sm:$0xff]
    %v1502 = vld [vmem:[#allocation2 + $0x78] sm:$0xff]
    %v1503 = vld [vmem:[#allocation2 + $0x80] sm:$0xff]
    %v1504 = vld [vmem:[#allocation2 + $0x88] sm:$0xff]
    %v1505 = vld [vmem:[#allocation2 + $0x90] sm:$0xff]
    %v1506 = vld [vmem:[#allocation2 + $0x98] sm:$0xff]
    %v1507 = vld [vmem:[#allocation2 + $0xa0] sm:$0xff]
    %v1508 = vld [vmem:[#allocation2 + $0xa8] sm:$0xff]
    %v1509 = vld [vmem:[#allocation2 + $0xb0] sm:$0xff]
    %v1510 = vld [vmem:[#allocation2 + $0xb8] sm:$0xff]
    %v1511 = vld [vmem:[#allocation2 + $0xc0] sm:$0xff]
    %v1512 = vld [vmem:[#allocation2 + $0xc8] sm:$0xff]
    %v1513 = vld [vmem:[#allocation2 + $0xd0] sm:$0xff]
    %v1514 = vld [vmem:[#allocation2 + $0xd8] sm:$0xff]
    %v1515 = vld [vmem:[#allocation2 + $0xe0] sm:$0xff]
    %v1516 = vld [vmem:[#allocation2 + $0xe8] sm:$0xff]
    %v1517 = vld [vmem:[#allocation2 + $0xf0] sm:$0xff]
    %v1518 = vld [vmem:[#allocation2 + $0xf8] sm:$0xff]
    %v1519 = vld [vmem:[#allocation2 + $0x100] sm:$0xff]
    %v1520 = vld [vmem:[#allocation2 + $0x108] sm:$0xff]
    %v1521 = vld [vmem:[#allocation2 + $0x110] sm:$0xff]
    %v1522 = vld [vmem:[#allocation2 + $0x118] sm:$0xff]
    %v1523 = vld [vmem:[#allocation2 + $0x120] sm:$0xff]
    %v1524 = vld [vmem:[#allocation2 + $0x128] sm:$0xff]
    %v1525 = vld [vmem:[#allocation2 + $0x130] sm:$0xff]
    %v1526 = vld [vmem:[#allocation2 + $0x138] sm:$0xff]
    %v1527 = vld [vmem:[#allocation2 + $0x140] sm:$0xff]
    %v1528 = vld [vmem:[#allocation2 + $0x148] sm:$0xff]
    %v1529 = vld [vmem:[#allocation2 + $0x150] sm:$0xff]
    %v1530 = vld [vmem:[#allocation2 + $0x158] sm:$0xff]
    %v1531 = vld [vmem:[#allocation2 + $0x160] sm:$0xff]
    %v1532 = vld [vmem:[#allocation2 + $0x168] sm:$0xff]
    %v1533 = vld [vmem:[#allocation2 + $0x170] sm:$0xff]
    %v1534 = vld [vmem:[#allocation2 + $0x178] sm:$0xff]
    %v1535 = vld [vmem:[#allocation2 + $0x180] sm:$0xff]
    %v1536 = vld [vmem:[#allocation2 + $0x188] sm:$0xff]
    %v1537 = vld [vmem:[#allocation2 + $0x190] sm:$0xff]
    %v1538 = vld [vmem:[#allocation2 + $0x198] sm:$0xff]
    %v1539 = vld [vmem:[#allocation2 + $0x1a0] sm:$0xff]
    %v1540 = vld [vmem:[#allocation2 + $0x1a8] sm:$0xff]
    %v1541 = vld [vmem:[#allocation2 + $0x1b0] sm:$0xff]
    %v1542 = vld [vmem:[#allocation2 + $0x1b8] sm:$0xff]
    %v1543 = vld [vmem:[#allocation2 + $0x1c0] sm:$0xff]
    %v1544 = vld [vmem:[#allocation2 + $0x1c8] sm:$0xff]
    %v1545 = vld [vmem:[#allocation2 + $0x1d0] sm:$0xff]
    %v1546 = vld [vmem:[#allocation2 + $0x1d8] sm:$0xff]
    %v1547 = vld [vmem:[#allocation2 + $0x1e0] sm:$0xff]
    %v1548 = vld [vmem:[#allocation2 + $0x1e8] sm:$0xff]
    %v1549 = vld [vmem:[#allocation2 + $0x1f0] sm:$0xff]
    %v1550 = vld [vmem:[#allocation2 + $0x1f8] sm:$0xff]
    %v1551 = vld [vmem:[#allocation2 + $0x200] sm:$0xff]
    %v1552 = vld [vmem:[#allocation2 + $0x208] sm:$0xff]
    %v1553 = vld [vmem:[#allocation2 + $0x210] sm:$0xff]
    %v1554 = vld [vmem:[#allocation2 + $0x218] sm:$0xff]
    %v1555 = vld [vmem:[#allocation2 + $0x220] sm:$0xff]
    %v1556 = vld [vmem:[#allocation2 + $0x228] sm:$0xff]
    %v1557 = vld [vmem:[#allocation2 + $0x230] sm:$0xff]
    %v1558 = vld [vmem:[#allocation2 + $0x238] sm:$0xff]
    %v1559 = vld [vmem:[#allocation2 + $0x240] sm:$0xff]
    %v1560 = vld [vmem:[#allocation2 + $0x248] sm:$0xff]
    %v1561 = vld [vmem:[#allocation2 + $0x250] sm:$0xff]
    %v1562 = vld [vmem:[#allocation2 + $0x258] sm:$0xff]
    %v1563 = vld [vmem:[#allocation2 + $0x260] sm:$0xff]
    %v1564 = vld [vmem:[#allocation2 + $0x268] sm:$0xff]
    %v1565 = vld [vmem:[#allocation2 + $0x270] sm:$0xff]
    %v1566 = vld [vmem:[#allocation2 + $0x278] sm:$0xff]
    %v1567 = vld [vmem:[#allocation2 + $0x280] sm:$0xff]
    %v1568 = vld [vmem:[#allocation2 + $0x288] sm:$0xff]
    %v1569 = vld [vmem:[#allocation2 + $0x290] sm:$0xff]
    %v1570 = vld [vmem:[#allocation2 + $0x298] sm:$0xff]
    %v1571 = vld [vmem:[#allocation2 + $0x2a0] sm:$0xff]
    %v1572 = vld [vmem:[#allocation2 + $0x2a8] sm:$0xff]
    %v1573 = vld [vmem:[#allocation2 + $0x2b0] sm:$0xff]
    %v1574 = vld [vmem:[#allocation2 + $0x2b8] sm:$0xff]
    %v1575 = vld [vmem:[#allocation2 + $0x2c0] sm:$0xff]
    %v1576 = vld [vmem:[#allocation2 + $0x2c8] sm:$0xff]
    %v1577 = vld [vmem:[#allocation2 + $0x2d0] sm:$0xff]
    %v1578 = vld [vmem:[#allocation2 + $0x2d8] sm:$0xff]
    %v1579 = vld [vmem:[#allocation2 + $0x2e0] sm:$0xff]
    %v1580 = vld [vmem:[#allocation2 + $0x2e8] sm:$0xff]
    %v1581 = vld [vmem:[#allocation2 + $0x2f0] sm:$0xff]
    %v1582 = vld [vmem:[#allocation2 + $0x2f8] sm:$0xff]
    %v1583 = vld [vmem:[#allocation2 + $0x300] sm:$0xff]
    %v1584 = vld [vmem:[#allocation2 + $0x308] sm:$0xff]
    %v1585 = vld [vmem:[#allocation2 + $0x310] sm:$0xff]
    %v1586 = vld [vmem:[#allocation2 + $0x318] sm:$0xff]
    %v1587 = vld [vmem:[#allocation2 + $0x320] sm:$0xff]
    %v1588 = vld [vmem:[#allocation2 + $0x328] sm:$0xff]
    %v1589 = vld [vmem:[#allocation2 + $0x330] sm:$0xff]
    %v1590 = vld [vmem:[#allocation2 + $0x338] sm:$0xff]
    %v1591 = vld [vmem:[#allocation2 + $0x340] sm:$0xff]
    %v1592 = vld [vmem:[#allocation2 + $0x348] sm:$0xff]
    %v1593 = vld [vmem:[#allocation2 + $0x350] sm:$0xff]
    %v1594 = vld [vmem:[#allocation2 + $0x358] sm:$0xff]
    %v1595 = vld [vmem:[#allocation2 + $0x360] sm:$0xff]
    %v1596 = vld [vmem:[#allocation2 + $0x368] sm:$0xff]
    %v1597 = vld [vmem:[#allocation2 + $0x370] sm:$0xff]
    %v1598 = vld [vmem:[#allocation2 + $0x378] sm:$0xff]
    %v1599 = vld [vmem:[#allocation2 + $0x380] sm:$0xff]
    %v1600 = vld [vmem:[#allocation2 + $0x388] sm:$0xff]
    %v1601 = vld [vmem:[#allocation2 + $0x390] sm:$0xff]
    %v1602 = vld [vmem:[#allocation2 + $0x398] sm:$0xff]
    %v1603 = vld [vmem:[#allocation2 + $0x3a0] sm:$0xff]
    %v1604 = vld [vmem:[#allocation2 + $0x3a8] sm:$0xff]
    %v1605 = vld [vmem:[#allocation2 + $0x3b0] sm:$0xff]
    %v1606 = vld [vmem:[#allocation2 + $0x3b8] sm:$0xff]
    %v1607 = vld [vmem:[#allocation2 + $0x3c0] sm:$0xff]
    %v1608 = vld [vmem:[#allocation2 + $0x3c8] sm:$0xff]
    %v1609 = vld [vmem:[#allocation2 + $0x3d0] sm:$0xff]
    %v1610 = vld [vmem:[#allocation2 + $0x3d8] sm:$0xff]
    %v1611 = vld [vmem:[#allocation2 + $0x3e0] sm:$0xff]
    %v1612 = vld [vmem:[#allocation2 + $0x3e8] sm:$0xff]
    %v1613 = vld [vmem:[#allocation2 + $0x3f0] sm:$0xff]
    %v1614 = vld [vmem:[#allocation2 + $0x3f8] sm:$0xff]
    %v1615 = vld [vmem:[#allocation2 + $0x400] sm:$0xff]
    %v1616 = vld [vmem:[#allocation2 + $0x408] sm:$0xff]
    %v1617 = vld [vmem:[#allocation2 + $0x410] sm:$0xff]
    %v1618 = vld [vmem:[#allocation2 + $0x418] sm:$0xff]
    %v1619 = vld [vmem:[#allocation2 + $0x420] sm:$0xff]
    %v1620 = vld [vmem:[#allocation2 + $0x428] sm:$0xff]
    %v1621 = vld [vmem:[#allocation2 + $0x430] sm:$0xff]
    %v1622 = vld [vmem:[#allocation2 + $0x438] sm:$0xff]
    %v1623 = vld [vmem:[#allocation2 + $0x440] sm:$0xff]
    %v1624 = vld [vmem:[#allocation2 + $0x448] sm:$0xff]
    %v1625 = vld [vmem:[#allocation2 + $0x450] sm:$0xff]
    %v1626 = vld [vmem:[#allocation2 + $0x458] sm:$0xff]
    %v1627 = vld [vmem:[#allocation2 + $0x460] sm:$0xff]
    %v1628 = vld [vmem:[#allocation2 + $0x468] sm:$0xff]
    %v1629 = vld [vmem:[#allocation2 + $0x470] sm:$0xff]
    %v1630 = vld [vmem:[#allocation2 + $0x478] sm:$0xff]
    %v1631 = vld [vmem:[#allocation2 + $0x480] sm:$0xff]
    %v1632 = vld [vmem:[#allocation2 + $0x488] sm:$0xff]
    %v1633 = vld [vmem:[#allocation2 + $0x490] sm:$0xff]
    %v1634 = vld [vmem:[#allocation2 + $0x498] sm:$0xff]
    %v1635 = vld [vmem:[#allocation2 + $0x4a0] sm:$0xff]
    %v1636 = vld [vmem:[#allocation2 + $0x4a8] sm:$0xff]
    %v1637 = vld [vmem:[#allocation2 + $0x4b0] sm:$0xff]
    %v1638 = vld [vmem:[#allocation2 + $0x4b8] sm:$0xff]
    %v1639 = vld [vmem:[#allocation2 + $0x4c0] sm:$0xff]
    %v1640 = vld [vmem:[#allocation2 + $0x4c8] sm:$0xff]
    %v1641 = vld [vmem:[#allocation2 + $0x4d0] sm:$0xff]
    %v1642 = vld [vmem:[#allocation2 + $0x4d8] sm:$0xff]
    %v1643 = vld [vmem:[#allocation2 + $0x4e0] sm:$0xff]
    %v1644 = vld [vmem:[#allocation2 + $0x4e8] sm:$0xff]
    %v1645 = vld [vmem:[#allocation2 + $0x4f0] sm:$0xff]
    %v1646 = vld [vmem:[#allocation2 + $0x4f8] sm:$0xff]
    %v1647 = vld [vmem:[#allocation2 + $0x500] sm:$0xff]
    %v1648 = vld [vmem:[#allocation2 + $0x508] sm:$0xff]
    %v1649 = vld [vmem:[#allocation2 + $0x510] sm:$0xff]
    %v1650 = vld [vmem:[#allocation2 + $0x518] sm:$0xff]
    %v1651 = vld [vmem:[#allocation2 + $0x520] sm:$0xff]
    %v1652 = vld [vmem:[#allocation2 + $0x528] sm:$0xff]
    %v1653 = vld [vmem:[#allocation2 + $0x530] sm:$0xff]
    %v1654 = vld [vmem:[#allocation2 + $0x538] sm:$0xff]
    %v1655 = vld [vmem:[#allocation2 + $0x540] sm:$0xff]
    %v1656 = vld [vmem:[#allocation2 + $0x548] sm:$0xff]
    %v1657 = vld [vmem:[#allocation2 + $0x550] sm:$0xff]
    %v1658 = vld [vmem:[#allocation2 + $0x558] sm:$0xff]
    %v1659 = vld [vmem:[#allocation2 + $0x560] sm:$0xff]
    %v1660 = vld [vmem:[#allocation2 + $0x568] sm:$0xff]
    %v1661 = vld [vmem:[#allocation2 + $0x570] sm:$0xff]
    %v1662 = vld [vmem:[#allocation2 + $0x578] sm:$0xff]
    %v1663 = vld [vmem:[#allocation2 + $0x580] sm:$0xff]
    %v1664 = vld [vmem:[#allocation2 + $0x588] sm:$0xff]
    %v1665 = vld [vmem:[#allocation2 + $0x590] sm:$0xff]
    %v1666 = vld [vmem:[#allocation2 + $0x598] sm:$0xff]
    %v1667 = vld [vmem:[#allocation2 + $0x5a0] sm:$0xff]
    %v1668 = vld [vmem:[#allocation2 + $0x5a8] sm:$0xff]
    %v1669 = vld [vmem:[#allocation2 + $0x5b0] sm:$0xff]
    %v1670 = vld [vmem:[#allocation2 + $0x5b8] sm:$0xff]
    %v1671 = vld [vmem:[#allocation2 + $0x5c0] sm:$0xff]
    %v1672 = vld [vmem:[#allocation2 + $0x5c8] sm:$0xff]
    %v1673 = vld [vmem:[#allocation2 + $0x5d0] sm:$0xff]
    %v1674 = vld [vmem:[#allocation2 + $0x5d8] sm:$0xff]
    %v1675 = vld [vmem:[#allocation2 + $0x5e0] sm:$0xff]
    %v1676 = vld [vmem:[#allocation2 + $0x5e8] sm:$0xff]
    %v1677 = vld [vmem:[#allocation2 + $0x5f0] sm:$0xff]
    %v1678 = vld [vmem:[#allocation2 + $0x5f8] sm:$0xff]
    %v1679 = vld [vmem:[#allocation2 + $0x600] sm:$0xff]
    %v1680 = vld [vmem:[#allocation2 + $0x608] sm:$0xff]
    %v1681 = vld [vmem:[#allocation2 + $0x610] sm:$0xff]
    %v1682 = vld [vmem:[#allocation2 + $0x618] sm:$0xff]
    %v1683 = vld [vmem:[#allocation2 + $0x620] sm:$0xff]
    %v1684 = vld [vmem:[#allocation2 + $0x628] sm:$0xff]
    %v1685 = vld [vmem:[#allocation2 + $0x630] sm:$0xff]
    %v1686 = vld [vmem:[#allocation2 + $0x638] sm:$0xff]
    %v1687 = vld [vmem:[#allocation2 + $0x640] sm:$0xff]
    %v1688 = vld [vmem:[#allocation2 + $0x648] sm:$0xff]
    %v1689 = vld [vmem:[#allocation2 + $0x650] sm:$0xff]
    %v1690 = vld [vmem:[#allocation2 + $0x658] sm:$0xff]
    %v1691 = vld [vmem:[#allocation2 + $0x660] sm:$0xff]
    %v1692 = vld [vmem:[#allocation2 + $0x668] sm:$0xff]
    %v1693 = vld [vmem:[#allocation2 + $0x670] sm:$0xff]
    %v1694 = vld [vmem:[#allocation2 + $0x678] sm:$0xff]
    %v1695 = vld [vmem:[#allocation2 + $0x680] sm:$0xff]
    %v1696 = vld [vmem:[#allocation2 + $0x688] sm:$0xff]
    %v1697 = vld [vmem:[#allocation2 + $0x690] sm:$0xff]
    %v1698 = vld [vmem:[#allocation2 + $0x698] sm:$0xff]
    %v1699 = vld [vmem:[#allocation2 + $0x6a0] sm:$0xff]
    %v1700 = vld [vmem:[#allocation2 + $0x6a8] sm:$0xff]
    %v1701 = vld [vmem:[#allocation2 + $0x6b0] sm:$0xff]
    %v1702 = vld [vmem:[#allocation2 + $0x6b8] sm:$0xff]
    %v1703 = vld [vmem:[#allocation2 + $0x6c0] sm:$0xff]
    %v1704 = vld [vmem:[#allocation2 + $0x6c8] sm:$0xff]
    %v1705 = vld [vmem:[#allocation2 + $0x6d0] sm:$0xff]
    %v1706 = vld [vmem:[#allocation2 + $0x6d8] sm:$0xff]
    %v1707 = vld [vmem:[#allocation2 + $0x6e0] sm:$0xff]
    %v1708 = vld [vmem:[#allocation2 + $0x6e8] sm:$0xff]
    %v1709 = vld [vmem:[#allocation2 + $0x6f0] sm:$0xff]
    %v1710 = vld [vmem:[#allocation2 + $0x6f8] sm:$0xff]
    %v1711 = vld [vmem:[#allocation2 + $0x700] sm:$0xff]
    %v1712 = vld [vmem:[#allocation2 + $0x708] sm:$0xff]
    %v1713 = vld [vmem:[#allocation2 + $0x710] sm:$0xff]
    %v1714 = vld [vmem:[#allocation2 + $0x718] sm:$0xff]
    %v1715 = vld [vmem:[#allocation2 + $0x720] sm:$0xff]
    %v1716 = vld [vmem:[#allocation2 + $0x728] sm:$0xff]
    %v1717 = vld [vmem:[#allocation2 + $0x730] sm:$0xff]
    %v1718 = vld [vmem:[#allocation2 + $0x738] sm:$0xff]
    %v1719 = vld [vmem:[#allocation2 + $0x740] sm:$0xff]
    %v1720 = vld [vmem:[#allocation2 + $0x748] sm:$0xff]
    %v1721 = vld [vmem:[#allocation2 + $0x750] sm:$0xff]
    %v1722 = vld [vmem:[#allocation2 + $0x758] sm:$0xff]
    %v1723 = vld [vmem:[#allocation2 + $0x760] sm:$0xff]
    %v1724 = vld [vmem:[#allocation2 + $0x768] sm:$0xff]
    %v1725 = vld [vmem:[#allocation2 + $0x770] sm:$0xff]
    %v1726 = vld [vmem:[#allocation2 + $0x778] sm:$0xff]
    %v1727 = vld [vmem:[#allocation2 + $0x780] sm:$0xff]
    %v1728 = vld [vmem:[#allocation2 + $0x788] sm:$0xff]
    %v1729 = vld [vmem:[#allocation2 + $0x790] sm:$0xff]
    %v1730 = vld [vmem:[#allocation2 + $0x798] sm:$0xff]
    %v1731 = vld [vmem:[#allocation2 + $0x7a0] sm:$0xff]
    %v1732 = vld [vmem:[#allocation2 + $0x7a8] sm:$0xff]
    %v1733 = vld [vmem:[#allocation2 + $0x7b0] sm:$0xff]
    %v1734 = vld [vmem:[#allocation2 + $0x7b8] sm:$0xff]
    %v1735 = vld [vmem:[#allocation2 + $0x7c0] sm:$0xff]
    %v1736 = vld [vmem:[#allocation2 + $0x7c8] sm:$0xff]
    %v1737 = vld [vmem:[#allocation2 + $0x7d0] sm:$0xff]
    %v1738 = vld [vmem:[#allocation2 + $0x7d8] sm:$0xff]
    %v1739 = vld [vmem:[#allocation2 + $0x7e0] sm:$0xff]
    %v1740 = vld [vmem:[#allocation2 + $0x7e8] sm:$0xff]
    %v1741 = vld [vmem:[#allocation2 + $0x7f0] sm:$0xff]
    %v1742 = vld [vmem:[#allocation2 + $0x7f8] sm:$0xff]
    %1743 = vmatprep.subr.bf16.mxu0 %v1488
    %1744 = vmatpush1.bf16.msra.mxu0 %v1487
    %1745 = vmatprep.subr.bf16.mxu0 %v1496
    %1746 = vmatpush1.bf16.msra.mxu0 %v1495
    %1747 = vmatprep.subr.bf16.mxu0 %v1504
    %1748 = vmatpush1.bf16.msra.mxu0 %v1503
    %1749 = vmatprep.subr.bf16.mxu0 %v1512
    %1750 = vmatpush1.bf16.msra.mxu0 %v1511
    %1751 = vmatprep.subr.bf16.mxu0 %v1520
    %1752 = vmatpush1.bf16.msra.mxu0 %v1519
    %1753 = vmatprep.subr.bf16.mxu0 %v1528
    %1754 = vmatpush1.bf16.msra.mxu0 %v1527
    %1755 = vmatprep.subr.bf16.mxu0 %v1536
    %1756 = vmatpush1.bf16.msra.mxu0 %v1535
    %1757 = vmatprep.subr.bf16.mxu0 %v1544
    %1758 = vmatpush1.bf16.msra.mxu0 %v1543
    %1759 = vmatprep.subr.bf16.mxu0 %v1552
    %1760 = vmatpush1.bf16.msra.mxu0 %v1551
    %1761 = vmatprep.subr.bf16.mxu0 %v1560
    %1762 = vmatpush1.bf16.msra.mxu0 %v1559
    %1763 = vmatprep.subr.bf16.mxu0 %v1568
    %1764 = vmatpush1.bf16.msra.mxu0 %v1567
    %1765 = vmatprep.subr.bf16.mxu0 %v1576
    %1766 = vmatpush1.bf16.msra.mxu0 %v1575
    %1767 = vmatprep.subr.bf16.mxu0 %v1584
    %1768 = vmatpush1.bf16.msra.mxu0 %v1583
    %1769 = vmatprep.subr.bf16.mxu0 %v1592
    %1770 = vmatpush1.bf16.msra.mxu0 %v1591
    %1771 = vmatprep.subr.bf16.mxu0 %v1600
    %1772 = vmatpush1.bf16.msra.mxu0 %v1599
    %1773 = vmatprep.subr.bf16.mxu0 %v1608
    %1774 = vmatpush1.bf16.msra.mxu0 %v1607
    %1775 = vmatprep.mubr.bf16.mxu0 %v1484
    %1776 = vmatmul.mubr.bf16.gmra.mrb[0].mxu0 %v1483
    %v1777 = vpop.f32.mrb[0].mxu0
    %v1778 = vadd.f32 0.0, %v1777
    %v1779 = vpop.f32.mrb[0].mxu0
    %v1780 = vadd.f32 0.0, %v1779
    %v1781 = vpop.f32.mrb[0].mxu0
    %v1782 = vpop.f32.mrb[0].mxu0
    %1783 = vdwg.mxu0
    %1784 = vmatprep.subr.bf16.mxu0 %v1616
    %1785 = vmatpush1.bf16.msra.mxu0 %v1615
    %1786 = vmatprep.subr.bf16.mxu0 %v1624
    %1787 = vmatpush1.bf16.msra.mxu0 %v1623
    %1788 = vmatprep.subr.bf16.mxu0 %v1632
    %1789 = vmatpush1.bf16.msra.mxu0 %v1631
    %1790 = vmatprep.subr.bf16.mxu0 %v1640
    %1791 = vmatpush1.bf16.msra.mxu0 %v1639
    %1792 = vmatprep.subr.bf16.mxu0 %v1648
    %1793 = vmatpush1.bf16.msra.mxu0 %v1647
    %1794 = vmatprep.subr.bf16.mxu0 %v1656
    %1795 = vmatpush1.bf16.msra.mxu0 %v1655
    %1796 = vmatprep.subr.bf16.mxu0 %v1664
    %1797 = vmatpush1.bf16.msra.mxu0 %v1663
    %1798 = vmatprep.subr.bf16.mxu0 %v1672
    %1799 = vmatpush1.bf16.msra.mxu0 %v1671
    %1800 = vmatprep.subr.bf16.mxu0 %v1680
    %1801 = vmatpush1.bf16.msra.mxu0 %v1679
    %1802 = vmatprep.subr.bf16.mxu0 %v1688
    %1803 = vmatpush1.bf16.msra.mxu0 %v1687
    %1804 = vmatprep.subr.bf16.mxu0 %v1696
    %1805 = vmatpush1.bf16.msra.mxu0 %v1695
    %1806 = vmatprep.subr.bf16.mxu0 %v1704
    %1807 = vmatpush1.bf16.msra.mxu0 %v1703
    %1808 = vmatprep.subr.bf16.mxu0 %v1712
    %1809 = vmatpush1.bf16.msra.mxu0 %v1711
    %1810 = vmatprep.subr.bf16.mxu0 %v1720
    %1811 = vmatpush1.bf16.msra.mxu0 %v1719
    %1812 = vmatprep.subr.bf16.mxu0 %v1728
    %1813 = vmatpush1.bf16.msra.mxu0 %v1727
    %1814 = vmatprep.subr.bf16.mxu0 %v1736
    %1815 = vmatpush1.bf16.msra.mxu0 %v1735
    %1816 = vmatprep.mubr.bf16.mxu0 %v1486
    %1817 = vmatmul.mubr.bf16.gmra.mrb[0].mxu0 %v1485
    %v1818 = vpop.f32.mrb[0].mxu0
    %v1819 = vadd.f32 %v1778, %v1818
    %v1820 = vpop.f32.mrb[0].mxu0
    %v1821 = vadd.f32 %v1780, %v1820
    %v1822 = vpop.f32.mrb[0].mxu0
    %v1823 = vpop.f32.mrb[0].mxu0
    %1824 = vdwg.mxu0
    %1825 = vmatprep.subr.bf16.mxu0 %v1490
    %1826 = vmatpush1.bf16.msra.mxu0 %v1489
    %1827 = vmatprep.subr.bf16.mxu0 %v1498
    %1828 = vmatpush1.bf16.msra.mxu0 %v1497
    %1829 = vmatprep.subr.bf16.mxu0 %v1506
    %1830 = vmatpush1.bf16.msra.mxu0 %v1505
    %1831 = vmatprep.subr.bf16.mxu0 %v1514
    %1832 = vmatpush1.bf16.msra.mxu0 %v1513
    %1833 = vmatprep.subr.bf16.mxu0 %v1522
    %1834 = vmatpush1.bf16.msra.mxu0 %v1521
    %1835 = vmatprep.subr.bf16.mxu0 %v1530
    %1836 = vmatpush1.bf16.msra.mxu0 %v1529
    %1837 = vmatprep.subr.bf16.mxu0 %v1538
    %1838 = vmatpush1.bf16.msra.mxu0 %v1537
    %1839 = vmatprep.subr.bf16.mxu0 %v1546
    %1840 = vmatpush1.bf16.msra.mxu0 %v1545
    %1841 = vmatprep.subr.bf16.mxu0 %v1554
    %1842 = vmatpush1.bf16.msra.mxu0 %v1553
    %1843 = vmatprep.subr.bf16.mxu0 %v1562
    %1844 = vmatpush1.bf16.msra.mxu0 %v1561
    %1845 = vmatprep.subr.bf16.mxu0 %v1570
    %1846 = vmatpush1.bf16.msra.mxu0 %v1569
    %1847 = vmatprep.subr.bf16.mxu0 %v1578
    %1848 = vmatpush1.bf16.msra.mxu0 %v1577
    %1849 = vmatprep.subr.bf16.mxu0 %v1586
    %1850 = vmatpush1.bf16.msra.mxu0 %v1585
    %1851 = vmatprep.subr.bf16.mxu0 %v1594
    %1852 = vmatpush1.bf16.msra.mxu0 %v1593
    %1853 = vmatprep.subr.bf16.mxu0 %v1602
    %1854 = vmatpush1.bf16.msra.mxu0 %v1601
    %1855 = vmatprep.subr.bf16.mxu0 %v1610
    %1856 = vmatpush1.bf16.msra.mxu0 %v1609
    %1857 = vmatprep.mubr.bf16.mxu0 %v1484
    %1858 = vmatmul.mubr.bf16.gmra.mrb[0].mxu0 %v1483
    %v1859 = vpop.f32.mrb[0].mxu0
    %v1860 = vadd.f32 0.0, %v1859
    %v1861 = vpop.f32.mrb[0].mxu0
    %v1862 = vadd.f32 0.0, %v1861
    %v1863 = vpop.f32.mrb[0].mxu0
    %v1864 = vpop.f32.mrb[0].mxu0
    %1865 = vdwg.mxu0
    %1866 = vmatprep.subr.bf16.mxu0 %v1618
    %1867 = vmatpush1.bf16.msra.mxu0 %v1617
    %1868 = vmatprep.subr.bf16.mxu0 %v1626
    %1869 = vmatpush1.bf16.msra.mxu0 %v1625
    %1870 = vmatprep.subr.bf16.mxu0 %v1634
    %1871 = vmatpush1.bf16.msra.mxu0 %v1633
    %1872 = vmatprep.subr.bf16.mxu0 %v1642
    %1873 = vmatpush1.bf16.msra.mxu0 %v1641
    %1874 = vmatprep.subr.bf16.mxu0 %v1650
    %1875 = vmatpush1.bf16.msra.mxu0 %v1649
    %1876 = vmatprep.subr.bf16.mxu0 %v1658
    %1877 = vmatpush1.bf16.msra.mxu0 %v1657
    %1878 = vmatprep.subr.bf16.mxu0 %v1666
    %1879 = vmatpush1.bf16.msra.mxu0 %v1665
    %1880 = vmatprep.subr.bf16.mxu0 %v1674
    %1881 = vmatpush1.bf16.msra.mxu0 %v1673
    %1882 = vmatprep.subr.bf16.mxu0 %v1682
    %1883 = vmatpush1.bf16.msra.mxu0 %v1681
    %1884 = vmatprep.subr.bf16.mxu0 %v1690
    %1885 = vmatpush1.bf16.msra.mxu0 %v1689
    %1886 = vmatprep.subr.bf16.mxu0 %v1698
    %1887 = vmatpush1.bf16.msra.mxu0 %v1697
    %1888 = vmatprep.subr.bf16.mxu0 %v1706
    %1889 = vmatpush1.bf16.msra.mxu0 %v1705
    %1890 = vmatprep.subr.bf16.mxu0 %v1714
    %1891 = vmatpush1.bf16.msra.mxu0 %v1713
    %1892 = vmatprep.subr.bf16.mxu0 %v1722
    %1893 = vmatpush1.bf16.msra.mxu0 %v1721
    %1894 = vmatprep.subr.bf16.mxu0 %v1730
    %1895 = vmatpush1.bf16.msra.mxu0 %v1729
    %1896 = vmatprep.subr.bf16.mxu0 %v1738
    %1897 = vmatpush1.bf16.msra.mxu0 %v1737
    %1898 = vmatprep.mubr.bf16.mxu0 %v1486
    %1899 = vmatmul.mubr.bf16.gmra.mrb[0].mxu0 %v1485
    %v1900 = vpop.f32.mrb[0].mxu0
    %v1901 = vadd.f32 %v1860, %v1900
    %v1902 = vpop.f32.mrb[0].mxu0
    %v1903 = vadd.f32 %v1862, %v1902
    %v1904 = vpop.f32.mrb[0].mxu0
    %v1905 = vpop.f32.mrb[0].mxu0
    %1906 = vdwg.mxu0
    %1907 = vmatprep.subr.bf16.mxu0 %v1492
    %1908 = vmatpush1.bf16.msra.mxu0 %v1491
    %1909 = vmatprep.subr.bf16.mxu0 %v1500
    %1910 = vmatpush1.bf16.msra.mxu0 %v1499
    %1911 = vmatprep.subr.bf16.mxu0 %v1508
    %1912 = vmatpush1.bf16.msra.mxu0 %v1507
    %1913 = vmatprep.subr.bf16.mxu0 %v1516
    %1914 = vmatpush1.bf16.msra.mxu0 %v1515
    %1915 = vmatprep.subr.bf16.mxu0 %v1524
    %1916 = vmatpush1.bf16.msra.mxu0 %v1523
    %1917 = vmatprep.subr.bf16.mxu0 %v1532
    %1918 = vmatpush1.bf16.msra.mxu0 %v1531
    %1919 = vmatprep.subr.bf16.mxu0 %v1540
    %1920 = vmatpush1.bf16.msra.mxu0 %v1539
    %1921 = vmatprep.subr.bf16.mxu0 %v1548
    %1922 = vmatpush1.bf16.msra.mxu0 %v1547
    %1923 = vmatprep.subr.bf16.mxu0 %v1556
    %1924 = vmatpush1.bf16.msra.mxu0 %v1555
    %1925 = vmatprep.subr.bf16.mxu0 %v1564
    %1926 = vmatpush1.bf16.msra.mxu0 %v1563
    %1927 = vmatprep.subr.bf16.mxu0 %v1572
    %1928 = vmatpush1.bf16.msra.mxu0 %v1571
    %1929 = vmatprep.subr.bf16.mxu0 %v1580
    %1930 = vmatpush1.bf16.msra.mxu0 %v1579
    %1931 = vmatprep.subr.bf16.mxu0 %v1588
    %1932 = vmatpush1.bf16.msra.mxu0 %v1587
    %1933 = vmatprep.subr.bf16.mxu0 %v1596
    %1934 = vmatpush1.bf16.msra.mxu0 %v1595
    %1935 = vmatprep.subr.bf16.mxu0 %v1604
    %1936 = vmatpush1.bf16.msra.mxu0 %v1603
    %1937 = vmatprep.subr.bf16.mxu0 %v1612
    %1938 = vmatpush1.bf16.msra.mxu0 %v1611
    %1939 = vmatprep.mubr.bf16.mxu0 %v1484
    %1940 = vmatmul.mubr.bf16.gmra.mrb[0].mxu0 %v1483
    %v1941 = vpop.f32.mrb[0].mxu0
    %v1942 = vadd.f32 0.0, %v1941
    %v1943 = vpop.f32.mrb[0].mxu0
    %v1944 = vadd.f32 0.0, %v1943
    %v1945 = vpop.f32.mrb[0].mxu0
    %v1946 = vpop.f32.mrb[0].mxu0
    %1947 = vdwg.mxu0
    %1948 = vmatprep.subr.bf16.mxu0 %v1620
    %1949 = vmatpush1.bf16.msra.mxu0 %v1619
    %1950 = vmatprep.subr.bf16.mxu0 %v1628
    %1951 = vmatpush1.bf16.msra.mxu0 %v1627
    %1952 = vmatprep.subr.bf16.mxu0 %v1636
    %1953 = vmatpush1.bf16.msra.mxu0 %v1635
    %1954 = vmatprep.subr.bf16.mxu0 %v1644
    %1955 = vmatpush1.bf16.msra.mxu0 %v1643
    %1956 = vmatprep.subr.bf16.mxu0 %v1652
    %1957 = vmatpush1.bf16.msra.mxu0 %v1651
    %1958 = vmatprep.subr.bf16.mxu0 %v1660
    %1959 = vmatpush1.bf16.msra.mxu0 %v1659
    %1960 = vmatprep.subr.bf16.mxu0 %v1668
    %1961 = vmatpush1.bf16.msra.mxu0 %v1667
    %1962 = vmatprep.subr.bf16.mxu0 %v1676
    %1963 = vmatpush1.bf16.msra.mxu0 %v1675
    %1964 = vmatprep.subr.bf16.mxu0 %v1684
    %1965 = vmatpush1.bf16.msra.mxu0 %v1683
    %1966 = vmatprep.subr.bf16.mxu0 %v1692
    %1967 = vmatpush1.bf16.msra.mxu0 %v1691
    %1968 = vmatprep.subr.bf16.mxu0 %v1700
    %1969 = vmatpush1.bf16.msra.mxu0 %v1699
    %1970 = vmatprep.subr.bf16.mxu0 %v1708
    %1971 = vmatpush1.bf16.msra.mxu0 %v1707
    %1972 = vmatprep.subr.bf16.mxu0 %v1716
    %1973 = vmatpush1.bf16.msra.mxu0 %v1715
    %1974 = vmatprep.subr.bf16.mxu0 %v1724
    %1975 = vmatpush1.bf16.msra.mxu0 %v1723
    %1976 = vmatprep.subr.bf16.mxu0 %v1732
    %1977 = vmatpush1.bf16.msra.mxu0 %v1731
    %1978 = vmatprep.subr.bf16.mxu0 %v1740
    %1979 = vmatpush1.bf16.msra.mxu0 %v1739
    %1980 = vmatprep.mubr.bf16.mxu0 %v1486
    %1981 = vmatmul.mubr.bf16.gmra.mrb[0].mxu0 %v1485
    %v1982 = vpop.f32.mrb[0].mxu0
    %v1983 = vadd.f32 %v1942, %v1982
    %v1984 = vpop.f32.mrb[0].mxu0
    %v1985 = vadd.f32 %v1944, %v1984
    %v1986 = vpop.f32.mrb[0].mxu0
    %v1987 = vpop.f32.mrb[0].mxu0
    %1988 = vdwg.mxu0
    %1989 = vmatprep.subr.bf16.mxu0 %v1494
    %1990 = vmatpush1.bf16.msra.mxu0 %v1493
    %1991 = vmatprep.subr.bf16.mxu0 %v1502
    %1992 = vmatpush1.bf16.msra.mxu0 %v1501
    %1993 = vmatprep.subr.bf16.mxu0 %v1510
    %1994 = vmatpush1.bf16.msra.mxu0 %v1509
    %1995 = vmatprep.subr.bf16.mxu0 %v1518
    %1996 = vmatpush1.bf16.msra.mxu0 %v1517
    %1997 = vmatprep.subr.bf16.mxu0 %v1526
    %1998 = vmatpush1.bf16.msra.mxu0 %v1525
    %1999 = vmatprep.subr.bf16.mxu0 %v1534
    %2000 = vmatpush1.bf16.msra.mxu0 %v1533
    %2001 = vmatprep.subr.bf16.mxu0 %v1542
    %2002 = vmatpush1.bf16.msra.mxu0 %v1541
    %2003 = vmatprep.subr.bf16.mxu0 %v1550
    %2004 = vmatpush1.bf16.msra.mxu0 %v1549
    %2005 = vmatprep.subr.bf16.mxu0 %v1558
    %2006 = vmatpush1.bf16.msra.mxu0 %v1557
    %2007 = vmatprep.subr.bf16.mxu0 %v1566
    %2008 = vmatpush1.bf16.msra.mxu0 %v1565
    %2009 = vmatprep.subr.bf16.mxu0 %v1574
    %2010 = vmatpush1.bf16.msra.mxu0 %v1573
    %2011 = vmatprep.subr.bf16.mxu0 %v1582
    %2012 = vmatpush1.bf16.msra.mxu0 %v1581
    %2013 = vmatprep.subr.bf16.mxu0 %v1590
    %2014 = vmatpush1.bf16.msra.mxu0 %v1589
    %2015 = vmatprep.subr.bf16.mxu0 %v1598
    %2016 = vmatpush1.bf16.msra.mxu0 %v1597
    %2017 = vmatprep.subr.bf16.mxu0 %v1606
    %2018 = vmatpush1.bf16.msra.mxu0 %v1605
    %2019 = vmatprep.subr.bf16.mxu0 %v1614
    %2020 = vmatpush1.bf16.msra.mxu0 %v1613
    %2021 = vmatprep.mubr.bf16.mxu0 %v1484
    %2022 = vmatmul.mubr.bf16.gmra.mrb[0].mxu0 %v1483
    %v2023 = vpop.f32.mrb[0].mxu0
    %v2024 = vadd.f32 0.0, %v2023
    %v2025 = vpop.f32.mrb[0].mxu0
    %v2026 = vadd.f32 0.0, %v2025
    %v2027 = vpop.f32.mrb[0].mxu0
    %v2028 = vpop.f32.mrb[0].mxu0
    %2029 = vdwg.mxu0
    %2030 = vmatprep.subr.bf16.mxu0 %v1622
    %2031 = vmatpush1.bf16.msra.mxu0 %v1621
    %2032 = vmatprep.subr.bf16.mxu0 %v1630
    %2033 = vmatpush1.bf16.msra.mxu0 %v1629
    %2034 = vmatprep.subr.bf16.mxu0 %v1638
    %2035 = vmatpush1.bf16.msra.mxu0 %v1637
    %2036 = vmatprep.subr.bf16.mxu0 %v1646
    %2037 = vmatpush1.bf16.msra.mxu0 %v1645
    %2038 = vmatprep.subr.bf16.mxu0 %v1654
    %2039 = vmatpush1.bf16.msra.mxu0 %v1653
    %2040 = vmatprep.subr.bf16.mxu0 %v1662
    %2041 = vmatpush1.bf16.msra.mxu0 %v1661
    %2042 = vmatprep.subr.bf16.mxu0 %v1670
    %2043 = vmatpush1.bf16.msra.mxu0 %v1669
    %2044 = vmatprep.subr.bf16.mxu0 %v1678
    %2045 = vmatpush1.bf16.msra.mxu0 %v1677
    %2046 = vmatprep.subr.bf16.mxu0 %v1686
    %2047 = vmatpush1.bf16.msra.mxu0 %v1685
    %2048 = vmatprep.subr.bf16.mxu0 %v1694
    %2049 = vmatpush1.bf16.msra.mxu0 %v1693
    %2050 = vmatprep.subr.bf16.mxu0 %v1702
    %2051 = vmatpush1.bf16.msra.mxu0 %v1701
    %2052 = vmatprep.subr.bf16.mxu0 %v1710
    %2053 = vmatpush1.bf16.msra.mxu0 %v1709
    %2054 = vmatprep.subr.bf16.mxu0 %v1718
    %2055 = vmatpush1.bf16.msra.mxu0 %v1717
    %2056 = vmatprep.subr.bf16.mxu0 %v1726
    %2057 = vmatpush1.bf16.msra.mxu0 %v1725
    %2058 = vmatprep.subr.bf16.mxu0 %v1734
    %2059 = vmatpush1.bf16.msra.mxu0 %v1733
    %2060 = vmatprep.subr.bf16.mxu0 %v1742
    %2061 = vmatpush1.bf16.msra.mxu0 %v1741
    %2062 = vmatprep.mubr.bf16.mxu0 %v1486
    %2063 = vmatmul.mubr.bf16.gmra.mrb[0].mxu0 %v1485
    %v2064 = vpop.f32.mrb[0].mxu0
    %v2065 = vadd.f32 %v2024, %v2064
    %v2066 = vpop.f32.mrb[0].mxu0
    %v2067 = vadd.f32 %v2026, %v2066
    %v2068 = vpop.f32.mrb[0].mxu0
    %v2069 = vpop.f32.mrb[0].mxu0
    %2070 = vdwg.mxu0
    %v2071 = vld [vmem:[#allocation19] sm:$0xff]
    %v2072 = vld [vmem:[#allocation21] sm:$0xff]
    %v2073 = vrot.slane %v1819, 4
    %v2074 = vadd.f32 %v1819, %v2073
    %v2075 = vrot.slane %v2074, 2
    %v2076 = vadd.f32 %v2074, %v2075
    %v2077 = vrot.slane %v2076, 1
    %v2078 = vadd.f32 %v2076, %v2077
    %v2079 = vrot.slane %v1821, 4
    %v2080 = vadd.f32 %v1821, %v2079
    %v2081 = vrot.slane %v2080, 2
    %v2082 = vadd.f32 %v2080, %v2081
    %v2083 = vrot.slane %v2082, 1
    %v2084 = vadd.f32 %v2082, %v2083
    %v2085 = vrot.slane %v1901, 4
    %v2086 = vadd.f32 %v1901, %v2085
    %v2087 = vrot.slane %v2086, 2
    %v2088 = vadd.f32 %v2086, %v2087
    %v2089 = vrot.slane %v2088, 1
    %v2090 = vadd.f32 %v2088, %v2089
    %v2091 = vrot.slane %v1903, 4
    %v2092 = vadd.f32 %v1903, %v2091
    %v2093 = vrot.slane %v2092, 2
    %v2094 = vadd.f32 %v2092, %v2093
    %v2095 = vrot.slane %v2094, 1
    %v2096 = vadd.f32 %v2094, %v2095
    %v2097 = vrot.slane %v1983, 4
    %v2098 = vadd.f32 %v1983, %v2097
    %v2099 = vrot.slane %v2098, 2
    %v2100 = vadd.f32 %v2098, %v2099
    %v2101 = vrot.slane %v2100, 1
    %v2102 = vadd.f32 %v2100, %v2101
    %v2103 = vrot.slane %v1985, 4
    %v2104 = vadd.f32 %v1985, %v2103
    %v2105 = vrot.slane %v2104, 2
    %v2106 = vadd.f32 %v2104, %v2105
    %v2107 = vrot.slane %v2106, 1
    %v2108 = vadd.f32 %v2106, %v2107
    %v2109 = vrot.slane %v2065, 4
    %v2110 = vadd.f32 %v2065, %v2109
    %v2111 = vrot.slane %v2110, 2
    %v2112 = vadd.f32 %v2110, %v2111
    %v2113 = vrot.slane %v2112, 1
    %v2114 = vadd.f32 %v2112, %v2113
    %v2115 = vrot.slane %v2067, 4
    %v2116 = vadd.f32 %v2067, %v2115
    %v2117 = vrot.slane %v2116, 2
    %v2118 = vadd.f32 %v2116, %v2117
    %v2119 = vrot.slane %v2118, 1
    %v2120 = vadd.f32 %v2118, %v2119
    %v2121 = vmul.f32 %v2078, %v714
    %v2122 = vmul.f32 %v2084, %v714
    %v2123 = vmul.f32 %v2090, %v714
    %v2124 = vmul.f32 %v2096, %v714
    %v2125 = vmul.f32 %v2102, %v714
    %v2126 = vmul.f32 %v2108, %v714
    %v2127 = vmul.f32 %v2114, %v714
    %v2128 = vmul.f32 %v2120, %v714
    %v2129 = vsub.f32 %v1819, %v2121
    %v2130 = vsub.f32 %v1821, %v2122
    %v2131 = vsub.f32 %v1901, %v2123
    %v2132 = vsub.f32 %v1903, %v2124
    %v2133 = vsub.f32 %v1983, %v2125
    %v2134 = vsub.f32 %v1985, %v2126
    %v2135 = vsub.f32 %v2065, %v2127
    %v2136 = vsub.f32 %v2067, %v2128
    %v2137 = vmul.f32 %v2129, %v2129
    %v2138 = vmul.f32 %v2130, %v2130
    %v2139 = vmul.f32 %v2131, %v2131
    %v2140 = vmul.f32 %v2132, %v2132
    %v2141 = vmul.f32 %v2133, %v2133
    %v2142 = vmul.f32 %v2134, %v2134
    %v2143 = vmul.f32 %v2135, %v2135
    %v2144 = vmul.f32 %v2136, %v2136
    %v2145 = vrot.slane %v2137, 4
    %v2146 = vadd.f32 %v2137, %v2145
    %v2147 = vrot.slane %v2146, 2
    %v2148 = vadd.f32 %v2146, %v2147
    %v2149 = vrot.slane %v2148, 1
    %v2150 = vadd.f32 %v2148, %v2149
    %v2151 = vrot.slane %v2138, 4
    %v2152 = vadd.f32 %v2138, %v2151
    %v2153 = vrot.slane %v2152, 2
    %v2154 = vadd.f32 %v2152, %v2153
    %v2155 = vrot.slane %v2154, 1
    %v2156 = vadd.f32 %v2154, %v2155
    %v2157 = vrot.slane %v2139, 4
    %v2158 = vadd.f32 %v2139, %v2157
    %v2159 = vrot.slane %v2158, 2
    %v2160 = vadd.f32 %v2158, %v2159
    %v2161 = vrot.slane %v2160, 1
    %v2162 = vadd.f32 %v2160, %v2161
    %v2163 = vrot.slane %v2140, 4
    %v2164 = vadd.f32 %v2140, %v2163
    %v2165 = vrot.slane %v2164, 2
    %v2166 = vadd.f32 %v2164, %v2165
    %v2167 = vrot.slane %v2166, 1
    %v2168 = vadd.f32 %v2166, %v2167
    %v2169 = vrot.slane %v2141, 4
    %v2170 = vadd.f32 %v2141, %v2169
    %v2171 = vrot.slane %v2170, 2
    %v2172 = vadd.f32 %v2170, %v2171
    %v2173 = vrot.slane %v2172, 1
    %v2174 = vadd.f32 %v2172, %v2173
    %v2175 = vrot.slane %v2142, 4
    %v2176 = vadd.f32 %v2142, %v2175
    %v2177 = vrot.slane %v2176, 2
    %v2178 = vadd.f32 %v2176, %v2177
    %v2179 = vrot.slane %v2178, 1
    %v2180 = vadd.f32 %v2178, %v2179
    %v2181 = vrot.slane %v2143, 4
    %v2182 = vadd.f32 %v2143, %v2181
    %v2183 = vrot.slane %v2182, 2
    %v2184 = vadd.f32 %v2182, %v2183
    %v2185 = vrot.slane %v2184, 1
    %v2186 = vadd.f32 %v2184, %v2185
    %v2187 = vrot.slane %v2144, 4
    %v2188 = vadd.f32 %v2144, %v2187
    %v2189 = vrot.slane %v2188, 2
    %v2190 = vadd.f32 %v2188, %v2189
    %v2191 = vrot.slane %v2190, 1
    %v2192 = vadd.f32 %v2190, %v2191
    %v2193 = vmul.f32 %v2150, %v714
    %v2194 = vmul.f32 %v2156, %v714
    %v2195 = vmul.f32 %v2162, %v714
    %v2196 = vmul.f32 %v2168, %v714
    %v2197 = vmul.f32 %v2174, %v714
    %v2198 = vmul.f32 %v2180, %v714
    %v2199 = vmul.f32 %v2186, %v714
    %v2200 = vmul.f32 %v2192, %v714
    %v2201 = vadd.f32 %v2193, 1e-05
    %v2202 = vadd.f32 %v2194, 1e-05
    %v2203 = vadd.f32 %v2195, 1e-05
    %v2204 = vadd.f32 %v2196, 1e-05
    %v2205 = vadd.f32 %v2197, 1e-05
    %v2206 = vadd.f32 %v2198, 1e-05
    %v2207 = vadd.f32 %v2199, 1e-05
    %v2208 = vadd.f32 %v2200, 1e-05
    %v2209 = vrsqrt.pop %v2201
    %v2210 = vrsqrt.pop %v2202
    %v2211 = vrsqrt.pop %v2203
    %v2212 = vrsqrt.pop %v2204
    %v2213 = vrsqrt.pop %v2205
    %v2214 = vrsqrt.pop %v2206
    %v2215 = vrsqrt.pop %v2207
    %v2216 = vrsqrt.pop %v2208
    %v2225 = vcombine.low %v2209, %v2210
    %v2226 = vcombine.low %v2211, %v2212
    %v2227 = vcombine.low %v2213, %v2214
    %v2228 = vcombine.low %v2215, %v2216
    %v2230 = vunpack.c.l.s4 1966171168
    %v2231 = vunpack.c.0.s8 %v2230
    %v2232 = vlaneseq
    %v2233 = vshrl.u32 %v2232, 7
    %v2234 = vsub.s32 %v2231, %v2233
    %v2235 = vrot.slane %v2225, %v2234
    %v2237 = vunpack.c.l.s4 1966171168
    %v2238 = vunpack.c.0.s8 %v2237
    %v2239 = vlaneseq
    %v2240 = vshrl.u32 %v2239, 7
    %v2241 = vsub.s32 %v2238, %v2240
    %v2242 = vrot.slane %v2226, %v2241
    %v2244 = vunpack.c.l.s4 1966171168
    %v2245 = vunpack.c.0.s8 %v2244
    %v2246 = vlaneseq
    %v2247 = vshrl.u32 %v2246, 7
    %v2248 = vsub.s32 %v2245, %v2247
    %v2249 = vrot.slane %v2227, %v2248
    %v2251 = vunpack.c.l.s4 1966171168
    %v2252 = vunpack.c.0.s8 %v2251
    %v2253 = vlaneseq
    %v2254 = vshrl.u32 %v2253, 7
    %v2255 = vsub.s32 %v2252, %v2254
    %v2256 = vrot.slane %v2228, %v2255
    %v2257 = vcombine.low %v2235, %v2242
    %v2258 = vcombine.low %v2249, %v2256
    %v2260 = vunpack.c.l.s4 1966171168
    %v2261 = vunpack.c.0.s8 %v2260
    %v2262 = vlaneseq
    %v2263 = vshrl.u32 %v2262, 7
    %v2264 = vsub.s32 %v2261, %v2263
    %v2265 = vrot.slane %v2257, %v2264
    %v2267 = vunpack.c.l.s4 1966171168
    %v2268 = vunpack.c.0.s8 %v2267
    %v2269 = vlaneseq
    %v2270 = vshrl.u32 %v2269, 7
    %v2271 = vsub.s32 %v2268, %v2270
    %v2272 = vrot.slane %v2258, %v2271
    %v2273 = vcombine.low %v2265, %v2272
    %v2275 = vmul.f32 %v2071, %v2273
    %v2277 = vlaneseq
    %v2278 = vshrl.u32 %v2277, 7
    %v2279 = vsub.s32 0, %v2278
    %v2280 = vrot.slane %v2275, %v2279
    %v2281 = vlaneseq
    %v2282 = vshrl.u32 %v2281, 7
    %v2283 = vsub.s32 1, %v2282
    %v2284 = vrot.slane %v2275, %v2283
    %v2285 = vlaneseq
    %v2286 = vshrl.u32 %v2285, 7
    %v2287 = vsub.s32 2, %v2286
    %v2288 = vrot.slane %v2275, %v2287
    %v2289 = vlaneseq
    %v2290 = vshrl.u32 %v2289, 7
    %v2291 = vsub.s32 3, %v2290
    %v2292 = vrot.slane %v2275, %v2291
    %v2293 = vlaneseq
    %v2294 = vshrl.u32 %v2293, 7
    %v2295 = vsub.s32 4, %v2294
    %v2296 = vrot.slane %v2275, %v2295
    %v2297 = vlaneseq
    %v2298 = vshrl.u32 %v2297, 7
    %v2299 = vsub.s32 5, %v2298
    %v2300 = vrot.slane %v2275, %v2299
    %v2301 = vlaneseq
    %v2302 = vshrl.u32 %v2301, 7
    %v2303 = vsub.s32 6, %v2302
    %v2304 = vrot.slane %v2275, %v2303
    %v2305 = vlaneseq
    %v2306 = vshrl.u32 %v2305, 7
    %v2307 = vsub.s32 7, %v2306
    %v2308 = vrot.slane %v2275, %v2307
    %v2317 = vmul.f32 %v2121, %v2280
    %v2318 = vmul.f32 %v2122, %v2284
    %v2319 = vmul.f32 %v2123, %v2288
    %v2320 = vmul.f32 %v2124, %v2292
    %v2321 = vmul.f32 %v2125, %v2296
    %v2322 = vmul.f32 %v2126, %v2300
    %v2323 = vmul.f32 %v2127, %v2304
    %v2324 = vmul.f32 %v2128, %v2308
    %v2333 = vcombine.low %v2317, %v2318
    %v2334 = vcombine.low %v2319, %v2320
    %v2335 = vcombine.low %v2321, %v2322
    %v2336 = vcombine.low %v2323, %v2324
    %v2338 = vunpack.c.l.s4 1966171168
    %v2339 = vunpack.c.0.s8 %v2338
    %v2340 = vlaneseq
    %v2341 = vshrl.u32 %v2340, 7
    %v2342 = vsub.s32 %v2339, %v2341
    %v2343 = vrot.slane %v2333, %v2342
    %v2345 = vunpack.c.l.s4 1966171168
    %v2346 = vunpack.c.0.s8 %v2345
    %v2347 = vlaneseq
    %v2348 = vshrl.u32 %v2347, 7
    %v2349 = vsub.s32 %v2346, %v2348
    %v2350 = vrot.slane %v2334, %v2349
    %v2352 = vunpack.c.l.s4 1966171168
    %v2353 = vunpack.c.0.s8 %v2352
    %v2354 = vlaneseq
    %v2355 = vshrl.u32 %v2354, 7
    %v2356 = vsub.s32 %v2353, %v2355
    %v2357 = vrot.slane %v2335, %v2356
    %v2359 = vunpack.c.l.s4 1966171168
    %v2360 = vunpack.c.0.s8 %v2359
    %v2361 = vlaneseq
    %v2362 = vshrl.u32 %v2361, 7
    %v2363 = vsub.s32 %v2360, %v2362
    %v2364 = vrot.slane %v2336, %v2363
    %v2365 = vcombine.low %v2343, %v2350
    %v2366 = vcombine.low %v2357, %v2364
    %v2368 = vunpack.c.l.s4 1966171168
    %v2369 = vunpack.c.0.s8 %v2368
    %v2370 = vlaneseq
    %v2371 = vshrl.u32 %v2370, 7
    %v2372 = vsub.s32 %v2369, %v2371
    %v2373 = vrot.slane %v2365, %v2372
    %v2375 = vunpack.c.l.s4 1966171168
    %v2376 = vunpack.c.0.s8 %v2375
    %v2377 = vlaneseq
    %v2378 = vshrl.u32 %v2377, 7
    %v2379 = vsub.s32 %v2376, %v2378
    %v2380 = vrot.slane %v2366, %v2379
    %v2381 = vcombine.low %v2373, %v2380
    %v2383 = vsub.f32 %v2072, %v2381
    %v2384 = vmul.f32 %v1819, %v2280
    %v2385 = vmul.f32 %v1821, %v2284
    %v2386 = vmul.f32 %v1901, %v2288
    %v2387 = vmul.f32 %v1903, %v2292
    %v2388 = vmul.f32 %v1983, %v2296
    %v2389 = vmul.f32 %v1985, %v2300
    %v2390 = vmul.f32 %v2065, %v2304
    %v2391 = vmul.f32 %v2067, %v2308
    %v2393 = vlaneseq
    %v2394 = vshrl.u32 %v2393, 7
    %v2395 = vsub.s32 0, %v2394
    %v2396 = vrot.slane %v2383, %v2395
    %v2397 = vlaneseq
    %v2398 = vshrl.u32 %v2397, 7
    %v2399 = vsub.s32 1, %v2398
    %v2400 = vrot.slane %v2383, %v2399
    %v2401 = vlaneseq
    %v2402 = vshrl.u32 %v2401, 7
    %v2403 = vsub.s32 2, %v2402
    %v2404 = vrot.slane %v2383, %v2403
    %v2405 = vlaneseq
    %v2406 = vshrl.u32 %v2405, 7
    %v2407 = vsub.s32 3, %v2406
    %v2408 = vrot.slane %v2383, %v2407
    %v2409 = vlaneseq
    %v2410 = vshrl.u32 %v2409, 7
    %v2411 = vsub.s32 4, %v2410
    %v2412 = vrot.slane %v2383, %v2411
    %v2413 = vlaneseq
    %v2414 = vshrl.u32 %v2413, 7
    %v2415 = vsub.s32 5, %v2414
    %v2416 = vrot.slane %v2383, %v2415
    %v2417 = vlaneseq
    %v2418 = vshrl.u32 %v2417, 7
    %v2419 = vsub.s32 6, %v2418
    %v2420 = vrot.slane %v2383, %v2419
    %v2421 = vlaneseq
    %v2422 = vshrl.u32 %v2421, 7
    %v2423 = vsub.s32 7, %v2422
    %v2424 = vrot.slane %v2383, %v2423
    %v2433 = vadd.f32 %v2384, %v2396
    %v2434 = vadd.f32 %v2385, %v2400
    %v2435 = vadd.f32 %v2386, %v2404
    %v2436 = vadd.f32 %v2387, %v2408
    %v2437 = vadd.f32 %v2388, %v2412
    %v2438 = vadd.f32 %v2389, %v2416
    %v2439 = vadd.f32 %v2390, %v2420
    %v2440 = vadd.f32 %v2391, %v2424
    %vm2441 = vcmp.gt.f32.partialorder %v2433, 0.0
    %vm2442 = vcmp.gt.f32.partialorder %v2434, 0.0
    %vm2443 = vcmp.gt.f32.partialorder %v2435, 0.0
    %vm2444 = vcmp.gt.f32.partialorder %v2436, 0.0
    %vm2445 = vcmp.gt.f32.partialorder %v2437, 0.0
    %vm2446 = vcmp.gt.f32.partialorder %v2438, 0.0
    %vm2447 = vcmp.gt.f32.partialorder %v2439, 0.0
    %vm2448 = vcmp.gt.f32.partialorder %v2440, 0.0
    %v2449 = vmul.f32 %v2433, 0.2
    %v2450 = vmul.f32 %v2434, 0.2
    %v2451 = vmul.f32 %v2435, 0.2
    %v2452 = vmul.f32 %v2436, 0.2
    %v2453 = vmul.f32 %v2437, 0.2
    %v2454 = vmul.f32 %v2438, 0.2
    %v2455 = vmul.f32 %v2439, 0.2
    %v2456 = vmul.f32 %v2440, 0.2
    %v2457 = vsel %vm2441, %v2433, %v2449
    %v2458 = vsel %vm2442, %v2434, %v2450
    %v2459 = vsel %vm2443, %v2435, %v2451
    %v2460 = vsel %vm2444, %v2436, %v2452
    %v2461 = vsel %vm2445, %v2437, %v2453
    %v2462 = vsel %vm2446, %v2438, %v2454
    %v2463 = vsel %vm2447, %v2439, %v2455
    %v2464 = vsel %vm2448, %v2440, %v2456
    %v2465 = vpack.c.bf16 %v2457, %v2457
    %v2466 = vpack.c.bf16 %v2458, %v2458
    %v2467 = vpack.c.bf16 %v2459, %v2459
    %v2468 = vpack.c.bf16 %v2460, %v2460
    %v2469 = vpack.c.bf16 %v2461, %v2461
    %v2470 = vpack.c.bf16 %v2462, %v2462
    %v2471 = vpack.c.bf16 %v2463, %v2463
    %v2472 = vpack.c.bf16 %v2464, %v2464
    %s2473 = smul.u32 4, 128
    %s2474 = smul.u32 %s2473, 2
    %s2475 = sshll.u32 %s2474, 4
    %2476 = dma.done %s229, %s2475
    %v2477 = vld [vmem:[#allocation3] sm:$0xff]
    %v2478 = vld [vmem:[#allocation3 + $0x8] sm:$0xff]
    %v2479 = vld [vmem:[#allocation3 + $0x38] sm:$0xff]
    %v2480 = vld [vmem:[#allocation3 + $0x40] sm:$0xff]
    %v2481 = vld [vmem:[#allocation3 + $0x70] sm:$0xff]
    %v2482 = vld [vmem:[#allocation3 + $0x78] sm:$0xff]
    %v2483 = vld [vmem:[#allocation3 + $0xa8] sm:$0xff]
    %v2484 = vld [vmem:[#allocation3 + $0xb0] sm:$0xff]
    %v2485 = vld [vmem:[#allocation3 + $0xe0] sm:$0xff]
    %v2486 = vld [vmem:[#allocation3 + $0xe8] sm:$0xff]
    %v2487 = vld [vmem:[#allocation3 + $0x118] sm:$0xff]
    %v2488 = vld [vmem:[#allocation3 + $0x120] sm:$0xff]
    %v2489 = vld [vmem:[#allocation3 + $0x150] sm:$0xff]
    %v2490 = vld [vmem:[#allocation3 + $0x158] sm:$0xff]
    %v2491 = vld [vmem:[#allocation3 + $0x188] sm:$0xff]
    %v2492 = vld [vmem:[#allocation3 + $0x190] sm:$0xff]
    %v2493 = vld [vmem:[#allocation3 + $0x1c0] sm:$0xff]
    %v2494 = vld [vmem:[#allocation3 + $0x1c8] sm:$0xff]
    %v2495 = vld [vmem:[#allocation3 + $0x1f8] sm:$0xff]
    %v2496 = vld [vmem:[#allocation3 + $0x200] sm:$0xff]
    %v2497 = vld [vmem:[#allocation3 + $0x230] sm:$0xff]
    %v2498 = vld [vmem:[#allocation3 + $0x238] sm:$0xff]
    %v2499 = vld [vmem:[#allocation3 + $0x268] sm:$0xff]
    %v2500 = vld [vmem:[#allocation3 + $0x270] sm:$0xff]
    %v2501 = vld [vmem:[#allocation3 + $0x2a0] sm:$0xff]
    %v2502 = vld [vmem:[#allocation3 + $0x2a8] sm:$0xff]
    %v2503 = vld [vmem:[#allocation3 + $0x2d8] sm:$0xff]
    %v2504 = vld [vmem:[#allocation3 + $0x2e0] sm:$0xff]
    %v2505 = vld [vmem:[#allocation3 + $0x310] sm:$0xff]
    %v2506 = vld [vmem:[#allocation3 + $0x318] sm:$0xff]
    %v2507 = vld [vmem:[#allocation3 + $0x348] sm:$0xff]
    %v2508 = vld [vmem:[#allocation3 + $0x350] sm:$0xff]
    %v2509 = vld [vmem:[#allocation3 + $0x380] sm:$0xff]
    %v2510 = vld [vmem:[#allocation3 + $0x388] sm:$0xff]
    %v2511 = vld [vmem:[#allocation3 + $0x3b8] sm:$0xff]
    %v2512 = vld [vmem:[#allocation3 + $0x3c0] sm:$0xff]
    %v2513 = vld [vmem:[#allocation3 + $0x3f0] sm:$0xff]
    %v2514 = vld [vmem:[#allocation3 + $0x3f8] sm:$0xff]
    %v2515 = vld [vmem:[#allocation3 + $0x428] sm:$0xff]
    %v2516 = vld [vmem:[#allocation3 + $0x430] sm:$0xff]
    %v2517 = vld [vmem:[#allocation3 + $0x460] sm:$0xff]
    %v2518 = vld [vmem:[#allocation3 + $0x468] sm:$0xff]
    %v2519 = vld [vmem:[#allocation3 + $0x498] sm:$0xff]
    %v2520 = vld [vmem:[#allocation3 + $0x4a0] sm:$0xff]
    %v2521 = vld [vmem:[#allocation3 + $0x4d0] sm:$0xff]
    %v2522 = vld [vmem:[#allocation3 + $0x4d8] sm:$0xff]
    %v2523 = vld [vmem:[#allocation3 + $0x508] sm:$0xff]
    %v2524 = vld [vmem:[#allocation3 + $0x510] sm:$0xff]
    %v2525 = vld [vmem:[#allocation3 + $0x540] sm:$0xff]
    %v2526 = vld [vmem:[#allocation3 + $0x548] sm:$0xff]
    %v2527 = vld [vmem:[#allocation3 + $0x578] sm:$0xff]
    %v2528 = vld [vmem:[#allocation3 + $0x580] sm:$0xff]
    %v2529 = vld [vmem:[#allocation3 + $0x5b0] sm:$0xff]
    %v2530 = vld [vmem:[#allocation3 + $0x5b8] sm:$0xff]
    %v2531 = vld [vmem:[#allocation3 + $0x5e8] sm:$0xff]
    %v2532 = vld [vmem:[#allocation3 + $0x5f0] sm:$0xff]
    %v2533 = vld [vmem:[#allocation3 + $0x620] sm:$0xff]
    %v2534 = vld [vmem:[#allocation3 + $0x628] sm:$0xff]
    %v2535 = vld [vmem:[#allocation3 + $0x658] sm:$0xff]
    %v2536 = vld [vmem:[#allocation3 + $0x660] sm:$0xff]
    %v2537 = vld [vmem:[#allocation3 + $0x690] sm:$0xff]
    %v2538 = vld [vmem:[#allocation3 + $0x698] sm:$0xff]
    %v2539 = vld [vmem:[#allocation3 + $0x6c8] sm:$0xff]
    %v2540 = vld [vmem:[#allocation3 + $0x6d0] sm:$0xff]
    %v2541 = vld [vmem:[#allocation3 + $0x700] sm:$0xff]
    %v2542 = vld [vmem:[#allocation3 + $0x708] sm:$0xff]
    %v2543 = vld [vmem:[#allocation3 + $0x738] sm:$0xff]
    %v2544 = vld [vmem:[#allocation3 + $0x740] sm:$0xff]
    %v2545 = vld [vmem:[#allocation3 + $0x770] sm:$0xff]
    %v2546 = vld [vmem:[#allocation3 + $0x778] sm:$0xff]
    %v2547 = vld [vmem:[#allocation3 + $0x7a8] sm:$0xff]
    %v2548 = vld [vmem:[#allocation3 + $0x7b0] sm:$0xff]
    %v2549 = vld [vmem:[#allocation3 + $0x7e0] sm:$0xff]
    %v2550 = vld [vmem:[#allocation3 + $0x7e8] sm:$0xff]
    %v2551 = vld [vmem:[#allocation3 + $0x818] sm:$0xff]
    %v2552 = vld [vmem:[#allocation3 + $0x820] sm:$0xff]
    %v2553 = vld [vmem:[#allocation3 + $0x850] sm:$0xff]
    %v2554 = vld [vmem:[#allocation3 + $0x858] sm:$0xff]
    %v2555 = vld [vmem:[#allocation3 + $0x888] sm:$0xff]
    %v2556 = vld [vmem:[#allocation3 + $0x890] sm:$0xff]
    %v2557 = vld [vmem:[#allocation3 + $0x8c0] sm:$0xff]
    %v2558 = vld [vmem:[#allocation3 + $0x8c8] sm:$0xff]
    %v2559 = vld [vmem:[#allocation3 + $0x8f8] sm:$0xff]
    %v2560 = vld [vmem:[#allocation3 + $0x900] sm:$0xff]
    %v2561 = vld [vmem:[#allocation3 + $0x930] sm:$0xff]
    %v2562 = vld [vmem:[#allocation3 + $0x938] sm:$0xff]
    %v2563 = vld [vmem:[#allocation3 + $0x968] sm:$0xff]
    %v2564 = vld [vmem:[#allocation3 + $0x970] sm:$0xff]
    %v2565 = vld [vmem:[#allocation3 + $0x9a0] sm:$0xff]
    %v2566 = vld [vmem:[#allocation3 + $0x9a8] sm:$0xff]
    %v2567 = vld [vmem:[#allocation3 + $0x9d8] sm:$0xff]
    %v2568 = vld [vmem:[#allocation3 + $0x9e0] sm:$0xff]
    %v2569 = vld [vmem:[#allocation3 + $0xa10] sm:$0xff]
    %v2570 = vld [vmem:[#allocation3 + $0xa18] sm:$0xff]
    %v2571 = vld [vmem:[#allocation3 + $0xa48] sm:$0xff]
    %v2572 = vld [vmem:[#allocation3 + $0xa50] sm:$0xff]
    %v2573 = vld [vmem:[#allocation3 + $0xa80] sm:$0xff]
    %v2574 = vld [vmem:[#allocation3 + $0xa88] sm:$0xff]
    %v2575 = vld [vmem:[#allocation3 + $0xab8] sm:$0xff]
    %v2576 = vld [vmem:[#allocation3 + $0xac0] sm:$0xff]
    %v2577 = vld [vmem:[#allocation3 + $0xaf0] sm:$0xff]
    %v2578 = vld [vmem:[#allocation3 + $0xaf8] sm:$0xff]
    %v2579 = vld [vmem:[#allocation3 + $0xb28] sm:$0xff]
    %v2580 = vld [vmem:[#allocation3 + $0xb30] sm:$0xff]
    %v2581 = vld [vmem:[#allocation3 + $0xb60] sm:$0xff]
    %v2582 = vld [vmem:[#allocation3 + $0xb68] sm:$0xff]
    %v2583 = vld [vmem:[#allocation3 + $0xb98] sm:$0xff]
    %v2584 = vld [vmem:[#allocation3 + $0xba0] sm:$0xff]
    %v2585 = vld [vmem:[#allocation3 + $0xbd0] sm:$0xff]
    %v2586 = vld [vmem:[#allocation3 + $0xbd8] sm:$0xff]
    %v2587 = vld [vmem:[#allocation3 + $0xc08] sm:$0xff]
    %v2588 = vld [vmem:[#allocation3 + $0xc10] sm:$0xff]
    %v2589 = vld [vmem:[#allocation3 + $0xc40] sm:$0xff]
    %v2590 = vld [vmem:[#allocation3 + $0xc48] sm:$0xff]
    %v2591 = vld [vmem:[#allocation3 + $0xc78] sm:$0xff]
    %v2592 = vld [vmem:[#allocation3 + $0xc80] sm:$0xff]
    %v2593 = vld [vmem:[#allocation3 + $0xcb0] sm:$0xff]
    %v2594 = vld [vmem:[#allocation3 + $0xcb8] sm:$0xff]
    %v2595 = vld [vmem:[#allocation3 + $0xce8] sm:$0xff]
    %v2596 = vld [vmem:[#allocation3 + $0xcf0] sm:$0xff]
    %v2597 = vld [vmem:[#allocation3 + $0xd20] sm:$0xff]
    %v2598 = vld [vmem:[#allocation3 + $0xd28] sm:$0xff]
    %v2599 = vld [vmem:[#allocation3 + $0xd58] sm:$0xff]
    %v2600 = vld [vmem:[#allocation3 + $0xd60] sm:$0xff]
    %v2601 = vld [vmem:[#allocation3 + $0xd90] sm:$0xff]
    %v2602 = vld [vmem:[#allocation3 + $0xd98] sm:$0xff]
    %v2603 = vld [vmem:[#allocation3 + $0xdc8] sm:$0xff]
    %v2604 = vld [vmem:[#allocation3 + $0xdd0] sm:$0xff]
    %v2605 = vld [vmem:[#allocation22] sm:$0x3]
    %v2607 = vlaneseq
    %v2608 = vshrl.u32 %v2607, 7
    %v2609 = vsub.s32 0, %v2608
    %v2610 = vrot.slane %v2605, %v2609
    %v2611 = vlaneseq
    %v2612 = vshrl.u32 %v2611, 7
    %v2613 = vsub.s32 1, %v2612
    %v2614 = vrot.slane %v2605, %v2613
    %2617 = vmatprep.subr.bf16.mxu0 %v2478
    %2618 = vmatpush1.bf16.msra.mxu0 %v2477
    %2619 = vmatprep.subr.bf16.mxu0 %v2480
    %2620 = vmatpush1.bf16.msra.mxu0 %v2479
    %2621 = vmatprep.subr.bf16.mxu0 %v2482
    %2622 = vmatpush1.bf16.msra.mxu0 %v2481
    %2623 = vmatprep.subr.bf16.mxu0 %v2484
    %2624 = vmatpush1.bf16.msra.mxu0 %v2483
    %2625 = vmatprep.subr.bf16.mxu0 %v2486
    %2626 = vmatpush1.bf16.msra.mxu0 %v2485
    %2627 = vmatprep.subr.bf16.mxu0 %v2488
    %2628 = vmatpush1.bf16.msra.mxu0 %v2487
    %2629 = vmatprep.subr.bf16.mxu0 %v2490
    %2630 = vmatpush1.bf16.msra.mxu0 %v2489
    %2631 = vmatprep.subr.bf16.mxu0 %v2492
    %2632 = vmatpush1.bf16.msra.mxu0 %v2491
    %2633 = vmatprep.subr.bf16.mxu0 %v2494
    %2634 = vmatpush1.bf16.msra.mxu0 %v2493
    %2635 = vmatprep.subr.bf16.mxu0 %v2496
    %2636 = vmatpush1.bf16.msra.mxu0 %v2495
    %2637 = vmatprep.subr.bf16.mxu0 %v2498
    %2638 = vmatpush1.bf16.msra.mxu0 %v2497
    %2639 = vmatprep.subr.bf16.mxu0 %v2500
    %2640 = vmatpush1.bf16.msra.mxu0 %v2499
    %2641 = vmatprep.subr.bf16.mxu0 %v2502
    %2642 = vmatpush1.bf16.msra.mxu0 %v2501
    %2643 = vmatprep.subr.bf16.mxu0 %v2504
    %2644 = vmatpush1.bf16.msra.mxu0 %v2503
    %2645 = vmatprep.subr.bf16.mxu0 %v2506
    %2646 = vmatpush1.bf16.msra.mxu0 %v2505
    %2647 = vmatprep.subr.bf16.mxu0 %v2508
    %2648 = vmatpush1.bf16.msra.mxu0 %v2507
    %2649 = vmatprep.mubr.bf16.mxu0 %v2466
    %2650 = vmatmul.mubr.bf16.gmra.mrb[0].mxu0 %v2465
    %v2651 = vpop.f32.mrb[0].mxu0
    %v2652 = vadd.f32 %v2610, %v2651
    %v2653 = vpop.f32.mrb[0].mxu0
    %v2654 = vadd.f32 %v2614, %v2653
    %v2655 = vpop.f32.mrb[0].mxu0
    %v2656 = vpop.f32.mrb[0].mxu0
    %2657 = vdwg.mxu0
    %2658 = vmatprep.subr.bf16.mxu0 %v2510
    %2659 = vmatpush1.bf16.msra.mxu0 %v2509
    %2660 = vmatprep.subr.bf16.mxu0 %v2512
    %2661 = vmatpush1.bf16.msra.mxu0 %v2511
    %2662 = vmatprep.subr.bf16.mxu0 %v2514
    %2663 = vmatpush1.bf16.msra.mxu0 %v2513
    %2664 = vmatprep.subr.bf16.mxu0 %v2516
    %2665 = vmatpush1.bf16.msra.mxu0 %v2515
    %2666 = vmatprep.subr.bf16.mxu0 %v2518
    %2667 = vmatpush1.bf16.msra.mxu0 %v2517
    %2668 = vmatprep.subr.bf16.mxu0 %v2520
    %2669 = vmatpush1.bf16.msra.mxu0 %v2519
    %2670 = vmatprep.subr.bf16.mxu0 %v2522
    %2671 = vmatpush1.bf16.msra.mxu0 %v2521
    %2672 = vmatprep.subr.bf16.mxu0 %v2524
    %2673 = vmatpush1.bf16.msra.mxu0 %v2523
    %2674 = vmatprep.subr.bf16.mxu0 %v2526
    %2675 = vmatpush1.bf16.msra.mxu0 %v2525
    %2676 = vmatprep.subr.bf16.mxu0 %v2528
    %2677 = vmatpush1.bf16.msra.mxu0 %v2527
    %2678 = vmatprep.subr.bf16.mxu0 %v2530
    %2679 = vmatpush1.bf16.msra.mxu0 %v2529
    %2680 = vmatprep.subr.bf16.mxu0 %v2532
    %2681 = vmatpush1.bf16.msra.mxu0 %v2531
    %2682 = vmatprep.subr.bf16.mxu0 %v2534
    %2683 = vmatpush1.bf16.msra.mxu0 %v2533
    %2684 = vmatprep.subr.bf16.mxu0 %v2536
    %2685 = vmatpush1.bf16.msra.mxu0 %v2535
    %2686 = vmatprep.subr.bf16.mxu0 %v2538
    %2687 = vmatpush1.bf16.msra.mxu0 %v2537
    %2688 = vmatprep.subr.bf16.mxu0 %v2540
    %2689 = vmatpush1.bf16.msra.mxu0 %v2539
    %2690 = vmatprep.mubr.bf16.mxu0 %v2468
    %2691 = vmatmul.mubr.bf16.gmra.mrb[0].mxu0 %v2467
    %v2692 = vpop.f32.mrb[0].mxu0
    %v2693 = vadd.f32 %v2652, %v2692
    %v2694 = vpop.f32.mrb[0].mxu0
    %v2695 = vadd.f32 %v2654, %v2694
    %v2696 = vpop.f32.mrb[0].mxu0
    %v2697 = vpop.f32.mrb[0].mxu0
    %2698 = vdwg.mxu0
    %2699 = vmatprep.subr.bf16.mxu0 %v2542
    %2700 = vmatpush1.bf16.msra.mxu0 %v2541
    %2701 = vmatprep.subr.bf16.mxu0 %v2544
    %2702 = vmatpush1.bf16.msra.mxu0 %v2543
    %2703 = vmatprep.subr.bf16.mxu0 %v2546
    %2704 = vmatpush1.bf16.msra.mxu0 %v2545
    %2705 = vmatprep.subr.bf16.mxu0 %v2548
    %2706 = vmatpush1.bf16.msra.mxu0 %v2547
    %2707 = vmatprep.subr.bf16.mxu0 %v2550
    %2708 = vmatpush1.bf16.msra.mxu0 %v2549
    %2709 = vmatprep.subr.bf16.mxu0 %v2552
    %2710 = vmatpush1.bf16.msra.mxu0 %v2551
    %2711 = vmatprep.subr.bf16.mxu0 %v2554
    %2712 = vmatpush1.bf16.msra.mxu0 %v2553
    %2713 = vmatprep.subr.bf16.mxu0 %v2556
    %2714 = vmatpush1.bf16.msra.mxu0 %v2555
    %2715 = vmatprep.subr.bf16.mxu0 %v2558
    %2716 = vmatpush1.bf16.msra.mxu0 %v2557
    %2717 = vmatprep.subr.bf16.mxu0 %v2560
    %2718 = vmatpush1.bf16.msra.mxu0 %v2559
    %2719 = vmatprep.subr.bf16.mxu0 %v2562
    %2720 = vmatpush1.bf16.msra.mxu0 %v2561
    %2721 = vmatprep.subr.bf16.mxu0 %v2564
    %2722 = vmatpush1.bf16.msra.mxu0 %v2563
    %2723 = vmatprep.subr.bf16.mxu0 %v2566
    %2724 = vmatpush1.bf16.msra.mxu0 %v2565
    %2725 = vmatprep.subr.bf16.mxu0 %v2568
    %2726 = vmatpush1.bf16.msra.mxu0 %v2567
    %2727 = vmatprep.subr.bf16.mxu0 %v2570
    %2728 = vmatpush1.bf16.msra.mxu0 %v2569
    %2729 = vmatprep.subr.bf16.mxu0 %v2572
    %2730 = vmatpush1.bf16.msra.mxu0 %v2571
    %2731 = vmatprep.mubr.bf16.mxu0 %v2470
    %2732 = vmatmul.mubr.bf16.gmra.mrb[0].mxu0 %v2469
    %v2733 = vpop.f32.mrb[0].mxu0
    %v2734 = vadd.f32 %v2693, %v2733
    %v2735 = vpop.f32.mrb[0].mxu0
    %v2736 = vadd.f32 %v2695, %v2735
    %v2737 = vpop.f32.mrb[0].mxu0
    %v2738 = vpop.f32.mrb[0].mxu0
    %2739 = vdwg.mxu0
    %2740 = vmatprep.subr.bf16.mxu0 %v2574
    %2741 = vmatpush1.bf16.msra.mxu0 %v2573
    %2742 = vmatprep.subr.bf16.mxu0 %v2576
    %2743 = vmatpush1.bf16.msra.mxu0 %v2575
    %2744 = vmatprep.subr.bf16.mxu0 %v2578
    %2745 = vmatpush1.bf16.msra.mxu0 %v2577
    %2746 = vmatprep.subr.bf16.mxu0 %v2580
    %2747 = vmatpush1.bf16.msra.mxu0 %v2579
    %2748 = vmatprep.subr.bf16.mxu0 %v2582
    %2749 = vmatpush1.bf16.msra.mxu0 %v2581
    %2750 = vmatprep.subr.bf16.mxu0 %v2584
    %2751 = vmatpush1.bf16.msra.mxu0 %v2583
    %2752 = vmatprep.subr.bf16.mxu0 %v2586
    %2753 = vmatpush1.bf16.msra.mxu0 %v2585
    %2754 = vmatprep.subr.bf16.mxu0 %v2588
    %2755 = vmatpush1.bf16.msra.mxu0 %v2587
    %2756 = vmatprep.subr.bf16.mxu0 %v2590
    %2757 = vmatpush1.bf16.msra.mxu0 %v2589
    %2758 = vmatprep.subr.bf16.mxu0 %v2592
    %2759 = vmatpush1.bf16.msra.mxu0 %v2591
    %2760 = vmatprep.subr.bf16.mxu0 %v2594
    %2761 = vmatpush1.bf16.msra.mxu0 %v2593
    %2762 = vmatprep.subr.bf16.mxu0 %v2596
    %2763 = vmatpush1.bf16.msra.mxu0 %v2595
    %2764 = vmatprep.subr.bf16.mxu0 %v2598
    %2765 = vmatpush1.bf16.msra.mxu0 %v2597
    %2766 = vmatprep.subr.bf16.mxu0 %v2600
    %2767 = vmatpush1.bf16.msra.mxu0 %v2599
    %2768 = vmatprep.subr.bf16.mxu0 %v2602
    %2769 = vmatpush1.bf16.msra.mxu0 %v2601
    %2770 = vmatprep.subr.bf16.mxu0 %v2604
    %2771 = vmatpush1.bf16.msra.mxu0 %v2603
    %2772 = vmatprep.mubr.bf16.mxu0 %v2472
    %2773 = vmatmul.mubr.bf16.gmra.mrb[0].mxu0 %v2471
    %v2774 = vpop.f32.mrb[0].mxu0
    %v2775 = vadd.f32 %v2734, %v2774
    %v2776 = vpop.f32.mrb[0].mxu0
    %v2777 = vadd.f32 %v2736, %v2776
    %v2778 = vpop.f32.mrb[0].mxu0
    %v2779 = vpop.f32.mrb[0].mxu0
    %2780 = vdwg.mxu0
    %v2781 = vtanh.pop %v2775
    %v2782 = vtanh.pop %v2777
    %2783 = vst [vmem:[%s15] sm:$0xff] %v2781
    %2784 = vst [vmem:[%s15 + $0x8] sm:$0xff] %v2782
    %s2785 = sshll.u32 %s2474, 4
    %2786 = dma.done %s266, %s2785
    %v2787 = vld [vmem:[#allocation3 + $0x10] sm:$0xff]
    %v2788 = vld [vmem:[#allocation3 + $0x18] sm:$0xff]
    %v2789 = vld [vmem:[#allocation3 + $0x48] sm:$0xff]
    %v2790 = vld [vmem:[#allocation3 + $0x50] sm:$0xff]
    %v2791 = vld [vmem:[#allocation3 + $0x80] sm:$0xff]
    %v2792 = vld [vmem:[#allocation3 + $0x88] sm:$0xff]
    %v2793 = vld [vmem:[#allocation3 + $0xb8] sm:$0xff]
    %v2794 = vld [vmem:[#allocation3 + $0xc0] sm:$0xff]
    %v2795 = vld [vmem:[#allocation3 + $0xf0] sm:$0xff]
    %v2796 = vld [vmem:[#allocation3 + $0xf8] sm:$0xff]
    %v2797 = vld [vmem:[#allocation3 + $0x128] sm:$0xff]
    %v2798 = vld [vmem:[#allocation3 + $0x130] sm:$0xff]
    %v2799 = vld [vmem:[#allocation3 + $0x160] sm:$0xff]
    %v2800 = vld [vmem:[#allocation3 + $0x168] sm:$0xff]
    %v2801 = vld [vmem:[#allocation3 + $0x198] sm:$0xff]
    %v2802 = vld [vmem:[#allocation3 + $0x1a0] sm:$0xff]
    %v2803 = vld [vmem:[#allocation3 + $0x1d0] sm:$0xff]
    %v2804 = vld [vmem:[#allocation3 + $0x1d8] sm:$0xff]
    %v2805 = vld [vmem:[#allocation3 + $0x208] sm:$0xff]
    %v2806 = vld [vmem:[#allocation3 + $0x210] sm:$0xff]
    %v2807 = vld [vmem:[#allocation3 + $0x240] sm:$0xff]
    %v2808 = vld [vmem:[#allocation3 + $0x248] sm:$0xff]
    %v2809 = vld [vmem:[#allocation3 + $0x278] sm:$0xff]
    %v2810 = vld [vmem:[#allocation3 + $0x280] sm:$0xff]
    %v2811 = vld [vmem:[#allocation3 + $0x2b0] sm:$0xff]
    %v2812 = vld [vmem:[#allocation3 + $0x2b8] sm:$0xff]
    %v2813 = vld [vmem:[#allocation3 + $0x2e8] sm:$0xff]
    %v2814 = vld [vmem:[#allocation3 + $0x2f0] sm:$0xff]
    %v2815 = vld [vmem:[#allocation3 + $0x320] sm:$0xff]
    %v2816 = vld [vmem:[#allocation3 + $0x328] sm:$0xff]
    %v2817 = vld [vmem:[#allocation3 + $0x358] sm:$0xff]
    %v2818 = vld [vmem:[#allocation3 + $0x360] sm:$0xff]
    %v2819 = vld [vmem:[#allocation3 + $0x390] sm:$0xff]
    %v2820 = vld [vmem:[#allocation3 + $0x398] sm:$0xff]
    %v2821 = vld [vmem:[#allocation3 + $0x3c8] sm:$0xff]
    %v2822 = vld [vmem:[#allocation3 + $0x3d0] sm:$0xff]
    %v2823 = vld [vmem:[#allocation3 + $0x400] sm:$0xff]
    %v2824 = vld [vmem:[#allocation3 + $0x408] sm:$0xff]
    %v2825 = vld [vmem:[#allocation3 + $0x438] sm:$0xff]
    %v2826 = vld [vmem:[#allocation3 + $0x440] sm:$0xff]
    %v2827 = vld [vmem:[#allocation3 + $0x470] sm:$0xff]
    %v2828 = vld [vmem:[#allocation3 + $0x478] sm:$0xff]
    %v2829 = vld [vmem:[#allocation3 + $0x4a8] sm:$0xff]
    %v2830 = vld [vmem:[#allocation3 + $0x4b0] sm:$0xff]
    %v2831 = vld [vmem:[#allocation3 + $0x4e0] sm:$0xff]
    %v2832 = vld [vmem:[#allocation3 + $0x4e8] sm:$0xff]
    %v2833 = vld [vmem:[#allocation3 + $0x518] sm:$0xff]
    %v2834 = vld [vmem:[#allocation3 + $0x520] sm:$0xff]
    %v2835 = vld [vmem:[#allocation3 + $0x550] sm:$0xff]
    %v2836 = vld [vmem:[#allocation3 + $0x558] sm:$0xff]
    %v2837 = vld [vmem:[#allocation3 + $0x588] sm:$0xff]
    %v2838 = vld [vmem:[#allocation3 + $0x590] sm:$0xff]
    %v2839 = vld [vmem:[#allocation3 + $0x5c0] sm:$0xff]
    %v2840 = vld [vmem:[#allocation3 + $0x5c8] sm:$0xff]
    %v2841 = vld [vmem:[#allocation3 + $0x5f8] sm:$0xff]
    %v2842 = vld [vmem:[#allocation3 + $0x600] sm:$0xff]
    %v2843 = vld [vmem:[#allocation3 + $0x630] sm:$0xff]
    %v2844 = vld [vmem:[#allocation3 + $0x638] sm:$0xff]
    %v2845 = vld [vmem:[#allocation3 + $0x668] sm:$0xff]
    %v2846 = vld [vmem:[#allocation3 + $0x670] sm:$0xff]
    %v2847 = vld [vmem:[#allocation3 + $0x6a0] sm:$0xff]
    %v2848 = vld [vmem:[#allocation3 + $0x6a8] sm:$0xff]
    %v2849 = vld [vmem:[#allocation3 + $0x6d8] sm:$0xff]
    %v2850 = vld [vmem:[#allocation3 + $0x6e0] sm:$0xff]
    %v2851 = vld [vmem:[#allocation3 + $0x710] sm:$0xff]
    %v2852 = vld [vmem:[#allocation3 + $0x718] sm:$0xff]
    %v2853 = vld [vmem:[#allocation3 + $0x748] sm:$0xff]
    %v2854 = vld [vmem:[#allocation3 + $0x750] sm:$0xff]
    %v2855 = vld [vmem:[#allocation3 + $0x780] sm:$0xff]
    %v2856 = vld [vmem:[#allocation3 + $0x788] sm:$0xff]
    %v2857 = vld [vmem:[#allocation3 + $0x7b8] sm:$0xff]
    %v2858 = vld [vmem:[#allocation3 + $0x7c0] sm:$0xff]
    %v2859 = vld [vmem:[#allocation3 + $0x7f0] sm:$0xff]
    %v2860 = vld [vmem:[#allocation3 + $0x7f8] sm:$0xff]
    %v2861 = vld [vmem:[#allocation3 + $0x828] sm:$0xff]
    %v2862 = vld [vmem:[#allocation3 + $0x830] sm:$0xff]
    %v2863 = vld [vmem:[#allocation3 + $0x860] sm:$0xff]
    %v2864 = vld [vmem:[#allocation3 + $0x868] sm:$0xff]
    %v2865 = vld [vmem:[#allocation3 + $0x898] sm:$0xff]
    %v2866 = vld [vmem:[#allocation3 + $0x8a0] sm:$0xff]
    %v2867 = vld [vmem:[#allocation3 + $0x8d0] sm:$0xff]
    %v2868 = vld [vmem:[#allocation3 + $0x8d8] sm:$0xff]
    %v2869 = vld [vmem:[#allocation3 + $0x908] sm:$0xff]
    %v2870 = vld [vmem:[#allocation3 + $0x910] sm:$0xff]
    %v2871 = vld [vmem:[#allocation3 + $0x940] sm:$0xff]
    %v2872 = vld [vmem:[#allocation3 + $0x948] sm:$0xff]
    %v2873 = vld [vmem:[#allocation3 + $0x978] sm:$0xff]
    %v2874 = vld [vmem:[#allocation3 + $0x980] sm:$0xff]
    %v2875 = vld [vmem:[#allocation3 + $0x9b0] sm:$0xff]
    %v2876 = vld [vmem:[#allocation3 + $0x9b8] sm:$0xff]
    %v2877 = vld [vmem:[#allocation3 + $0x9e8] sm:$0xff]
    %v2878 = vld [vmem:[#allocation3 + $0x9f0] sm:$0xff]
    %v2879 = vld [vmem:[#allocation3 + $0xa20] sm:$0xff]
    %v2880 = vld [vmem:[#allocation3 + $0xa28] sm:$0xff]
    %v2881 = vld [vmem:[#allocation3 + $0xa58] sm:$0xff]
    %v2882 = vld [vmem:[#allocation3 + $0xa60] sm:$0xff]
    %v2883 = vld [vmem:[#allocation3 + $0xa90] sm:$0xff]
    %v2884 = vld [vmem:[#allocation3 + $0xa98] sm:$0xff]
    %v2885 = vld [vmem:[#allocation3 + $0xac8] sm:$0xff]
    %v2886 = vld [vmem:[#allocation3 + $0xad0] sm:$0xff]
    %v2887 = vld [vmem:[#allocation3 + $0xb00] sm:$0xff]
    %v2888 = vld [vmem:[#allocation3 + $0xb08] sm:$0xff]
    %v2889 = vld [vmem:[#allocation3 + $0xb38] sm:$0xff]
    %v2890 = vld [vmem:[#allocation3 + $0xb40] sm:$0xff]
    %v2891 = vld [vmem:[#allocation3 + $0xb70] sm:$0xff]
    %v2892 = vld [vmem:[#allocation3 + $0xb78] sm:$0xff]
    %v2893 = vld [vmem:[#allocation3 + $0xba8] sm:$0xff]
    %v2894 = vld [vmem:[#allocation3 + $0xbb0] sm:$0xff]
    %v2895 = vld [vmem:[#allocation3 + $0xbe0] sm:$0xff]
    %v2896 = vld [vmem:[#allocation3 + $0xbe8] sm:$0xff]
    %v2897 = vld [vmem:[#allocation3 + $0xc18] sm:$0xff]
    %v2898 = vld [vmem:[#allocation3 + $0xc20] sm:$0xff]
    %v2899 = vld [vmem:[#allocation3 + $0xc50] sm:$0xff]
    %v2900 = vld [vmem:[#allocation3 + $0xc58] sm:$0xff]
    %v2901 = vld [vmem:[#allocation3 + $0xc88] sm:$0xff]
    %v2902 = vld [vmem:[#allocation3 + $0xc90] sm:$0xff]
    %v2903 = vld [vmem:[#allocation3 + $0xcc0] sm:$0xff]
    %v2904 = vld [vmem:[#allocation3 + $0xcc8] sm:$0xff]
    %v2905 = vld [vmem:[#allocation3 + $0xcf8] sm:$0xff]
    %v2906 = vld [vmem:[#allocation3 + $0xd00] sm:$0xff]
    %v2907 = vld [vmem:[#allocation3 + $0xd30] sm:$0xff]
    %v2908 = vld [vmem:[#allocation3 + $0xd38] sm:$0xff]
    %v2909 = vld [vmem:[#allocation3 + $0xd68] sm:$0xff]
    %v2910 = vld [vmem:[#allocation3 + $0xd70] sm:$0xff]
    %v2911 = vld [vmem:[#allocation3 + $0xda0] sm:$0xff]
    %v2912 = vld [vmem:[#allocation3 + $0xda8] sm:$0xff]
    %v2913 = vld [vmem:[#allocation3 + $0xdd8] sm:$0xff]
    %v2914 = vld [vmem:[#allocation3 + $0xde0] sm:$0xff]
    %v2915 = vld [vmem:[#allocation22 + $0x2] sm:$0x3]
    %v2917 = vlaneseq
    %v2918 = vshrl.u32 %v2917, 7
    %v2919 = vsub.s32 0, %v2918
    %v2920 = vrot.slane %v2915, %v2919
    %v2921 = vlaneseq
    %v2922 = vshrl.u32 %v2921, 7
    %v2923 = vsub.s32 1, %v2922
    %v2924 = vrot.slane %v2915, %v2923
    %2927 = vmatprep.subr.bf16.mxu0 %v2788
    %2928 = vmatpush1.bf16.msra.mxu0 %v2787
    %2929 = vmatprep.subr.bf16.mxu0 %v2790
    %2930 = vmatpush1.bf16.msra.mxu0 %v2789
    %2931 = vmatprep.subr.bf16.mxu0 %v2792
    %2932 = vmatpush1.bf16.msra.mxu0 %v2791
    %2933 = vmatprep.subr.bf16.mxu0 %v2794
    %2934 = vmatpush1.bf16.msra.mxu0 %v2793
    %2935 = vmatprep.subr.bf16.mxu0 %v2796
    %2936 = vmatpush1.bf16.msra.mxu0 %v2795
    %2937 = vmatprep.subr.bf16.mxu0 %v2798
    %2938 = vmatpush1.bf16.msra.mxu0 %v2797
    %2939 = vmatprep.subr.bf16.mxu0 %v2800
    %2940 = vmatpush1.bf16.msra.mxu0 %v2799
    %2941 = vmatprep.subr.bf16.mxu0 %v2802
    %2942 = vmatpush1.bf16.msra.mxu0 %v2801
    %2943 = vmatprep.subr.bf16.mxu0 %v2804
    %2944 = vmatpush1.bf16.msra.mxu0 %v2803
    %2945 = vmatprep.subr.bf16.mxu0 %v2806
    %2946 = vmatpush1.bf16.msra.mxu0 %v2805
    %2947 = vmatprep.subr.bf16.mxu0 %v2808
    %2948 = vmatpush1.bf16.msra.mxu0 %v2807
    %2949 = vmatprep.subr.bf16.mxu0 %v2810
    %2950 = vmatpush1.bf16.msra.mxu0 %v2809
    %2951 = vmatprep.subr.bf16.mxu0 %v2812
    %2952 = vmatpush1.bf16.msra.mxu0 %v2811
    %2953 = vmatprep.subr.bf16.mxu0 %v2814
    %2954 = vmatpush1.bf16.msra.mxu0 %v2813
    %2955 = vmatprep.subr.bf16.mxu0 %v2816
    %2956 = vmatpush1.bf16.msra.mxu0 %v2815
    %2957 = vmatprep.subr.bf16.mxu0 %v2818
    %2958 = vmatpush1.bf16.msra.mxu0 %v2817
    %2959 = vmatprep.mubr.bf16.mxu0 %v2466
    %2960 = vmatmul.mubr.bf16.gmra.mrb[0].mxu0 %v2465
    %v2961 = vpop.f32.mrb[0].mxu0
    %v2962 = vadd.f32 %v2920, %v2961
    %v2963 = vpop.f32.mrb[0].mxu0
    %v2964 = vadd.f32 %v2924, %v2963
    %v2965 = vpop.f32.mrb[0].mxu0
    %v2966 = vpop.f32.mrb[0].mxu0
    %2967 = vdwg.mxu0
    %2968 = vmatprep.subr.bf16.mxu0 %v2820
    %2969 = vmatpush1.bf16.msra.mxu0 %v2819
    %2970 = vmatprep.subr.bf16.mxu0 %v2822
    %2971 = vmatpush1.bf16.msra.mxu0 %v2821
    %2972 = vmatprep.subr.bf16.mxu0 %v2824
    %2973 = vmatpush1.bf16.msra.mxu0 %v2823
    %2974 = vmatprep.subr.bf16.mxu0 %v2826
    %2975 = vmatpush1.bf16.msra.mxu0 %v2825
    %2976 = vmatprep.subr.bf16.mxu0 %v2828
    %2977 = vmatpush1.bf16.msra.mxu0 %v2827
    %2978 = vmatprep.subr.bf16.mxu0 %v2830
    %2979 = vmatpush1.bf16.msra.mxu0 %v2829
    %2980 = vmatprep.subr.bf16.mxu0 %v2832
    %2981 = vmatpush1.bf16.msra.mxu0 %v2831
    %2982 = vmatprep.subr.bf16.mxu0 %v2834
    %2983 = vmatpush1.bf16.msra.mxu0 %v2833
    %2984 = vmatprep.subr.bf16.mxu0 %v2836
    %2985 = vmatpush1.bf16.msra.mxu0 %v2835
    %2986 = vmatprep.subr.bf16.mxu0 %v2838
    %2987 = vmatpush1.bf16.msra.mxu0 %v2837
    %2988 = vmatprep.subr.bf16.mxu0 %v2840
    %2989 = vmatpush1.bf16.msra.mxu0 %v2839
    %2990 = vmatprep.subr.bf16.mxu0 %v2842
    %2991 = vmatpush1.bf16.msra.mxu0 %v2841
    %2992 = vmatprep.subr.bf16.mxu0 %v2844
    %2993 = vmatpush1.bf16.msra.mxu0 %v2843
    %2994 = vmatprep.subr.bf16.mxu0 %v2846
    %2995 = vmatpush1.bf16.msra.mxu0 %v2845
    %2996 = vmatprep.subr.bf16.mxu0 %v2848
    %2997 = vmatpush1.bf16.msra.mxu0 %v2847
    %2998 = vmatprep.subr.bf16.mxu0 %v2850
    %2999 = vmatpush1.bf16.msra.mxu0 %v2849
    %3000 = vmatprep.mubr.bf16.mxu0 %v2468
    %3001 = vmatmul.mubr.bf16.gmra.mrb[0].mxu0 %v2467
    %v3002 = vpop.f32.mrb[0].mxu0
    %v3003 = vadd.f32 %v2962, %v3002
    %v3004 = vpop.f32.mrb[0].mxu0
    %v3005 = vadd.f32 %v2964, %v3004
    %v3006 = vpop.f32.mrb[0].mxu0
    %v3007 = vpop.f32.mrb[0].mxu0
    %3008 = vdwg.mxu0
    %3009 = vmatprep.subr.bf16.mxu0 %v2852
    %3010 = vmatpush1.bf16.msra.mxu0 %v2851
    %3011 = vmatprep.subr.bf16.mxu0 %v2854
    %3012 = vmatpush1.bf16.msra.mxu0 %v2853
    %3013 = vmatprep.subr.bf16.mxu0 %v2856
    %3014 = vmatpush1.bf16.msra.mxu0 %v2855
    %3015 = vmatprep.subr.bf16.mxu0 %v2858
    %3016 = vmatpush1.bf16.msra.mxu0 %v2857
    %3017 = vmatprep.subr.bf16.mxu0 %v2860
    %3018 = vmatpush1.bf16.msra.mxu0 %v2859
    %3019 = vmatprep.subr.bf16.mxu0 %v2862
    %3020 = vmatpush1.bf16.msra.mxu0 %v2861
    %3021 = vmatprep.subr.bf16.mxu0 %v2864
    %3022 = vmatpush1.bf16.msra.mxu0 %v2863
    %3023 = vmatprep.subr.bf16.mxu0 %v2866
    %3024 = vmatpush1.bf16.msra.mxu0 %v2865
    %3025 = vmatprep.subr.bf16.mxu0 %v2868
    %3026 = vmatpush1.bf16.msra.mxu0 %v2867
    %3027 = vmatprep.subr.bf16.mxu0 %v2870
    %3028 = vmatpush1.bf16.msra.mxu0 %v2869
    %3029 = vmatprep.subr.bf16.mxu0 %v2872
    %3030 = vmatpush1.bf16.msra.mxu0 %v2871
    %3031 = vmatprep.subr.bf16.mxu0 %v2874
    %3032 = vmatpush1.bf16.msra.mxu0 %v2873
    %3033 = vmatprep.subr.bf16.mxu0 %v2876
    %3034 = vmatpush1.bf16.msra.mxu0 %v2875
    %3035 = vmatprep.subr.bf16.mxu0 %v2878
    %3036 = vmatpush1.bf16.msra.mxu0 %v2877
    %3037 = vmatprep.subr.bf16.mxu0 %v2880
    %3038 = vmatpush1.bf16.msra.mxu0 %v2879
    %3039 = vmatprep.subr.bf16.mxu0 %v2882
    %3040 = vmatpush1.bf16.msra.mxu0 %v2881
    %3041 = vmatprep.mubr.bf16.mxu0 %v2470
    %3042 = vmatmul.mubr.bf16.gmra.mrb[0].mxu0 %v2469
    %v3043 = vpop.f32.mrb[0].mxu0
    %v3044 = vadd.f32 %v3003, %v3043
    %v3045 = vpop.f32.mrb[0].mxu0
    %v3046 = vadd.f32 %v3005, %v3045
    %v3047 = vpop.f32.mrb[0].mxu0
    %v3048 = vpop.f32.mrb[0].mxu0
    %3049 = vdwg.mxu0
    %3050 = vmatprep.subr.bf16.mxu0 %v2884
    %3051 = vmatpush1.bf16.msra.mxu0 %v2883
    %3052 = vmatprep.subr.bf16.mxu0 %v2886
    %3053 = vmatpush1.bf16.msra.mxu0 %v2885
    %3054 = vmatprep.subr.bf16.mxu0 %v2888
    %3055 = vmatpush1.bf16.msra.mxu0 %v2887
    %3056 = vmatprep.subr.bf16.mxu0 %v2890
    %3057 = vmatpush1.bf16.msra.mxu0 %v2889
    %3058 = vmatprep.subr.bf16.mxu0 %v2892
    %3059 = vmatpush1.bf16.msra.mxu0 %v2891
    %3060 = vmatprep.subr.bf16.mxu0 %v2894
    %3061 = vmatpush1.bf16.msra.mxu0 %v2893
    %3062 = vmatprep.subr.bf16.mxu0 %v2896
    %3063 = vmatpush1.bf16.msra.mxu0 %v2895
    %3064 = vmatprep.subr.bf16.mxu0 %v2898
    %3065 = vmatpush1.bf16.msra.mxu0 %v2897
    %3066 = vmatprep.subr.bf16.mxu0 %v2900
    %3067 = vmatpush1.bf16.msra.mxu0 %v2899
    %3068 = vmatprep.subr.bf16.mxu0 %v2902
    %3069 = vmatpush1.bf16.msra.mxu0 %v2901
    %3070 = vmatprep.subr.bf16.mxu0 %v2904
    %3071 = vmatpush1.bf16.msra.mxu0 %v2903
    %3072 = vmatprep.subr.bf16.mxu0 %v2906
    %3073 = vmatpush1.bf16.msra.mxu0 %v2905
    %3074 = vmatprep.subr.bf16.mxu0 %v2908
    %3075 = vmatpush1.bf16.msra.mxu0 %v2907
    %3076 = vmatprep.subr.bf16.mxu0 %v2910
    %3077 = vmatpush1.bf16.msra.mxu0 %v2909
    %3078 = vmatprep.subr.bf16.mxu0 %v2912
    %3079 = vmatpush1.bf16.msra.mxu0 %v2911
    %3080 = vmatprep.subr.bf16.mxu0 %v2914
    %3081 = vmatpush1.bf16.msra.mxu0 %v2913
    %3082 = vmatprep.mubr.bf16.mxu0 %v2472
    %3083 = vmatmul.mubr.bf16.gmra.mrb[0].mxu0 %v2471
    %v3084 = vpop.f32.mrb[0].mxu0
    %v3085 = vadd.f32 %v3044, %v3084
    %v3086 = vpop.f32.mrb[0].mxu0
    %v3087 = vadd.f32 %v3046, %v3086
    %v3088 = vpop.f32.mrb[0].mxu0
    %v3089 = vpop.f32.mrb[0].mxu0
    %3090 = vdwg.mxu0
    %v3091 = vtanh.pop %v3085
    %v3092 = vtanh.pop %v3087
    %3093 = vst [vmem:[%s15 + $0x10] sm:$0xff] %v3091
    %3094 = vst [vmem:[%s15 + $0x18] sm:$0xff] %v3092
    %s3095 = sshll.u32 %s2474, 4
    %3096 = dma.done %s303, %s3095
    %v3097 = vld [vmem:[#allocation3 + $0x20] sm:$0xff]
    %v3098 = vld [vmem:[#allocation3 + $0x28] sm:$0xff]
    %v3099 = vld [vmem:[#allocation3 + $0x58] sm:$0xff]
    %v3100 = vld [vmem:[#allocation3 + $0x60] sm:$0xff]
    %v3101 = vld [vmem:[#allocation3 + $0x90] sm:$0xff]
    %v3102 = vld [vmem:[#allocation3 + $0x98] sm:$0xff]
    %v3103 = vld [vmem:[#allocation3 + $0xc8] sm:$0xff]
    %v3104 = vld [vmem:[#allocation3 + $0xd0] sm:$0xff]
    %v3105 = vld [vmem:[#allocation3 + $0x100] sm:$0xff]
    %v3106 = vld [vmem:[#allocation3 + $0x108] sm:$0xff]
    %v3107 = vld [vmem:[#allocation3 + $0x138] sm:$0xff]
    %v3108 = vld [vmem:[#allocation3 + $0x140] sm:$0xff]
    %v3109 = vld [vmem:[#allocation3 + $0x170] sm:$0xff]
    %v3110 = vld [vmem:[#allocation3 + $0x178] sm:$0xff]
    %v3111 = vld [vmem:[#allocation3 + $0x1a8] sm:$0xff]
    %v3112 = vld [vmem:[#allocation3 + $0x1b0] sm:$0xff]
    %v3113 = vld [vmem:[#allocation3 + $0x1e0] sm:$0xff]
    %v3114 = vld [vmem:[#allocation3 + $0x1e8] sm:$0xff]
    %v3115 = vld [vmem:[#allocation3 + $0x218] sm:$0xff]
    %v3116 = vld [vmem:[#allocation3 + $0x220] sm:$0xff]
    %v3117 = vld [vmem:[#allocation3 + $0x250] sm:$0xff]
    %v3118 = vld [vmem:[#allocation3 + $0x258] sm:$0xff]
    %v3119 = vld [vmem:[#allocation3 + $0x288] sm:$0xff]
    %v3120 = vld [vmem:[#allocation3 + $0x290] sm:$0xff]
    %v3121 = vld [vmem:[#allocation3 + $0x2c0] sm:$0xff]
    %v3122 = vld [vmem:[#allocation3 + $0x2c8] sm:$0xff]
    %v3123 = vld [vmem:[#allocation3 + $0x2f8] sm:$0xff]
    %v3124 = vld [vmem:[#allocation3 + $0x300] sm:$0xff]
    %v3125 = vld [vmem:[#allocation3 + $0x330] sm:$0xff]
    %v3126 = vld [vmem:[#allocation3 + $0x338] sm:$0xff]
    %v3127 = vld [vmem:[#allocation3 + $0x368] sm:$0xff]
    %v3128 = vld [vmem:[#allocation3 + $0x370] sm:$0xff]
    %v3129 = vld [vmem:[#allocation3 + $0x3a0] sm:$0xff]
    %v3130 = vld [vmem:[#allocation3 + $0x3a8] sm:$0xff]
    %v3131 = vld [vmem:[#allocation3 + $0x3d8] sm:$0xff]
    %v3132 = vld [vmem:[#allocation3 + $0x3e0] sm:$0xff]
    %v3133 = vld [vmem:[#allocation3 + $0x410] sm:$0xff]
    %v3134 = vld [vmem:[#allocation3 + $0x418] sm:$0xff]
    %v3135 = vld [vmem:[#allocation3 + $0x448] sm:$0xff]
    %v3136 = vld [vmem:[#allocation3 + $0x450] sm:$0xff]
    %v3137 = vld [vmem:[#allocation3 + $0x480] sm:$0xff]
    %v3138 = vld [vmem:[#allocation3 + $0x488] sm:$0xff]
    %v3139 = vld [vmem:[#allocation3 + $0x4b8] sm:$0xff]
    %v3140 = vld [vmem:[#allocation3 + $0x4c0] sm:$0xff]
    %v3141 = vld [vmem:[#allocation3 + $0x4f0] sm:$0xff]
    %v3142 = vld [vmem:[#allocation3 + $0x4f8] sm:$0xff]
    %v3143 = vld [vmem:[#allocation3 + $0x528] sm:$0xff]
    %v3144 = vld [vmem:[#allocation3 + $0x530] sm:$0xff]
    %v3145 = vld [vmem:[#allocation3 + $0x560] sm:$0xff]
    %v3146 = vld [vmem:[#allocation3 + $0x568] sm:$0xff]
    %v3147 = vld [vmem:[#allocation3 + $0x598] sm:$0xff]
    %v3148 = vld [vmem:[#allocation3 + $0x5a0] sm:$0xff]
    %v3149 = vld [vmem:[#allocation3 + $0x5d0] sm:$0xff]
    %v3150 = vld [vmem:[#allocation3 + $0x5d8] sm:$0xff]
    %v3151 = vld [vmem:[#allocation3 + $0x608] sm:$0xff]
    %v3152 = vld [vmem:[#allocation3 + $0x610] sm:$0xff]
    %v3153 = vld [vmem:[#allocation3 + $0x640] sm:$0xff]
    %v3154 = vld [vmem:[#allocation3 + $0x648] sm:$0xff]
    %v3155 = vld [vmem:[#allocation3 + $0x678] sm:$0xff]
    %v3156 = vld [vmem:[#allocation3 + $0x680] sm:$0xff]
    %v3157 = vld [vmem:[#allocation3 + $0x6b0] sm:$0xff]
    %v3158 = vld [vmem:[#allocation3 + $0x6b8] sm:$0xff]
    %v3159 = vld [vmem:[#allocation3 + $0x6e8] sm:$0xff]
    %v3160 = vld [vmem:[#allocation3 + $0x6f0] sm:$0xff]
    %v3161 = vld [vmem:[#allocation3 + $0x720] sm:$0xff]
    %v3162 = vld [vmem:[#allocation3 + $0x728] sm:$0xff]
    %v3163 = vld [vmem:[#allocation3 + $0x758] sm:$0xff]
    %v3164 = vld [vmem:[#allocation3 + $0x760] sm:$0xff]
    %v3165 = vld [vmem:[#allocation3 + $0x790] sm:$0xff]
    %v3166 = vld [vmem:[#allocation3 + $0x798] sm:$0xff]
    %v3167 = vld [vmem:[#allocation3 + $0x7c8] sm:$0xff]
    %v3168 = vld [vmem:[#allocation3 + $0x7d0] sm:$0xff]
    %v3169 = vld [vmem:[#allocation3 + $0x800] sm:$0xff]
    %v3170 = vld [vmem:[#allocation3 + $0x808] sm:$0xff]
    %v3171 = vld [vmem:[#allocation3 + $0x838] sm:$0xff]
    %v3172 = vld [vmem:[#allocation3 + $0x840] sm:$0xff]
    %v3173 = vld [vmem:[#allocation3 + $0x870] sm:$0xff]
    %v3174 = vld [vmem:[#allocation3 + $0x878] sm:$0xff]
    %v3175 = vld [vmem:[#allocation3 + $0x8a8] sm:$0xff]
    %v3176 = vld [vmem:[#allocation3 + $0x8b0] sm:$0xff]
    %v3177 = vld [vmem:[#allocation3 + $0x8e0] sm:$0xff]
    %v3178 = vld [vmem:[#allocation3 + $0x8e8] sm:$0xff]
    %v3179 = vld [vmem:[#allocation3 + $0x918] sm:$0xff]
    %v3180 = vld [vmem:[#allocation3 + $0x920] sm:$0xff]
    %v3181 = vld [vmem:[#allocation3 + $0x950] sm:$0xff]
    %v3182 = vld [vmem:[#allocation3 + $0x958] sm:$0xff]
    %v3183 = vld [vmem:[#allocation3 + $0x988] sm:$0xff]
    %v3184 = vld [vmem:[#allocation3 + $0x990] sm:$0xff]
    %v3185 = vld [vmem:[#allocation3 + $0x9c0] sm:$0xff]
    %v3186 = vld [vmem:[#allocation3 + $0x9c8] sm:$0xff]
    %v3187 = vld [vmem:[#allocation3 + $0x9f8] sm:$0xff]
    %v3188 = vld [vmem:[#allocation3 + $0xa00] sm:$0xff]
    %v3189 = vld [vmem:[#allocation3 + $0xa30] sm:$0xff]
    %v3190 = vld [vmem:[#allocation3 + $0xa38] sm:$0xff]
    %v3191 = vld [vmem:[#allocation3 + $0xa68] sm:$0xff]
    %v3192 = vld [vmem:[#allocation3 + $0xa70] sm:$0xff]
    %v3193 = vld [vmem:[#allocation3 + $0xaa0] sm:$0xff]
    %v3194 = vld [vmem:[#allocation3 + $0xaa8] sm:$0xff]
    %v3195 = vld [vmem:[#allocation3 + $0xad8] sm:$0xff]
    %v3196 = vld [vmem:[#allocation3 + $0xae0] sm:$0xff]
    %v3197 = vld [vmem:[#allocation3 + $0xb10] sm:$0xff]
    %v3198 = vld [vmem:[#allocation3 + $0xb18] sm:$0xff]
    %v3199 = vld [vmem:[#allocation3 + $0xb48] sm:$0xff]
    %v3200 = vld [vmem:[#allocation3 + $0xb50] sm:$0xff]
    %v3201 = vld [vmem:[#allocation3 + $0xb80] sm:$0xff]
    %v3202 = vld [vmem:[#allocation3 + $0xb88] sm:$0xff]
    %v3203 = vld [vmem:[#allocation3 + $0xbb8] sm:$0xff]
    %v3204 = vld [vmem:[#allocation3 + $0xbc0] sm:$0xff]
    %v3205 = vld [vmem:[#allocation3 + $0xbf0] sm:$0xff]
    %v3206 = vld [vmem:[#allocation3 + $0xbf8] sm:$0xff]
    %v3207 = vld [vmem:[#allocation3 + $0xc28] sm:$0xff]
    %v3208 = vld [vmem:[#allocation3 + $0xc30] sm:$0xff]
    %v3209 = vld [vmem:[#allocation3 + $0xc60] sm:$0xff]
    %v3210 = vld [vmem:[#allocation3 + $0xc68] sm:$0xff]
    %v3211 = vld [vmem:[#allocation3 + $0xc98] sm:$0xff]
    %v3212 = vld [vmem:[#allocation3 + $0xca0] sm:$0xff]
    %v3213 = vld [vmem:[#allocation3 + $0xcd0] sm:$0xff]
    %v3214 = vld [vmem:[#allocation3 + $0xcd8] sm:$0xff]
    %v3215 = vld [vmem:[#allocation3 + $0xd08] sm:$0xff]
    %v3216 = vld [vmem:[#allocation3 + $0xd10] sm:$0xff]
    %v3217 = vld [vmem:[#allocation3 + $0xd40] sm:$0xff]
    %v3218 = vld [vmem:[#allocation3 + $0xd48] sm:$0xff]
    %v3219 = vld [vmem:[#allocation3 + $0xd78] sm:$0xff]
    %v3220 = vld [vmem:[#allocation3 + $0xd80] sm:$0xff]
    %v3221 = vld [vmem:[#allocation3 + $0xdb0] sm:$0xff]
    %v3222 = vld [vmem:[#allocation3 + $0xdb8] sm:$0xff]
    %v3223 = vld [vmem:[#allocation3 + $0xde8] sm:$0xff]
    %v3224 = vld [vmem:[#allocation3 + $0xdf0] sm:$0xff]
    %v3225 = vld [vmem:[#allocation22 + $0x4] sm:$0x3]
    %v3227 = vlaneseq
    %v3228 = vshrl.u32 %v3227, 7
    %v3229 = vsub.s32 0, %v3228
    %v3230 = vrot.slane %v3225, %v3229
    %v3231 = vlaneseq
    %v3232 = vshrl.u32 %v3231, 7
    %v3233 = vsub.s32 1, %v3232
    %v3234 = vrot.slane %v3225, %v3233
    %3237 = vmatprep.subr.bf16.mxu0 %v3098
    %3238 = vmatpush1.bf16.msra.mxu0 %v3097
    %3239 = vmatprep.subr.bf16.mxu0 %v3100
    %3240 = vmatpush1.bf16.msra.mxu0 %v3099
    %3241 = vmatprep.subr.bf16.mxu0 %v3102
    %3242 = vmatpush1.bf16.msra.mxu0 %v3101
    %3243 = vmatprep.subr.bf16.mxu0 %v3104
    %3244 = vmatpush1.bf16.msra.mxu0 %v3103
    %3245 = vmatprep.subr.bf16.mxu0 %v3106
    %3246 = vmatpush1.bf16.msra.mxu0 %v3105
    %3247 = vmatprep.subr.bf16.mxu0 %v3108
    %3248 = vmatpush1.bf16.msra.mxu0 %v3107
    %3249 = vmatprep.subr.bf16.mxu0 %v3110
    %3250 = vmatpush1.bf16.msra.mxu0 %v3109
    %3251 = vmatprep.subr.bf16.mxu0 %v3112
    %3252 = vmatpush1.bf16.msra.mxu0 %v3111
    %3253 = vmatprep.subr.bf16.mxu0 %v3114
    %3254 = vmatpush1.bf16.msra.mxu0 %v3113
    %3255 = vmatprep.subr.bf16.mxu0 %v3116
    %3256 = vmatpush1.bf16.msra.mxu0 %v3115
    %3257 = vmatprep.subr.bf16.mxu0 %v3118
    %3258 = vmatpush1.bf16.msra.mxu0 %v3117
    %3259 = vmatprep.subr.bf16.mxu0 %v3120
    %3260 = vmatpush1.bf16.msra.mxu0 %v3119
    %3261 = vmatprep.subr.bf16.mxu0 %v3122
    %3262 = vmatpush1.bf16.msra.mxu0 %v3121
    %3263 = vmatprep.subr.bf16.mxu0 %v3124
    %3264 = vmatpush1.bf16.msra.mxu0 %v3123
    %3265 = vmatprep.subr.bf16.mxu0 %v3126
    %3266 = vmatpush1.bf16.msra.mxu0 %v3125
    %3267 = vmatprep.subr.bf16.mxu0 %v3128
    %3268 = vmatpush1.bf16.msra.mxu0 %v3127
    %3269 = vmatprep.mubr.bf16.mxu0 %v2466
    %3270 = vmatmul.mubr.bf16.gmra.mrb[0].mxu0 %v2465
    %v3271 = vpop.f32.mrb[0].mxu0
    %v3272 = vadd.f32 %v3230, %v3271
    %v3273 = vpop.f32.mrb[0].mxu0
    %v3274 = vadd.f32 %v3234, %v3273
    %v3275 = vpop.f32.mrb[0].mxu0
    %v3276 = vpop.f32.mrb[0].mxu0
    %3277 = vdwg.mxu0
    %3278 = vmatprep.subr.bf16.mxu0 %v3130
    %3279 = vmatpush1.bf16.msra.mxu0 %v3129
    %3280 = vmatprep.subr.bf16.mxu0 %v3132
    %3281 = vmatpush1.bf16.msra.mxu0 %v3131
    %3282 = vmatprep.subr.bf16.mxu0 %v3134
    %3283 = vmatpush1.bf16.msra.mxu0 %v3133
    %3284 = vmatprep.subr.bf16.mxu0 %v3136
    %3285 = vmatpush1.bf16.msra.mxu0 %v3135
    %3286 = vmatprep.subr.bf16.mxu0 %v3138
    %3287 = vmatpush1.bf16.msra.mxu0 %v3137
    %3288 = vmatprep.subr.bf16.mxu0 %v3140
    %3289 = vmatpush1.bf16.msra.mxu0 %v3139
    %3290 = vmatprep.subr.bf16.mxu0 %v3142
    %3291 = vmatpush1.bf16.msra.mxu0 %v3141
    %3292 = vmatprep.subr.bf16.mxu0 %v3144
    %3293 = vmatpush1.bf16.msra.mxu0 %v3143
    %3294 = vmatprep.subr.bf16.mxu0 %v3146
    %3295 = vmatpush1.bf16.msra.mxu0 %v3145
    %3296 = vmatprep.subr.bf16.mxu0 %v3148
    %3297 = vmatpush1.bf16.msra.mxu0 %v3147
    %3298 = vmatprep.subr.bf16.mxu0 %v3150
    %3299 = vmatpush1.bf16.msra.mxu0 %v3149
    %3300 = vmatprep.subr.bf16.mxu0 %v3152
    %3301 = vmatpush1.bf16.msra.mxu0 %v3151
    %3302 = vmatprep.subr.bf16.mxu0 %v3154
    %3303 = vmatpush1.bf16.msra.mxu0 %v3153
    %3304 = vmatprep.subr.bf16.mxu0 %v3156
    %3305 = vmatpush1.bf16.msra.mxu0 %v3155
    %3306 = vmatprep.subr.bf16.mxu0 %v3158
    %3307 = vmatpush1.bf16.msra.mxu0 %v3157
    %3308 = vmatprep.subr.bf16.mxu0 %v3160
    %3309 = vmatpush1.bf16.msra.mxu0 %v3159
    %3310 = vmatprep.mubr.bf16.mxu0 %v2468
    %3311 = vmatmul.mubr.bf16.gmra.mrb[0].mxu0 %v2467
    %v3312 = vpop.f32.mrb[0].mxu0
    %v3313 = vadd.f32 %v3272, %v3312
    %v3314 = vpop.f32.mrb[0].mxu0
    %v3315 = vadd.f32 %v3274, %v3314
    %v3316 = vpop.f32.mrb[0].mxu0
    %v3317 = vpop.f32.mrb[0].mxu0
    %3318 = vdwg.mxu0
    %3319 = vmatprep.subr.bf16.mxu0 %v3162
    %3320 = vmatpush1.bf16.msra.mxu0 %v3161
    %3321 = vmatprep.subr.bf16.mxu0 %v3164
    %3322 = vmatpush1.bf16.msra.mxu0 %v3163
    %3323 = vmatprep.subr.bf16.mxu0 %v3166
    %3324 = vmatpush1.bf16.msra.mxu0 %v3165
    %3325 = vmatprep.subr.bf16.mxu0 %v3168
    %3326 = vmatpush1.bf16.msra.mxu0 %v3167
    %3327 = vmatprep.subr.bf16.mxu0 %v3170
    %3328 = vmatpush1.bf16.msra.mxu0 %v3169
    %3329 = vmatprep.subr.bf16.mxu0 %v3172
    %3330 = vmatpush1.bf16.msra.mxu0 %v3171
    %3331 = vmatprep.subr.bf16.mxu0 %v3174
    %3332 = vmatpush1.bf16.msra.mxu0 %v3173
    %3333 = vmatprep.subr.bf16.mxu0 %v3176
    %3334 = vmatpush1.bf16.msra.mxu0 %v3175
    %3335 = vmatprep.subr.bf16.mxu0 %v3178
    %3336 = vmatpush1.bf16.msra.mxu0 %v3177
    %3337 = vmatprep.subr.bf16.mxu0 %v3180
    %3338 = vmatpush1.bf16.msra.mxu0 %v3179
    %3339 = vmatprep.subr.bf16.mxu0 %v3182
    %3340 = vmatpush1.bf16.msra.mxu0 %v3181
    %3341 = vmatprep.subr.bf16.mxu0 %v3184
    %3342 = vmatpush1.bf16.msra.mxu0 %v3183
    %3343 = vmatprep.subr.bf16.mxu0 %v3186
    %3344 = vmatpush1.bf16.msra.mxu0 %v3185
    %3345 = vmatprep.subr.bf16.mxu0 %v3188
    %3346 = vmatpush1.bf16.msra.mxu0 %v3187
    %3347 = vmatprep.subr.bf16.mxu0 %v3190
    %3348 = vmatpush1.bf16.msra.mxu0 %v3189
    %3349 = vmatprep.subr.bf16.mxu0 %v3192
    %3350 = vmatpush1.bf16.msra.mxu0 %v3191
    %3351 = vmatprep.mubr.bf16.mxu0 %v2470
    %3352 = vmatmul.mubr.bf16.gmra.mrb[0].mxu0 %v2469
    %v3353 = vpop.f32.mrb[0].mxu0
    %v3354 = vadd.f32 %v3313, %v3353
    %v3355 = vpop.f32.mrb[0].mxu0
    %v3356 = vadd.f32 %v3315, %v3355
    %v3357 = vpop.f32.mrb[0].mxu0
    %v3358 = vpop.f32.mrb[0].mxu0
    %3359 = vdwg.mxu0
    %3360 = vmatprep.subr.bf16.mxu0 %v3194
    %3361 = vmatpush1.bf16.msra.mxu0 %v3193
    %3362 = vmatprep.subr.bf16.mxu0 %v3196
    %3363 = vmatpush1.bf16.msra.mxu0 %v3195
    %3364 = vmatprep.subr.bf16.mxu0 %v3198
    %3365 = vmatpush1.bf16.msra.mxu0 %v3197
    %3366 = vmatprep.subr.bf16.mxu0 %v3200
    %3367 = vmatpush1.bf16.msra.mxu0 %v3199
    %3368 = vmatprep.subr.bf16.mxu0 %v3202
    %3369 = vmatpush1.bf16.msra.mxu0 %v3201
    %3370 = vmatprep.subr.bf16.mxu0 %v3204
    %3371 = vmatpush1.bf16.msra.mxu0 %v3203
    %3372 = vmatprep.subr.bf16.mxu0 %v3206
    %3373 = vmatpush1.bf16.msra.mxu0 %v3205
    %3374 = vmatprep.subr.bf16.mxu0 %v3208
    %3375 = vmatpush1.bf16.msra.mxu0 %v3207
    %3376 = vmatprep.subr.bf16.mxu0 %v3210
    %3377 = vmatpush1.bf16.msra.mxu0 %v3209
    %3378 = vmatprep.subr.bf16.mxu0 %v3212
    %3379 = vmatpush1.bf16.msra.mxu0 %v3211
    %3380 = vmatprep.subr.bf16.mxu0 %v3214
    %3381 = vmatpush1.bf16.msra.mxu0 %v3213
    %3382 = vmatprep.subr.bf16.mxu0 %v3216
    %3383 = vmatpush1.bf16.msra.mxu0 %v3215
    %3384 = vmatprep.subr.bf16.mxu0 %v3218
    %3385 = vmatpush1.bf16.msra.mxu0 %v3217
    %3386 = vmatprep.subr.bf16.mxu0 %v3220
    %3387 = vmatpush1.bf16.msra.mxu0 %v3219
    %3388 = vmatprep.subr.bf16.mxu0 %v3222
    %3389 = vmatpush1.bf16.msra.mxu0 %v3221
    %3390 = vmatprep.subr.bf16.mxu0 %v3224
    %3391 = vmatpush1.bf16.msra.mxu0 %v3223
    %3392 = vmatprep.mubr.bf16.mxu0 %v2472
    %3393 = vmatmul.mubr.bf16.gmra.mrb[0].mxu0 %v2471
    %v3394 = vpop.f32.mrb[0].mxu0
    %v3395 = vadd.f32 %v3354, %v3394
    %v3396 = vpop.f32.mrb[0].mxu0
    %v3397 = vadd.f32 %v3356, %v3396
    %v3398 = vpop.f32.mrb[0].mxu0
    %v3399 = vpop.f32.mrb[0].mxu0
    %3400 = vdwg.mxu0
    %v3401 = vtanh.pop %v3395
    %v3402 = vtanh.pop %v3397
    %3403 = vst [vmem:[%s15 + $0x20] sm:$0xff] %v3401
    %3404 = vst [vmem:[%s15 + $0x28] sm:$0xff] %v3402
    %s3405 = smul.u32 %s2473, 1
    %s3406 = sshll.u32 %s3405, 4
    %3407 = dma.done %s340, %s3406
    %v3408 = vld [vmem:[#allocation3 + $0x30] sm:$0xff]
    %v3409 = vld [vmem:[#allocation3 + $0x68] sm:$0xff]
    %v3410 = vld [vmem:[#allocation3 + $0xa0] sm:$0xff]
    %v3411 = vld [vmem:[#allocation3 + $0xd8] sm:$0xff]
    %v3412 = vld [vmem:[#allocation3 + $0x110] sm:$0xff]
    %v3413 = vld [vmem:[#allocation3 + $0x148] sm:$0xff]
    %v3414 = vld [vmem:[#allocation3 + $0x180] sm:$0xff]
    %v3415 = vld [vmem:[#allocation3 + $0x1b8] sm:$0xff]
    %v3416 = vld [vmem:[#allocation3 + $0x1f0] sm:$0xff]
    %v3417 = vld [vmem:[#allocation3 + $0x228] sm:$0xff]
    %v3418 = vld [vmem:[#allocation3 + $0x260] sm:$0xff]
    %v3419 = vld [vmem:[#allocation3 + $0x298] sm:$0xff]
    %v3420 = vld [vmem:[#allocation3 + $0x2d0] sm:$0xff]
    %v3421 = vld [vmem:[#allocation3 + $0x308] sm:$0xff]
    %v3422 = vld [vmem:[#allocation3 + $0x340] sm:$0xff]
    %v3423 = vld [vmem:[#allocation3 + $0x378] sm:$0xff]
    %v3424 = vld [vmem:[#allocation3 + $0x3b0] sm:$0xff]
    %v3425 = vld [vmem:[#allocation3 + $0x3e8] sm:$0xff]
    %v3426 = vld [vmem:[#allocation3 + $0x420] sm:$0xff]
    %v3427 = vld [vmem:[#allocation3 + $0x458] sm:$0xff]
    %v3428 = vld [vmem:[#allocation3 + $0x490] sm:$0xff]
    %v3429 = vld [vmem:[#allocation3 + $0x4c8] sm:$0xff]
    %v3430 = vld [vmem:[#allocation3 + $0x500] sm:$0xff]
    %v3431 = vld [vmem:[#allocation3 + $0x538] sm:$0xff]
    %v3432 = vld [vmem:[#allocation3 + $0x570] sm:$0xff]
    %v3433 = vld [vmem:[#allocation3 + $0x5a8] sm:$0xff]
    %v3434 = vld [vmem:[#allocation3 + $0x5e0] sm:$0xff]
    %v3435 = vld [vmem:[#allocation3 + $0x618] sm:$0xff]
    %v3436 = vld [vmem:[#allocation3 + $0x650] sm:$0xff]
    %v3437 = vld [vmem:[#allocation3 + $0x688] sm:$0xff]
    %v3438 = vld [vmem:[#allocation3 + $0x6c0] sm:$0xff]
    %v3439 = vld [vmem:[#allocation3 + $0x6f8] sm:$0xff]
    %v3440 = vld [vmem:[#allocation3 + $0x730] sm:$0xff]
    %v3441 = vld [vmem:[#allocation3 + $0x768] sm:$0xff]
    %v3442 = vld [vmem:[#allocation3 + $0x7a0] sm:$0xff]
    %v3443 = vld [vmem:[#allocation3 + $0x7d8] sm:$0xff]
    %v3444 = vld [vmem:[#allocation3 + $0x810] sm:$0xff]
    %v3445 = vld [vmem:[#allocation3 + $0x848] sm:$0xff]
    %v3446 = vld [vmem:[#allocation3 + $0x880] sm:$0xff]
    %v3447 = vld [vmem:[#allocation3 + $0x8b8] sm:$0xff]
    %v3448 = vld [vmem:[#allocation3 + $0x8f0] sm:$0xff]
    %v3449 = vld [vmem:[#allocation3 + $0x928] sm:$0xff]
    %v3450 = vld [vmem:[#allocation3 + $0x960] sm:$0xff]
    %v3451 = vld [vmem:[#allocation3 + $0x998] sm:$0xff]
    %v3452 = vld [vmem:[#allocation3 + $0x9d0] sm:$0xff]
    %v3453 = vld [vmem:[#allocation3 + $0xa08] sm:$0xff]
    %v3454 = vld [vmem:[#allocation3 + $0xa40] sm:$0xff]
    %v3455 = vld [vmem:[#allocation3 + $0xa78] sm:$0xff]
    %v3456 = vld [vmem:[#allocation3 + $0xab0] sm:$0xff]
    %v3457 = vld [vmem:[#allocation3 + $0xae8] sm:$0xff]
    %v3458 = vld [vmem:[#allocation3 + $0xb20] sm:$0xff]
    %v3459 = vld [vmem:[#allocation3 + $0xb58] sm:$0xff]
    %v3460 = vld [vmem:[#allocation3 + $0xb90] sm:$0xff]
    %v3461 = vld [vmem:[#allocation3 + $0xbc8] sm:$0xff]
    %v3462 = vld [vmem:[#allocation3 + $0xc00] sm:$0xff]
    %v3463 = vld [vmem:[#allocation3 + $0xc38] sm:$0xff]
    %v3464 = vld [vmem:[#allocation3 + $0xc70] sm:$0xff]
    %v3465 = vld [vmem:[#allocation3 + $0xca8] sm:$0xff]
    %v3466 = vld [vmem:[#allocation3 + $0xce0] sm:$0xff]
    %v3467 = vld [vmem:[#allocation3 + $0xd18] sm:$0xff]
    %v3468 = vld [vmem:[#allocation3 + $0xd50] sm:$0xff]
    %v3469 = vld [vmem:[#allocation3 + $0xd88] sm:$0xff]
    %v3470 = vld [vmem:[#allocation3 + $0xdc0] sm:$0xff]
    %v3471 = vld [vmem:[#allocation3 + $0xdf8] sm:$0xff]
    %v3472 = vld [vmem:[#allocation22 + $0x6] sm:$0x1]
    %v3474 = vlaneseq
    %v3475 = vshrl.u32 %v3474, 7
    %v3476 = vsub.s32 0, %v3475
    %v3477 = vrot.slane %v3472, %v3476
    %3479 = vmatprep.subr.bf16.mxu0 0
    %3480 = vmatpush1.bf16.msra.mxu0 %v3408
    %3481 = vmatprep.subr.bf16.mxu0 0
    %3482 = vmatpush1.bf16.msra.mxu0 %v3409
    %3483 = vmatprep.subr.bf16.mxu0 0
    %3484 = vmatpush1.bf16.msra.mxu0 %v3410
    %3485 = vmatprep.subr.bf16.mxu0 0
    %3486 = vmatpush1.bf16.msra.mxu0 %v3411
    %3487 = vmatprep.subr.bf16.mxu0 0
    %3488 = vmatpush1.bf16.msra.mxu0 %v3412
    %3489 = vmatprep.subr.bf16.mxu0 0
    %3490 = vmatpush1.bf16.msra.mxu0 %v3413
    %3491 = vmatprep.subr.bf16.mxu0 0
    %3492 = vmatpush1.bf16.msra.mxu0 %v3414
    %3493 = vmatprep.subr.bf16.mxu0 0
    %3494 = vmatpush1.bf16.msra.mxu0 %v3415
    %3495 = vmatprep.subr.bf16.mxu0 0
    %3496 = vmatpush1.bf16.msra.mxu0 %v3416
    %3497 = vmatprep.subr.bf16.mxu0 0
    %3498 = vmatpush1.bf16.msra.mxu0 %v3417
    %3499 = vmatprep.subr.bf16.mxu0 0
    %3500 = vmatpush1.bf16.msra.mxu0 %v3418
    %3501 = vmatprep.subr.bf16.mxu0 0
    %3502 = vmatpush1.bf16.msra.mxu0 %v3419
    %3503 = vmatprep.subr.bf16.mxu0 0
    %3504 = vmatpush1.bf16.msra.mxu0 %v3420
    %3505 = vmatprep.subr.bf16.mxu0 0
    %3506 = vmatpush1.bf16.msra.mxu0 %v3421
    %3507 = vmatprep.subr.bf16.mxu0 0
    %3508 = vmatpush1.bf16.msra.mxu0 %v3422
    %3509 = vmatprep.subr.bf16.mxu0 0
    %3510 = vmatpush1.bf16.msra.mxu0 %v3423
    %3511 = vmatprep.mubr.bf16.mxu0 %v2466
    %3512 = vmatmul.mubr.bf16.gmra.mrb[0].mxu0 %v2465
    %v3513 = vpop.f32.mrb[0].mxu0
    %v3514 = vadd.f32 %v3477, %v3513
    %v3515 = vpop.f32.mrb[0].mxu0
    %v3516 = vpop.f32.mrb[0].mxu0
    %v3517 = vpop.f32.mrb[0].mxu0
    %3518 = vdwg.mxu0
    %3519 = vmatprep.subr.bf16.mxu0 0
    %3520 = vmatpush1.bf16.msra.mxu0 %v3424
    %3521 = vmatprep.subr.bf16.mxu0 0
    %3522 = vmatpush1.bf16.msra.mxu0 %v3425
    %3523 = vmatprep.subr.bf16.mxu0 0
    %3524 = vmatpush1.bf16.msra.mxu0 %v3426
    %3525 = vmatprep.subr.bf16.mxu0 0
    %3526 = vmatpush1.bf16.msra.mxu0 %v3427
    %3527 = vmatprep.subr.bf16.mxu0 0
    %3528 = vmatpush1.bf16.msra.mxu0 %v3428
    %3529 = vmatprep.subr.bf16.mxu0 0
    %3530 = vmatpush1.bf16.msra.mxu0 %v3429
    %3531 = vmatprep.subr.bf16.mxu0 0
    %3532 = vmatpush1.bf16.msra.mxu0 %v3430
    %3533 = vmatprep.subr.bf16.mxu0 0
    %3534 = vmatpush1.bf16.msra.mxu0 %v3431
    %3535 = vmatprep.subr.bf16.mxu0 0
    %3536 = vmatpush1.bf16.msra.mxu0 %v3432
    %3537 = vmatprep.subr.bf16.mxu0 0
    %3538 = vmatpush1.bf16.msra.mxu0 %v3433
    %3539 = vmatprep.subr.bf16.mxu0 0
    %3540 = vmatpush1.bf16.msra.mxu0 %v3434
    %3541 = vmatprep.subr.bf16.mxu0 0
    %3542 = vmatpush1.bf16.msra.mxu0 %v3435
    %3543 = vmatprep.subr.bf16.mxu0 0
    %3544 = vmatpush1.bf16.msra.mxu0 %v3436
    %3545 = vmatprep.subr.bf16.mxu0 0
    %3546 = vmatpush1.bf16.msra.mxu0 %v3437
    %3547 = vmatprep.subr.bf16.mxu0 0
    %3548 = vmatpush1.bf16.msra.mxu0 %v3438
    %3549 = vmatprep.subr.bf16.mxu0 0
    %3550 = vmatpush1.bf16.msra.mxu0 %v3439
    %3551 = vmatprep.mubr.bf16.mxu0 %v2468
    %3552 = vmatmul.mubr.bf16.gmra.mrb[0].mxu0 %v2467
    %v3553 = vpop.f32.mrb[0].mxu0
    %v3554 = vadd.f32 %v3514, %v3553
    %v3555 = vpop.f32.mrb[0].mxu0
    %v3556 = vpop.f32.mrb[0].mxu0
    %v3557 = vpop.f32.mrb[0].mxu0
    %3558 = vdwg.mxu0
    %3559 = vmatprep.subr.bf16.mxu0 0
    %3560 = vmatpush1.bf16.msra.mxu0 %v3440
    %3561 = vmatprep.subr.bf16.mxu0 0
    %3562 = vmatpush1.bf16.msra.mxu0 %v3441
    %3563 = vmatprep.subr.bf16.mxu0 0
    %3564 = vmatpush1.bf16.msra.mxu0 %v3442
    %3565 = vmatprep.subr.bf16.mxu0 0
    %3566 = vmatpush1.bf16.msra.mxu0 %v3443
    %3567 = vmatprep.subr.bf16.mxu0 0
    %3568 = vmatpush1.bf16.msra.mxu0 %v3444
    %3569 = vmatprep.subr.bf16.mxu0 0
    %3570 = vmatpush1.bf16.msra.mxu0 %v3445
    %3571 = vmatprep.subr.bf16.mxu0 0
    %3572 = vmatpush1.bf16.msra.mxu0 %v3446
    %3573 = vmatprep.subr.bf16.mxu0 0
    %3574 = vmatpush1.bf16.msra.mxu0 %v3447
    %3575 = vmatprep.subr.bf16.mxu0 0
    %3576 = vmatpush1.bf16.msra.mxu0 %v3448
    %3577 = vmatprep.subr.bf16.mxu0 0
    %3578 = vmatpush1.bf16.msra.mxu0 %v3449
    %3579 = vmatprep.subr.bf16.mxu0 0
    %3580 = vmatpush1.bf16.msra.mxu0 %v3450
    %3581 = vmatprep.subr.bf16.mxu0 0
    %3582 = vmatpush1.bf16.msra.mxu0 %v3451
    %3583 = vmatprep.subr.bf16.mxu0 0
    %3584 = vmatpush1.bf16.msra.mxu0 %v3452
    %3585 = vmatprep.subr.bf16.mxu0 0
    %3586 = vmatpush1.bf16.msra.mxu0 %v3453
    %3587 = vmatprep.subr.bf16.mxu0 0
    %3588 = vmatpush1.bf16.msra.mxu0 %v3454
    %3589 = vmatprep.subr.bf16.mxu0 0
    %3590 = vmatpush1.bf16.msra.mxu0 %v3455
    %3591 = vmatprep.mubr.bf16.mxu0 %v2470
    %3592 = vmatmul.mubr.bf16.gmra.mrb[0].mxu0 %v2469
    %v3593 = vpop.f32.mrb[0].mxu0
    %v3594 = vadd.f32 %v3554, %v3593
    %v3595 = vpop.f32.mrb[0].mxu0
    %v3596 = vpop.f32.mrb[0].mxu0
    %v3597 = vpop.f32.mrb[0].mxu0
    %3598 = vdwg.mxu0
    %3599 = vmatprep.subr.bf16.mxu0 0
    %3600 = vmatpush1.bf16.msra.mxu0 %v3456
    %3601 = vmatprep.subr.bf16.mxu0 0
    %3602 = vmatpush1.bf16.msra.mxu0 %v3457
    %3603 = vmatprep.subr.bf16.mxu0 0
    %3604 = vmatpush1.bf16.msra.mxu0 %v3458
    %3605 = vmatprep.subr.bf16.mxu0 0
    %3606 = vmatpush1.bf16.msra.mxu0 %v3459
    %3607 = vmatprep.subr.bf16.mxu0 0
    %3608 = vmatpush1.bf16.msra.mxu0 %v3460
    %3609 = vmatprep.subr.bf16.mxu0 0
    %3610 = vmatpush1.bf16.msra.mxu0 %v3461
    %3611 = vmatprep.subr.bf16.mxu0 0
    %3612 = vmatpush1.bf16.msra.mxu0 %v3462
    %3613 = vmatprep.subr.bf16.mxu0 0
    %3614 = vmatpush1.bf16.msra.mxu0 %v3463
    %3615 = vmatprep.subr.bf16.mxu0 0
    %3616 = vmatpush1.bf16.msra.mxu0 %v3464
    %3617 = vmatprep.subr.bf16.mxu0 0
    %3618 = vmatpush1.bf16.msra.mxu0 %v3465
    %3619 = vmatprep.subr.bf16.mxu0 0
    %3620 = vmatpush1.bf16.msra.mxu0 %v3466
    %3621 = vmatprep.subr.bf16.mxu0 0
    %3622 = vmatpush1.bf16.msra.mxu0 %v3467
    %3623 = vmatprep.subr.bf16.mxu0 0
    %3624 = vmatpush1.bf16.msra.mxu0 %v3468
    %3625 = vmatprep.subr.bf16.mxu0 0
    %3626 = vmatpush1.bf16.msra.mxu0 %v3469
    %3627 = vmatprep.subr.bf16.mxu0 0
    %3628 = vmatpush1.bf16.msra.mxu0 %v3470
    %3629 = vmatprep.subr.bf16.mxu0 0
    %3630 = vmatpush1.bf16.msra.mxu0 %v3471
    %3631 = vmatprep.mubr.bf16.mxu0 %v2472
    %3632 = vmatmul.mubr.bf16.gmra.mrb[0].mxu0 %v2471
    %v3633 = vpop.f32.mrb[0].mxu0
    %v3634 = vadd.f32 %v3594, %v3633
    %v3635 = vpop.f32.mrb[0].mxu0
    %v3636 = vpop.f32.mrb[0].mxu0
    %v3637 = vpop.f32.mrb[0].mxu0
    %3638 = vdwg.mxu0
    %v3639 = vtanh.pop %v3634
    %3640 = vst [vmem:[%s15 + $0x30] sm:$0xff] %v3639
    // Predicated region
    $region102: #{vanilla_net_forward.1} parent=1 // pred_check
      _
    $region103: #{vanilla_net_forward.1} parent=1 // pred_check_branch
      %3642 = sbr.rel (0) target = $region105
    $region104: #{vanilla_net_forward.1} parent=1 // pred_region
      _
    $region105: #{vanilla_net_forward.1} parent=1 // pred_fallthru
      _
    // Predicated region
    $region106: #{vanilla_net_forward.1} parent=1 // pred_check
      _
    $region107: #{vanilla_net_forward.1} parent=1 // pred_check_branch
      %3644 = sbr.rel (0) target = $region109
    $region108: #{vanilla_net_forward.1} parent=1 // pred_region
      _
    $region109: #{vanilla_net_forward.1} parent=1 // pred_fallthru
      _
    %3645 = vsyncpa [#allocation6], 1
    %3646 = vsyncpa [#allocation8], 1
    %3647 = vsyncpa [#allocation11], 1
    %3648 = vsyncpa [#allocation14], 1
    %3649 = vsyncpa [#allocation17], 1
    %3650 = vsyncpa [#allocation20], 1
    %3651 = vsyncpa [#allocation23], 1
  %3652 = vsyncmov [#allocation4]
  %s3653 = vpop.sfrf %3652
  %p3654 = scmp.eq.s32.totalorder %s3653, 0
  %p3655 = pneg %p3654
  %3657 = shalt.err (%p3655)
  %s3658 = scalar_lea.sflag [#allocation4], 1
  %3659 = vsyncmov %s3658
  %s3660 = vpop.sfrf %3659
  %p3661 = scmp.eq.s32.totalorder %s3660, 0
  %p3662 = pneg %p3661
  %3664 = shalt.err (%p3662)
  %s3665 = scalar_lea.sflag [#allocation4], 2
  %3666 = vsyncmov %s3665
  %s3667 = vpop.sfrf %3666
  %p3668 = scmp.eq.s32.totalorder %s3667, 0
  %p3669 = pneg %p3668
  %3671 = shalt.err (%p3669)
  %s3672 = scalar_lea.sflag [#allocation4], 3
  %3673 = vsyncmov %s3672
  %s3674 = vpop.sfrf %3673
  %p3675 = scmp.eq.s32.totalorder %s3674, 0
  %p3676 = pneg %p3675
  %3678 = shalt.err (%p3676)
  %s3679 = scalar_lea.sflag [#allocation4], 4
  %3680 = vsyncmov %s3679
  %s3681 = vpop.sfrf %3680
  %p3682 = scmp.eq.s32.totalorder %s3681, 0
  %p3683 = pneg %p3682
  %3685 = shalt.err (%p3683)

</llo_original>
